<compile_context>
chip_gen: v7x
topology: tpu7x:2x2x1
jax: 0.10.0
libtpu: 0.0.40
codegen_flags: <defaults>
</compile_context>

<pallas_src>
import jax
import jax.numpy as jnp
from jax.experimental import pallas as pl
from jax.experimental.pallas import tpu as pltpu

NEG_SLOPE = 0.01   # F.leaky_relu default
BN_EPS = 1e-5      # nn.BatchNorm1d default


# ---------------------------------------------------------------------------
# in-kernel helpers (f32 elementwise math)
# ---------------------------------------------------------------------------
def _leaky_relu(x):
    return jnp.where(x >= 0, x, NEG_SLOPE * x)


def _softplus(x):
    # numerically stable softplus
    return jnp.maximum(x, 0.0) + jnp.log(1.0 + jnp.exp(-jnp.abs(x)))


def _sigmoid(x):
    # exact (parity with torch.sigmoid)
    return 1.0 / (1.0 + jnp.exp(-x))


# ---------------------------------------------------------------------------
# the single fused kernel
# ---------------------------------------------------------------------------
def _polymernet_kernel(
        # graph data
        x_ref, e_ref, ts_ref, tgt_t_ref, bmat_ref,
        # weights (slabs)
        node_w_ref, edge_w_ref, wcat_ref, tail_w_ref, vec_ref,
        # output
        o_ref):
    f32 = jnp.float32
    fp = tail_w_ref.shape[-1]              # padded feature width (128)
    n_layers = wcat_ref.shape[0]
    n_hidden = tail_w_ref.shape[0] - 2     # tail = [wn, h_0..h_{k-1}, out_w]
    n_edges = ts_ref.shape[0] // 2
    n_nodes = tgt_t_ref.shape[0]
    inv_n = 1.0 / float(n_nodes)

    def mm(a, b):
        return jnp.dot(a, b, preferred_element_type=f32)

    # ---- node / edge embeddings ----
    out = _leaky_relu(mm(x_ref[...], node_w_ref[...]) + vec_ref[0:1, :])
    ea = _leaky_relu(mm(e_ref[...], edge_w_ref[...]) + vec_ref[1:2, :])

    # ---- CGConv stack: activations never leave VMEM/vregs ----
    for l in range(n_layers):
        vrow = 2 + 4 * l

        # one stacked one-hot gather: rows [:E] = x_i (targets), [E:] = x_j (sources)
        gathered = mm(ts_ref[...], out)                    # (2E, Fp)
        x_i = gathered[:n_edges]
        x_j = gathered[n_edges:]

        # lin_f / lin_s fused into a 2Fp-wide output; concat-free accumulation
        z = (mm(x_i, wcat_ref[l, 0:fp, :])
             + mm(x_j, wcat_ref[l, fp:2 * fp, :])
             + mm(ea, wcat_ref[l, 2 * fp:3 * fp, :]))      # (E, 2Fp)
        zf = z[:, :fp] + vec_ref[vrow:vrow + 1, :]         # lin_f pre-activation
        zs = z[:, fp:] + vec_ref[vrow + 1:vrow + 2, :]     # lin_s pre-activation
        msg = _sigmoid(zf) * _softplus(zs)                 # (E, Fp)

        # scatter-mean onto target nodes (1/deg already folded into tgt_t on host)
        agg = mm(tgt_t_ref[...], msg)                      # (N, Fp)

        # BatchNorm1d, training-mode batch statistics, single pass (biased var)
        s1 = jnp.sum(agg, axis=0, keepdims=True) * inv_n
        s2 = jnp.sum(agg * agg, axis=0, keepdims=True) * inv_n
        var = jnp.maximum(s2 - s1 * s1, 0.0)
        bn = (vec_ref[vrow + 2:vrow + 3, :] * (agg - s1) * jax.lax.rsqrt(var + BN_EPS)
              + vec_ref[vrow + 3:vrow + 4, :])

        out = bn + out                                     # residual

    # ---- GlobalAttention pooling (gate matmul fused into nn matmul) ----
    prow = 2 + 4 * n_layers
    xt = mm(out, tail_w_ref[0]) + vec_ref[prow:prow + 1, :]   # (N, Fp); gate in lane Fp-1
    gate = xt[:, fp - 1:fp]                                   # (N, 1)

    bmask = bmat_ref[...] > 0.5                               # (N, G) graph membership
    masked = jnp.where(bmask, gate, -1e30)                    # (N, G)
    mx = jnp.max(masked, axis=0, keepdims=True)               # (1, G)
    ex = jnp.where(bmask, jnp.exp(masked - mx), 0.0)
    den = jnp.maximum(jnp.sum(ex, axis=0, keepdims=True), 1e-30)  # empty-graph guard
    alpha = ex / den                                          # (N, G), exact divide

    # pooled[g, :] = sum_n alpha[n, g] * xt[n, :]
    pooled = jax.lax.dot_general(alpha, xt, (((0,), (0,)), ((), ())),
                                 preferred_element_type=f32)  # (G, Fp)
    # (the gate lane of `pooled` is garbage but is killed by zero weight rows below)

    # ---- head MLP fused as epilogue; lane-dense (G, Fp) output ----
    h = pooled
    for i in range(n_hidden):
        h = _leaky_relu(mm(h, tail_w_ref[1 + i])
                        + vec_ref[prow + 1 + i:prow + 2 + i, :])
    o_ref[...] = (mm(h, tail_w_ref[1 + n_hidden])
                  + vec_ref[prow + 1 + n_hidden:prow + 2 + n_hidden, :])


# ---------------------------------------------------------------------------
# host-side wrappers
# ---------------------------------------------------------------------------
def _vmem():
    return pl.BlockSpec(memory_space=pltpu.MemorySpace.VMEM)


def polymer_net_forward(kp, x, edge_attr, ts, tgt_t_scaled, bmat):
    """Run the fused PolymerNet forward. Returns (num_graphs,) f32 predictions."""
    n_graphs = bmat.shape[1]
    fp = kp["tail_w"].shape[-1]
    n_nodes = tgt_t_scaled.shape[0]
    n_edges = ts.shape[0] // 2
    n_layers = kp["wcat"].shape[0]
    n_hidden = kp["tail_w"].shape[0] - 2

    args = (x, edge_attr, ts, tgt_t_scaled, bmat,
            kp["node_w"], kp["edge_w"], kp["wcat"], kp["tail_w"], kp["vec"])

    # rough advisory cost model
    flops = (2 * n_nodes * x.shape[1] * fp + 2 * n_edges * edge_attr.shape[1] * fp
             + n_layers * (2 * (2 * n_edges) * n_nodes * fp          # gather
                           + 3 * 2 * n_edges * fp * (2 * fp)         # fused lin_f/lin_s
                           + 2 * n_nodes * n_edges * fp              # scatter-mean
                           + 8 * n_nodes * fp)                       # BN + residual
             + 2 * n_nodes * fp * fp + 2 * n_graphs * n_nodes * fp   # pooling
             + (n_hidden + 1) * 2 * n_graphs * fp * fp)              # head
    transcendentals = n_layers * 2 * n_edges * fp + n_nodes * n_graphs
    bytes_accessed = (sum(int(a.size) * a.dtype.itemsize for a in args)
                      + n_graphs * fp * 4)

    kwargs = {}
    if jax.default_backend() == "tpu":
        kwargs["compiler_params"] = pltpu.CompilerParams(
            vmem_limit_bytes=48 * 1024 * 1024)
        kwargs["cost_estimate"] = pl.CostEstimate(
            flops=flops, transcendentals=transcendentals,
            bytes_accessed=bytes_accessed)

    out_pad = pl.pallas_call(
        _polymernet_kernel,
        out_shape=jax.ShapeDtypeStruct((n_graphs, fp), jnp.float32),
        in_specs=[_vmem()] * len(args),
        out_specs=_vmem(),
        **kwargs,
    )(*args)
    return out_pad[:, 0]                             # real prediction lives in lane 0


def prepare_graph(src_idx, dst_idx, batch, n_nodes, n_graphs):
    """One-time host-side graph prep: dense incidence operands for the kernel."""
    src_oh = jax.nn.one_hot(src_idx, n_nodes, dtype=jnp.float32)    # (E, N)
    tgt_oh = jax.nn.one_hot(dst_idx, n_nodes, dtype=jnp.float32)    # (E, N)
    # stacked gather operand: rows [:E] pick x_i (targets), rows [E:] pick x_j (sources)
    ts = jnp.concatenate([tgt_oh, src_oh], axis=0)                  # (2E, N)
    deg = jnp.sum(tgt_oh, axis=0)                                   # in-degree per node
    # mean aggregation divides by max(deg, 1); isolated nodes receive an all-zero
    # scattered row so the result is exactly 0 regardless of the divisor.
    inv_deg = (1.0 / jnp.maximum(deg, 1.0)).reshape(n_nodes, 1)
    tgt_t_scaled = inv_deg * tgt_oh.T                               # (N, E), 1/deg folded in
    bmat = jax.nn.one_hot(batch, n_graphs, dtype=jnp.float32)       # (N, G)
    return ts, tgt_t_scaled, bmat


# ---------------------------------------------------------------------------
# parameter init (logical, unpadded — mirrors the PyTorch module layout)
# ---------------------------------------------------------------------------
def init_params(key, node_in_len, edge_in_len, fea_len, n_layers, n_h):
    assert n_h >= 2, "demo assumes at least one hidden head layer"

    def lin(k, din, dout, scale=0.1):
        kw, kb = jax.random.split(k)
        w = scale * jax.random.normal(kw, (din, dout), jnp.float32)
        b = scale * jax.random.normal(kb, (1, dout), jnp.float32)
        return w, b

    keys = jax.random.split(key, 8 + n_layers)
    p = {}
    p["node_w"], p["node_b"] = lin(keys[0], node_in_len, fea_len)
    p["edge_w"], p["edge_b"] = lin(keys[1], edge_in_len, fea_len)

    p["cgconvs"] = []
    for li in range(n_layers):
        ks = jax.random.split(keys[2 + li], 6)
        layer = {}
        layer["wfi"], layer["bf"] = lin(ks[0], fea_len, fea_len)
        layer["wfj"], _ = lin(ks[1], fea_len, fea_len)
        layer["wfe"], _ = lin(ks[2], fea_len, fea_len)
        layer["wsi"], layer["bs"] = lin(ks[3], fea_len, fea_len)
        layer["wsj"], _ = lin(ks[4], fea_len, fea_len)
        layer["wse"], _ = lin(ks[5], fea_len, fea_len)
        layer["gamma"] = jnp.ones((1, fea_len), jnp.float32)   # BatchNorm1d defaults
        layer["beta"] = jnp.zeros((1, fea_len), jnp.float32)
        p["cgconvs"].append(layer)

    kpool = jax.random.split(keys[2 + n_layers], 4)
    pool = {}
    pool["wg1"], pool["bg1"] = lin(kpool[0], fea_len, fea_len)
    pool["wg2"], pool["bg2"] = lin(kpool[1], fea_len, 1)
    pool["wn1"], pool["bn1"] = lin(kpool[2], fea_len, fea_len)
    pool["wn2"], pool["bn2"] = lin(kpool[3], fea_len, fea_len)
    p["pool"] = pool

    p["hs"] = []
    for hi in range(n_h - 1):
        p["hs"].append(lin(keys[3 + n_layers + hi], fea_len, fea_len))
    p["out_w"], p["out_b"] = lin(keys[-1], fea_len, 1)
    return p


# ---------------------------------------------------------------------------
# pack / pad / fuse parameters for the kernel
#   - feature dim zero-padded fea_len -> fea_pad (128); padded rows/cols zero
#   - lin_f / lin_s stacked into one (3Fp, 2Fp) weight per CGConv layer
#   - gate_nn / nn Sequential(Linear, Linear) composed into single affines,
#     gate weights written into the last (padding) lane of the nn weight
#   - all (1, Fp) vectors packed into one "vec" slab; wn / hidden / out weights
#     packed into one "tail_w" slab
# ---------------------------------------------------------------------------
def pack_params(p, fea, fea_pad):
    assert fea < fea_pad, "gate fusion needs at least one padding lane"

    def pad2(a, rows, cols):
        r, c = a.shape
        return jnp.pad(a, ((0, rows - r), (0, cols - c)))

    kp = {}
    kp["node_w"] = pad2(p["node_w"], p["node_w"].shape[0], fea_pad)
    kp["edge_w"] = pad2(p["edge_w"], p["edge_w"].shape[0], fea_pad)

    vec_rows = [pad2(p["node_b"], 1, fea_pad), pad2(p["edge_b"], 1, fea_pad)]

    wcat_l = []
    for layer in p["cgconvs"]:
        row_blocks = []
        for wf_piece, ws_piece in ((layer["wfi"], layer["wsi"]),
                                   (layer["wfj"], layer["wsj"]),
                                   (layer["wfe"], layer["wse"])):
            row_blocks.append(jnp.concatenate(
                [pad2(wf_piece, fea_pad, fea_pad), pad2(ws_piece, fea_pad, fea_pad)],
                axis=1))
        wcat_l.append(jnp.concatenate(row_blocks, axis=0))        # (3Fp, 2Fp)
        vec_rows += [pad2(layer["bf"], 1, fea_pad),
                     pad2(layer["bs"], 1, fea_pad),
                     pad2(layer["gamma"], 1, fea_pad),
                     pad2(layer["beta"], 1, fea_pad)]
    kp["wcat"] = jnp.stack(wcat_l)                                # (L, 3Fp, 2Fp)

    # GlobalAttention: Sequential(Linear, Linear) with no activation == one affine
    pool = p["pool"]
    wg_eff = pool["wg1"] @ pool["wg2"]                            # (F, 1)
    bg_eff = pool["bg1"] @ pool["wg2"] + pool["bg2"]              # (1, 1)
    wn_eff = pool["wn1"] @ pool["wn2"]                            # (F, F)
    bn_eff = pool["bn1"] @ pool["wn2"] + pool["bn2"]              # (1, F)
    wn_pad = pad2(wn_eff, fea_pad, fea_pad)
    wn_pad = wn_pad.at[:fea, fea_pad - 1].set(wg_eff[:, 0])       # gate -> last lane
    bn_pad = pad2(bn_eff, 1, fea_pad)
    bn_pad = bn_pad.at[0, fea_pad - 1].set(bg_eff[0, 0])
    vec_rows.append(bn_pad)

    tail = [wn_pad]
    for w, b in p["hs"]:
        tail.append(pad2(w, fea_pad, fea_pad))
        vec_rows.append(pad2(b, 1, fea_pad))
    tail.append(pad2(p["out_w"], fea_pad, fea_pad))               # real column = 0
    vec_rows.append(pad2(p["out_b"], 1, fea_pad))

    kp["tail_w"] = jnp.stack(tail)                                # (n_h+1, Fp, Fp)
    kp["vec"] = jnp.concatenate(vec_rows, axis=0)                 # (R, Fp)
    return kp


# ---------------------------------------------------------------------------
# demo
# ---------------------------------------------------------------------------
if __name__ == "__main__":
    # model config (logical) + padded kernel width
    NODE_IN, EDGE_IN, FEA, N_LAYERS, N_H = 16, 8, 32, 2, 2
    FEA_PAD = 128
    NODES_PER_G, EDGES_PER_G, G = 16, 32, 4          # 4 graphs batched per call
    N, E = NODES_PER_G * G, EDGES_PER_G * G          # 64 nodes, 128 directed edges

    key = jax.random.PRNGKey(0)
    k_x, k_e, k_src, k_dst, k_par = jax.random.split(key, 5)

    x = jax.random.normal(k_x, (N, NODE_IN), jnp.float32)
    edge_attr = jax.random.normal(k_e, (E, EDGE_IN), jnp.float32)

    # nodes g*16..g*16+15 belong to graph g; edges stay within a graph
    batch = jnp.repeat(jnp.arange(G, dtype=jnp.int32), NODES_PER_G)
    src_local = jax.random.randint(k_src, (G, EDGES_PER_G), 0, NODES_PER_G)
    dst_local = jax.random.randint(k_dst, (G, EDGES_PER_G), 0, NODES_PER_G)
    offs = (jnp.arange(G, dtype=jnp.int32) * NODES_PER_G)[:, None]
    src_idx = (src_local + offs).reshape(-1).astype(jnp.int32)     # edge_index[0]
    dst_idx = (dst_local + offs).reshape(-1).astype(jnp.int32)     # edge_index[1]

    # one-time host-side graph prep (incidence operands, inv-deg folded in)
    ts, tgt_t_scaled, bmat = prepare_graph(src_idx, dst_idx, batch, N, G)

    params = init_params(k_par, NODE_IN, EDGE_IN, FEA, N_LAYERS, N_H)
    kparams = pack_params(params, FEA, FEA_PAD)

    fwd = jax.jit(polymer_net_forward)
    out = fwd(kparams, x, edge_attr, ts, tgt_t_scaled, bmat)
    out = jax.block_until_ready(out)

    assert out.shape == (G,) and out.dtype == jnp.float32
    assert bool(jnp.all(jnp.isfinite(out)))
    print("KERNEL_OK")
</pallas_src>

<mosaic_0001>
module attributes {stable_mosaic.version = 11 : i64} {
  func.func @_polymernet_kernel(%arg0: memref<64x16xf32, #tpu.memory_space<vmem>>, %arg1: memref<128x8xf32, #tpu.memory_space<vmem>>, %arg2: memref<256x64xf32, #tpu.memory_space<vmem>>, %arg3: memref<64x128xf32, #tpu.memory_space<vmem>>, %arg4: memref<64x4xf32, #tpu.memory_space<vmem>>, %arg5: memref<16x128xf32, #tpu.memory_space<vmem>>, %arg6: memref<8x128xf32, #tpu.memory_space<vmem>>, %arg7: memref<2x384x256xf32, #tpu.memory_space<vmem>>, %arg8: memref<3x128x128xf32, #tpu.memory_space<vmem>>, %arg9: memref<13x128xf32, #tpu.memory_space<vmem>>, %arg10: memref<4x128xf32, #tpu.memory_space<vmem>>) attributes {dimension_semantics = [], scalar_prefetch = 0 : i64, scratch_operands = 0 : i64, tpu.core_type = #tpu.core_type<tc>} {
    %c0 = arith.constant 0 : index
    %c0_0 = arith.constant 0 : index
    %0 = vector.load %arg0[%c0, %c0_0] : memref<64x16xf32, #tpu.memory_space<vmem>>, vector<64x16xf32>
    %c0_1 = arith.constant 0 : index
    %c0_2 = arith.constant 0 : index
    %1 = vector.load %arg5[%c0_1, %c0_2] : memref<16x128xf32, #tpu.memory_space<vmem>>, vector<16x128xf32>
    %cst = arith.constant dense<0.000000e+00> : vector<64x128xf32>
    %2 = tpu.matmul %0, %1, %cst {dimension_numbers = #tpu.dot_dimension_numbers<[1], [0], [0], [1], [0, 0, 1, 1], [], []>} : vector<64x16xf32>, vector<16x128xf32>, vector<64x128xf32> -> vector<64x128xf32>
    %c0_3 = arith.constant 0 : index
    %c0_4 = arith.constant 0 : index
    %3 = vector.load %arg9[%c0_3, %c0_4] : memref<13x128xf32, #tpu.memory_space<vmem>>, vector<1x128xf32>
    %4 = vector.broadcast %3 : vector<1x128xf32> to vector<64x128xf32>
    %5 = arith.addf %2, %4 : vector<64x128xf32>
    %cst_5 = arith.constant 0.000000e+00 : f32
    %6 = vector.broadcast %cst_5 : f32 to vector<64x128xf32>
    %7 = arith.cmpf oge, %5, %6 : vector<64x128xf32>
    %cst_6 = arith.constant 0.00999999977 : f32
    %8 = vector.broadcast %cst_6 : f32 to vector<64x128xf32>
    %9 = arith.mulf %8, %5 : vector<64x128xf32>
    %10 = arith.select %7, %5, %9 : vector<64x128xi1>, vector<64x128xf32>
    %c0_7 = arith.constant 0 : index
    %c0_8 = arith.constant 0 : index
    %11 = vector.load %arg1[%c0_7, %c0_8] : memref<128x8xf32, #tpu.memory_space<vmem>>, vector<128x8xf32>
    %c0_9 = arith.constant 0 : index
    %c0_10 = arith.constant 0 : index
    %12 = vector.load %arg6[%c0_9, %c0_10] : memref<8x128xf32, #tpu.memory_space<vmem>>, vector<8x128xf32>
    %cst_11 = arith.constant dense<0.000000e+00> : vector<128x128xf32>
    %13 = tpu.matmul %11, %12, %cst_11 {dimension_numbers = #tpu.dot_dimension_numbers<[1], [0], [0], [1], [0, 0, 1, 1], [], []>} : vector<128x8xf32>, vector<8x128xf32>, vector<128x128xf32> -> vector<128x128xf32>
    %c1 = arith.constant 1 : index
    %c0_12 = arith.constant 0 : index
    %14 = vector.load %arg9[%c1, %c0_12] : memref<13x128xf32, #tpu.memory_space<vmem>>, vector<1x128xf32>
    %15 = vector.broadcast %14 : vector<1x128xf32> to vector<128x128xf32>
    %16 = arith.addf %13, %15 : vector<128x128xf32>
    %cst_13 = arith.constant 0.000000e+00 : f32
    %17 = vector.broadcast %cst_13 : f32 to vector<128x128xf32>
    %18 = arith.cmpf oge, %16, %17 : vector<128x128xf32>
    %cst_14 = arith.constant 0.00999999977 : f32
    %19 = vector.broadcast %cst_14 : f32 to vector<128x128xf32>
    %20 = arith.mulf %19, %16 : vector<128x128xf32>
    %21 = arith.select %18, %16, %20 : vector<128x128xi1>, vector<128x128xf32>
    %c0_15 = arith.constant 0 : index
    %c0_16 = arith.constant 0 : index
    %22 = vector.load %arg2[%c0_15, %c0_16] : memref<256x64xf32, #tpu.memory_space<vmem>>, vector<256x64xf32>
    %cst_17 = arith.constant dense<0.000000e+00> : vector<256x128xf32>
    %23 = tpu.matmul %22, %10, %cst_17 {dimension_numbers = #tpu.dot_dimension_numbers<[1], [0], [0], [1], [0, 0, 1, 1], [], []>} : vector<256x64xf32>, vector<64x128xf32>, vector<256x128xf32> -> vector<256x128xf32>
    %24 = vector.extract_strided_slice %23 {offsets = [0, 0], sizes = [128, 128], strides = [1, 1]} : vector<256x128xf32> to vector<128x128xf32>
    %25 = vector.extract_strided_slice %23 {offsets = [128, 0], sizes = [128, 128], strides = [1, 1]} : vector<256x128xf32> to vector<128x128xf32>
    %c0_18 = arith.constant 0 : index
    %c0_19 = arith.constant 0 : index
    %c0_20 = arith.constant 0 : index
    %26 = vector.load %arg7[%c0_18, %c0_19, %c0_20] : memref<2x384x256xf32, #tpu.memory_space<vmem>>, vector<1x128x256xf32>
    %27 = vector.shape_cast %26 : vector<1x128x256xf32> to vector<128x256xf32>
    %cst_21 = arith.constant dense<0.000000e+00> : vector<128x256xf32>
    %28 = tpu.matmul %24, %27, %cst_21 {dimension_numbers = #tpu.dot_dimension_numbers<[1], [0], [0], [1], [0, 0, 1, 1], [], []>} : vector<128x128xf32>, vector<128x256xf32>, vector<128x256xf32> -> vector<128x256xf32>
    %c0_22 = arith.constant 0 : index
    %c128 = arith.constant 128 : index
    %c0_23 = arith.constant 0 : index
    %29 = vector.load %arg7[%c0_22, %c128, %c0_23] : memref<2x384x256xf32, #tpu.memory_space<vmem>>, vector<1x128x256xf32>
    %30 = vector.shape_cast %29 : vector<1x128x256xf32> to vector<128x256xf32>
    %cst_24 = arith.constant dense<0.000000e+00> : vector<128x256xf32>
    %31 = tpu.matmul %25, %30, %cst_24 {dimension_numbers = #tpu.dot_dimension_numbers<[1], [0], [0], [1], [0, 0, 1, 1], [], []>} : vector<128x128xf32>, vector<128x256xf32>, vector<128x256xf32> -> vector<128x256xf32>
    %32 = arith.addf %28, %31 : vector<128x256xf32>
    %c0_25 = arith.constant 0 : index
    %c256 = arith.constant 256 : index
    %c0_26 = arith.constant 0 : index
    %33 = vector.load %arg7[%c0_25, %c256, %c0_26] : memref<2x384x256xf32, #tpu.memory_space<vmem>>, vector<1x128x256xf32>
    %34 = vector.shape_cast %33 : vector<1x128x256xf32> to vector<128x256xf32>
    %cst_27 = arith.constant dense<0.000000e+00> : vector<128x256xf32>
    %35 = tpu.matmul %21, %34, %cst_27 {dimension_numbers = #tpu.dot_dimension_numbers<[1], [0], [0], [1], [0, 0, 1, 1], [], []>} : vector<128x128xf32>, vector<128x256xf32>, vector<128x256xf32> -> vector<128x256xf32>
    %36 = arith.addf %32, %35 : vector<128x256xf32>
    %37 = vector.extract_strided_slice %36 {offsets = [0, 0], sizes = [128, 128], strides = [1, 1]} : vector<128x256xf32> to vector<128x128xf32>
    %c2 = arith.constant 2 : index
    %c0_28 = arith.constant 0 : index
    %38 = vector.load %arg9[%c2, %c0_28] : memref<13x128xf32, #tpu.memory_space<vmem>>, vector<1x128xf32>
    %39 = vector.broadcast %38 : vector<1x128xf32> to vector<128x128xf32>
    %40 = arith.addf %37, %39 : vector<128x128xf32>
    %41 = vector.extract_strided_slice %36 {offsets = [0, 128], sizes = [128, 128], strides = [1, 1]} : vector<128x256xf32> to vector<128x128xf32>
    %c3 = arith.constant 3 : index
    %c0_29 = arith.constant 0 : index
    %42 = vector.load %arg9[%c3, %c0_29] : memref<13x128xf32, #tpu.memory_space<vmem>>, vector<1x128xf32>
    %43 = vector.broadcast %42 : vector<1x128xf32> to vector<128x128xf32>
    %44 = arith.addf %41, %43 : vector<128x128xf32>
    %cst_30 = arith.constant 0.000000e+00 : f32
    %45 = vector.broadcast %cst_30 : f32 to vector<128x128xf32>
    %46 = arith.subf %45, %40 : vector<128x128xf32>
    %47 = math.exp %46 : vector<128x128xf32>
    %cst_31 = arith.constant 1.000000e+00 : f32
    %48 = vector.broadcast %cst_31 : f32 to vector<128x128xf32>
    %49 = arith.addf %48, %47 : vector<128x128xf32>
    %cst_32 = arith.constant 1.000000e+00 : f32
    %50 = vector.broadcast %cst_32 : f32 to vector<128x128xf32>
    %51 = arith.divf %50, %49 : vector<128x128xf32>
    %cst_33 = arith.constant 0.000000e+00 : f32
    %52 = vector.broadcast %cst_33 : f32 to vector<128x128xf32>
    %53 = arith.maximumf %44, %52 : vector<128x128xf32>
    %54 = math.absf %44 : vector<128x128xf32>
    %cst_34 = arith.constant 0.000000e+00 : f32
    %55 = vector.broadcast %cst_34 : f32 to vector<128x128xf32>
    %56 = arith.subf %55, %54 : vector<128x128xf32>
    %57 = math.exp %56 : vector<128x128xf32>
    %cst_35 = arith.constant 1.000000e+00 : f32
    %58 = vector.broadcast %cst_35 : f32 to vector<128x128xf32>
    %59 = arith.addf %58, %57 : vector<128x128xf32>
    %60 = math.log %59 : vector<128x128xf32>
    %61 = arith.addf %53, %60 : vector<128x128xf32>
    %62 = arith.mulf %51, %61 : vector<128x128xf32>
    %c0_36 = arith.constant 0 : index
    %c0_37 = arith.constant 0 : index
    %63 = vector.load %arg3[%c0_36, %c0_37] : memref<64x128xf32, #tpu.memory_space<vmem>>, vector<64x128xf32>
    %cst_38 = arith.constant dense<0.000000e+00> : vector<64x128xf32>
    %64 = tpu.matmul %63, %62, %cst_38 {dimension_numbers = #tpu.dot_dimension_numbers<[1], [0], [0], [1], [0, 0, 1, 1], [], []>} : vector<64x128xf32>, vector<128x128xf32>, vector<64x128xf32> -> vector<64x128xf32>
    %cst_39 = arith.constant dense<0.000000e+00> : vector<128xf32>
    %65 = vector.multi_reduction <add>, %64, %cst_39 [0] : vector<64x128xf32> to vector<128xf32>
    %66 = vector.shape_cast %65 : vector<128xf32> to vector<1x128xf32>
    %cst_40 = arith.constant 1.562500e-02 : f32
    %67 = vector.broadcast %cst_40 : f32 to vector<1x128xf32>
    %68 = arith.mulf %66, %67 : vector<1x128xf32>
    %69 = arith.mulf %64, %64 : vector<64x128xf32>
    %cst_41 = arith.constant dense<0.000000e+00> : vector<128xf32>
    %70 = vector.multi_reduction <add>, %69, %cst_41 [0] : vector<64x128xf32> to vector<128xf32>
    %71 = vector.shape_cast %70 : vector<128xf32> to vector<1x128xf32>
    %cst_42 = arith.constant 1.562500e-02 : f32
    %72 = vector.broadcast %cst_42 : f32 to vector<1x128xf32>
    %73 = arith.mulf %71, %72 : vector<1x128xf32>
    %74 = arith.mulf %68, %68 : vector<1x128xf32>
    %75 = arith.subf %73, %74 : vector<1x128xf32>
    %cst_43 = arith.constant 0.000000e+00 : f32
    %76 = vector.broadcast %cst_43 : f32 to vector<1x128xf32>
    %77 = arith.maximumf %75, %76 : vector<1x128xf32>
    %c4 = arith.constant 4 : index
    %c0_44 = arith.constant 0 : index
    %78 = vector.load %arg9[%c4, %c0_44] : memref<13x128xf32, #tpu.memory_space<vmem>>, vector<1x128xf32>
    %79 = vector.broadcast %68 : vector<1x128xf32> to vector<64x128xf32>
    %80 = arith.subf %64, %79 : vector<64x128xf32>
    %81 = vector.broadcast %78 : vector<1x128xf32> to vector<64x128xf32>
    %82 = arith.mulf %81, %80 : vector<64x128xf32>
    %cst_45 = arith.constant 9.99999974E-6 : f32
    %83 = vector.broadcast %cst_45 : f32 to vector<1x128xf32>
    %84 = arith.addf %77, %83 : vector<1x128xf32>
    %85 = math.rsqrt %84 : vector<1x128xf32>
    %86 = vector.broadcast %85 : vector<1x128xf32> to vector<64x128xf32>
    %87 = arith.mulf %82, %86 : vector<64x128xf32>
    %c5 = arith.constant 5 : index
    %c0_46 = arith.constant 0 : index
    %88 = vector.load %arg9[%c5, %c0_46] : memref<13x128xf32, #tpu.memory_space<vmem>>, vector<1x128xf32>
    %89 = vector.broadcast %88 : vector<1x128xf32> to vector<64x128xf32>
    %90 = arith.addf %87, %89 : vector<64x128xf32>
    %91 = arith.addf %90, %10 : vector<64x128xf32>
    %c0_47 = arith.constant 0 : index
    %c0_48 = arith.constant 0 : index
    %92 = vector.load %arg2[%c0_47, %c0_48] : memref<256x64xf32, #tpu.memory_space<vmem>>, vector<256x64xf32>
    %cst_49 = arith.constant dense<0.000000e+00> : vector<256x128xf32>
    %93 = tpu.matmul %92, %91, %cst_49 {dimension_numbers = #tpu.dot_dimension_numbers<[1], [0], [0], [1], [0, 0, 1, 1], [], []>} : vector<256x64xf32>, vector<64x128xf32>, vector<256x128xf32> -> vector<256x128xf32>
    %94 = vector.extract_strided_slice %93 {offsets = [0, 0], sizes = [128, 128], strides = [1, 1]} : vector<256x128xf32> to vector<128x128xf32>
    %95 = vector.extract_strided_slice %93 {offsets = [128, 0], sizes = [128, 128], strides = [1, 1]} : vector<256x128xf32> to vector<128x128xf32>
    %c1_50 = arith.constant 1 : index
    %c0_51 = arith.constant 0 : index
    %c0_52 = arith.constant 0 : index
    %96 = vector.load %arg7[%c1_50, %c0_51, %c0_52] : memref<2x384x256xf32, #tpu.memory_space<vmem>>, vector<1x128x256xf32>
    %97 = vector.shape_cast %96 : vector<1x128x256xf32> to vector<128x256xf32>
    %cst_53 = arith.constant dense<0.000000e+00> : vector<128x256xf32>
    %98 = tpu.matmul %94, %97, %cst_53 {dimension_numbers = #tpu.dot_dimension_numbers<[1], [0], [0], [1], [0, 0, 1, 1], [], []>} : vector<128x128xf32>, vector<128x256xf32>, vector<128x256xf32> -> vector<128x256xf32>
    %c1_54 = arith.constant 1 : index
    %c128_55 = arith.constant 128 : index
    %c0_56 = arith.constant 0 : index
    %99 = vector.load %arg7[%c1_54, %c128_55, %c0_56] : memref<2x384x256xf32, #tpu.memory_space<vmem>>, vector<1x128x256xf32>
    %100 = vector.shape_cast %99 : vector<1x128x256xf32> to vector<128x256xf32>
    %cst_57 = arith.constant dense<0.000000e+00> : vector<128x256xf32>
    %101 = tpu.matmul %95, %100, %cst_57 {dimension_numbers = #tpu.dot_dimension_numbers<[1], [0], [0], [1], [0, 0, 1, 1], [], []>} : vector<128x128xf32>, vector<128x256xf32>, vector<128x256xf32> -> vector<128x256xf32>
    %102 = arith.addf %98, %101 : vector<128x256xf32>
    %c1_58 = arith.constant 1 : index
    %c256_59 = arith.constant 256 : index
    %c0_60 = arith.constant 0 : index
    %103 = vector.load %arg7[%c1_58, %c256_59, %c0_60] : memref<2x384x256xf32, #tpu.memory_space<vmem>>, vector<1x128x256xf32>
    %104 = vector.shape_cast %103 : vector<1x128x256xf32> to vector<128x256xf32>
    %cst_61 = arith.constant dense<0.000000e+00> : vector<128x256xf32>
    %105 = tpu.matmul %21, %104, %cst_61 {dimension_numbers = #tpu.dot_dimension_numbers<[1], [0], [0], [1], [0, 0, 1, 1], [], []>} : vector<128x128xf32>, vector<128x256xf32>, vector<128x256xf32> -> vector<128x256xf32>
    %106 = arith.addf %102, %105 : vector<128x256xf32>
    %107 = vector.extract_strided_slice %106 {offsets = [0, 0], sizes = [128, 128], strides = [1, 1]} : vector<128x256xf32> to vector<128x128xf32>
    %c6 = arith.constant 6 : index
    %c0_62 = arith.constant 0 : index
    %108 = vector.load %arg9[%c6, %c0_62] : memref<13x128xf32, #tpu.memory_space<vmem>>, vector<1x128xf32>
    %109 = vector.broadcast %108 : vector<1x128xf32> to vector<128x128xf32>
    %110 = arith.addf %107, %109 : vector<128x128xf32>
    %111 = vector.extract_strided_slice %106 {offsets = [0, 128], sizes = [128, 128], strides = [1, 1]} : vector<128x256xf32> to vector<128x128xf32>
    %c7 = arith.constant 7 : index
    %c0_63 = arith.constant 0 : index
    %112 = vector.load %arg9[%c7, %c0_63] : memref<13x128xf32, #tpu.memory_space<vmem>>, vector<1x128xf32>
    %113 = vector.broadcast %112 : vector<1x128xf32> to vector<128x128xf32>
    %114 = arith.addf %111, %113 : vector<128x128xf32>
    %cst_64 = arith.constant 0.000000e+00 : f32
    %115 = vector.broadcast %cst_64 : f32 to vector<128x128xf32>
    %116 = arith.subf %115, %110 : vector<128x128xf32>
    %117 = math.exp %116 : vector<128x128xf32>
    %cst_65 = arith.constant 1.000000e+00 : f32
    %118 = vector.broadcast %cst_65 : f32 to vector<128x128xf32>
    %119 = arith.addf %118, %117 : vector<128x128xf32>
    %cst_66 = arith.constant 1.000000e+00 : f32
    %120 = vector.broadcast %cst_66 : f32 to vector<128x128xf32>
    %121 = arith.divf %120, %119 : vector<128x128xf32>
    %cst_67 = arith.constant 0.000000e+00 : f32
    %122 = vector.broadcast %cst_67 : f32 to vector<128x128xf32>
    %123 = arith.maximumf %114, %122 : vector<128x128xf32>
    %124 = math.absf %114 : vector<128x128xf32>
    %cst_68 = arith.constant 0.000000e+00 : f32
    %125 = vector.broadcast %cst_68 : f32 to vector<128x128xf32>
    %126 = arith.subf %125, %124 : vector<128x128xf32>
    %127 = math.exp %126 : vector<128x128xf32>
    %cst_69 = arith.constant 1.000000e+00 : f32
    %128 = vector.broadcast %cst_69 : f32 to vector<128x128xf32>
    %129 = arith.addf %128, %127 : vector<128x128xf32>
    %130 = math.log %129 : vector<128x128xf32>
    %131 = arith.addf %123, %130 : vector<128x128xf32>
    %132 = arith.mulf %121, %131 : vector<128x128xf32>
    %c0_70 = arith.constant 0 : index
    %c0_71 = arith.constant 0 : index
    %133 = vector.load %arg3[%c0_70, %c0_71] : memref<64x128xf32, #tpu.memory_space<vmem>>, vector<64x128xf32>
    %cst_72 = arith.constant dense<0.000000e+00> : vector<64x128xf32>
    %134 = tpu.matmul %133, %132, %cst_72 {dimension_numbers = #tpu.dot_dimension_numbers<[1], [0], [0], [1], [0, 0, 1, 1], [], []>} : vector<64x128xf32>, vector<128x128xf32>, vector<64x128xf32> -> vector<64x128xf32>
    %cst_73 = arith.constant dense<0.000000e+00> : vector<128xf32>
    %135 = vector.multi_reduction <add>, %134, %cst_73 [0] : vector<64x128xf32> to vector<128xf32>
    %136 = vector.shape_cast %135 : vector<128xf32> to vector<1x128xf32>
    %cst_74 = arith.constant 1.562500e-02 : f32
    %137 = vector.broadcast %cst_74 : f32 to vector<1x128xf32>
    %138 = arith.mulf %136, %137 : vector<1x128xf32>
    %139 = arith.mulf %134, %134 : vector<64x128xf32>
    %cst_75 = arith.constant dense<0.000000e+00> : vector<128xf32>
    %140 = vector.multi_reduction <add>, %139, %cst_75 [0] : vector<64x128xf32> to vector<128xf32>
    %141 = vector.shape_cast %140 : vector<128xf32> to vector<1x128xf32>
    %cst_76 = arith.constant 1.562500e-02 : f32
    %142 = vector.broadcast %cst_76 : f32 to vector<1x128xf32>
    %143 = arith.mulf %141, %142 : vector<1x128xf32>
    %144 = arith.mulf %138, %138 : vector<1x128xf32>
    %145 = arith.subf %143, %144 : vector<1x128xf32>
    %cst_77 = arith.constant 0.000000e+00 : f32
    %146 = vector.broadcast %cst_77 : f32 to vector<1x128xf32>
    %147 = arith.maximumf %145, %146 : vector<1x128xf32>
    %c8 = arith.constant 8 : index
    %c0_78 = arith.constant 0 : index
    %148 = vector.load %arg9[%c8, %c0_78] : memref<13x128xf32, #tpu.memory_space<vmem>>, vector<1x128xf32>
    %149 = vector.broadcast %138 : vector<1x128xf32> to vector<64x128xf32>
    %150 = arith.subf %134, %149 : vector<64x128xf32>
    %151 = vector.broadcast %148 : vector<1x128xf32> to vector<64x128xf32>
    %152 = arith.mulf %151, %150 : vector<64x128xf32>
    %cst_79 = arith.constant 9.99999974E-6 : f32
    %153 = vector.broadcast %cst_79 : f32 to vector<1x128xf32>
    %154 = arith.addf %147, %153 : vector<1x128xf32>
    %155 = math.rsqrt %154 : vector<1x128xf32>
    %156 = vector.broadcast %155 : vector<1x128xf32> to vector<64x128xf32>
    %157 = arith.mulf %152, %156 : vector<64x128xf32>
    %c9 = arith.constant 9 : index
    %c0_80 = arith.constant 0 : index
    %158 = vector.load %arg9[%c9, %c0_80] : memref<13x128xf32, #tpu.memory_space<vmem>>, vector<1x128xf32>
    %159 = vector.broadcast %158 : vector<1x128xf32> to vector<64x128xf32>
    %160 = arith.addf %157, %159 : vector<64x128xf32>
    %161 = arith.addf %160, %91 : vector<64x128xf32>
    %c0_81 = arith.constant 0 : index
    %c0_82 = arith.constant 0 : index
    %c0_83 = arith.constant 0 : index
    %162 = vector.load %arg8[%c0_81, %c0_82, %c0_83] : memref<3x128x128xf32, #tpu.memory_space<vmem>>, vector<1x128x128xf32>
    %163 = vector.shape_cast %162 : vector<1x128x128xf32> to vector<128x128xf32>
    %cst_84 = arith.constant dense<0.000000e+00> : vector<64x128xf32>
    %164 = tpu.matmul %161, %163, %cst_84 {dimension_numbers = #tpu.dot_dimension_numbers<[1], [0], [0], [1], [0, 0, 1, 1], [], []>} : vector<64x128xf32>, vector<128x128xf32>, vector<64x128xf32> -> vector<64x128xf32>
    %c10 = arith.constant 10 : index
    %c0_85 = arith.constant 0 : index
    %165 = vector.load %arg9[%c10, %c0_85] : memref<13x128xf32, #tpu.memory_space<vmem>>, vector<1x128xf32>
    %166 = vector.broadcast %165 : vector<1x128xf32> to vector<64x128xf32>
    %167 = arith.addf %164, %166 : vector<64x128xf32>
    %168 = vector.extract_strided_slice %167 {offsets = [0, 127], sizes = [64, 1], strides = [1, 1]} : vector<64x128xf32> to vector<64x1xf32>
    %c0_86 = arith.constant 0 : index
    %c0_87 = arith.constant 0 : index
    %169 = vector.load %arg4[%c0_86, %c0_87] : memref<64x4xf32, #tpu.memory_space<vmem>>, vector<64x4xf32>
    %cst_88 = arith.constant 5.000000e-01 : f32
    %170 = vector.broadcast %cst_88 : f32 to vector<64x4xf32>
    %171 = arith.cmpf ogt, %169, %170 : vector<64x4xf32>
    %cst_89 = arith.constant -1.000000e+30 : f32
    %172 = vector.shape_cast %168 : vector<64x1xf32> to vector<64x1xf32>
    %173 = vector.broadcast %172 : vector<64x1xf32> to vector<64x4xf32>
    %174 = vector.broadcast %cst_89 : f32 to vector<64x4xf32>
    %175 = arith.select %171, %173, %174 : vector<64x4xi1>, vector<64x4xf32>
    %cst_90 = arith.constant dense<0xFF800000> : vector<4xf32>
    %176 = vector.multi_reduction <maximumf>, %175, %cst_90 [0] : vector<64x4xf32> to vector<4xf32>
    %177 = vector.shape_cast %176 : vector<4xf32> to vector<1x4xf32>
    %178 = vector.broadcast %177 : vector<1x4xf32> to vector<64x4xf32>
    %179 = arith.subf %175, %178 : vector<64x4xf32>
    %180 = math.exp %179 : vector<64x4xf32>
    %cst_91 = arith.constant 0.000000e+00 : f32
    %181 = vector.broadcast %cst_91 : f32 to vector<64x4xf32>
    %182 = arith.select %171, %180, %181 : vector<64x4xi1>, vector<64x4xf32>
    %cst_92 = arith.constant dense<0.000000e+00> : vector<4xf32>
    %183 = vector.multi_reduction <add>, %182, %cst_92 [0] : vector<64x4xf32> to vector<4xf32>
    %184 = vector.shape_cast %183 : vector<4xf32> to vector<1x4xf32>
    %cst_93 = arith.constant 1.000000e-30 : f32
    %185 = vector.broadcast %cst_93 : f32 to vector<1x4xf32>
    %186 = arith.maximumf %184, %185 : vector<1x4xf32>
    %187 = vector.broadcast %186 : vector<1x4xf32> to vector<64x4xf32>
    %188 = arith.divf %182, %187 : vector<64x4xf32>
    %cst_94 = arith.constant dense<0.000000e+00> : vector<4x128xf32>
    %189 = tpu.matmul %188, %167, %cst_94 {dimension_numbers = #tpu.dot_dimension_numbers<[0], [0], [1], [1], [0, 1, 1, 1], [], []>} : vector<64x4xf32>, vector<64x128xf32>, vector<4x128xf32> -> vector<4x128xf32>
    %c1_95 = arith.constant 1 : index
    %c0_96 = arith.constant 0 : index
    %c0_97 = arith.constant 0 : index
    %190 = vector.load %arg8[%c1_95, %c0_96, %c0_97] : memref<3x128x128xf32, #tpu.memory_space<vmem>>, vector<1x128x128xf32>
    %191 = vector.shape_cast %190 : vector<1x128x128xf32> to vector<128x128xf32>
    %cst_98 = arith.constant dense<0.000000e+00> : vector<4x128xf32>
    %192 = tpu.matmul %189, %191, %cst_98 {dimension_numbers = #tpu.dot_dimension_numbers<[1], [0], [0], [1], [0, 0, 1, 1], [], []>} : vector<4x128xf32>, vector<128x128xf32>, vector<4x128xf32> -> vector<4x128xf32>
    %c11 = arith.constant 11 : index
    %c0_99 = arith.constant 0 : index
    %193 = vector.load %arg9[%c11, %c0_99] : memref<13x128xf32, #tpu.memory_space<vmem>>, vector<1x128xf32>
    %194 = vector.broadcast %193 : vector<1x128xf32> to vector<4x128xf32>
    %195 = arith.addf %192, %194 : vector<4x128xf32>
    %cst_100 = arith.constant 0.000000e+00 : f32
    %196 = vector.broadcast %cst_100 : f32 to vector<4x128xf32>
    %197 = arith.cmpf oge, %195, %196 : vector<4x128xf32>
    %cst_101 = arith.constant 0.00999999977 : f32
    %198 = vector.broadcast %cst_101 : f32 to vector<4x128xf32>
    %199 = arith.mulf %198, %195 : vector<4x128xf32>
    %200 = arith.select %197, %195, %199 : vector<4x128xi1>, vector<4x128xf32>
    %c2_102 = arith.constant 2 : index
    %c0_103 = arith.constant 0 : index
    %c0_104 = arith.constant 0 : index
    %201 = vector.load %arg8[%c2_102, %c0_103, %c0_104] : memref<3x128x128xf32, #tpu.memory_space<vmem>>, vector<1x128x128xf32>
    %202 = vector.shape_cast %201 : vector<1x128x128xf32> to vector<128x128xf32>
    %cst_105 = arith.constant dense<0.000000e+00> : vector<4x128xf32>
    %203 = tpu.matmul %200, %202, %cst_105 {dimension_numbers = #tpu.dot_dimension_numbers<[1], [0], [0], [1], [0, 0, 1, 1], [], []>} : vector<4x128xf32>, vector<128x128xf32>, vector<4x128xf32> -> vector<4x128xf32>
    %c12 = arith.constant 12 : index
    %c0_106 = arith.constant 0 : index
    %204 = vector.load %arg9[%c12, %c0_106] : memref<13x128xf32, #tpu.memory_space<vmem>>, vector<1x128xf32>
    %205 = vector.broadcast %204 : vector<1x128xf32> to vector<4x128xf32>
    %206 = arith.addf %203, %205 : vector<4x128xf32>
    %c0_107 = arith.constant 0 : index
    %c0_108 = arith.constant 0 : index
    %207 = vector.load %arg10[%c0_107, %c0_108] : memref<4x128xf32, #tpu.memory_space<vmem>>, vector<4x128xf32>
    tpu.vector_store %arg10[%c0_107, %c0_108], %206 {strides = array<i32>} : memref<4x128xf32, #tpu.memory_space<vmem>>, vector<4x128xf32>,
    return
  }
}

</mosaic_0001>

<llo_original>
// kernel: polymer_net_forward.1
$region0: #{polymer_net_forward.1}
  #allocation0 [shape = 'u32[]', space=smem, size = 0x4, offset = 0x4, fixed_abs, tag = 'smem constant byte address 0x4 - core index']
  #allocation1 [shape = 'u32[144,128]{1,0:T(1,128)}', space=vmem, size = 0x12000, scoped, tag = 'internal scratch']
  %s0 = inlined_call_operand.vmem [shape: f32[64,16], index: 0, kind: input, shape index: {}]
  %s1 = inlined_call_operand.vmem [shape: f32[128,8], index: 1, kind: input, shape index: {}]
  %s2 = inlined_call_operand.vmem [shape: f32[256,64], index: 2, kind: input, shape index: {}]
  %s3 = inlined_call_operand.vmem [shape: f32[64,128], index: 3, kind: input, shape index: {}]
  %s4 = inlined_call_operand.vmem [shape: f32[64,4], index: 4, kind: input, shape index: {}]
  %s5 = inlined_call_operand.vmem [shape: f32[16,128], index: 5, kind: input, shape index: {}]
  %s6 = inlined_call_operand.vmem [shape: f32[8,128], index: 6, kind: input, shape index: {}]
  %s7 = inlined_call_operand.hbm [shape: f32[2,384,256], index: 7, kind: input, shape index: {}]
  %s8 = inlined_call_operand.vmem [shape: f32[3,128,128], index: 8, kind: input, shape index: {}]
  %s9 = inlined_call_operand.vmem [shape: f32[13,128], index: 9, kind: input, shape index: {}]
  %s10 = inlined_call_operand.vmem [shape: f32[4,128], index: 10, kind: output, shape index: {}]
  %s11 = sld [smem:[#allocation0]]
  $region54: #{polymer_net_forward.1} parent=0
    _
  %s13 = ssub.s32 1, %s11
  %s14 = scalar_select 0, %s13, %s11
  $region1: #{polymer_net_forward.1} parent=0
    #allocation2 [shape = 'u8[786432]{0}', space=vmem, size = 0xc0000, scoped, tag = 'input window, operand 7, single buffered']
    #allocation3 [shape = 's32[1]{0}', space=sflag, size = 0x4, scoped, tag = 'scoped memory for polymer_net_forward.1']
    %15 = vsyncpa [#allocation3], 0
    // Predicated region
    $region2: #{polymer_net_forward.1} parent=1 // pred_check
      _
    $region3: #{polymer_net_forward.1} parent=1 // pred_check_branch
      %17 = sbr.rel (0) target = $region5
    $region4: #{polymer_net_forward.1} parent=1 // pred_region
      _
    $region5: #{polymer_net_forward.1} parent=1 // pred_fallthru
      _
    // Predicated region
    $region6: #{polymer_net_forward.1} parent=1 // pred_check
      _
    $region7: #{polymer_net_forward.1} parent=1 // pred_check_branch
      %19 = sbr.rel (0) target = $region9
    $region8: #{polymer_net_forward.1} parent=1 // pred_region
      _
    $region9: #{polymer_net_forward.1} parent=1 // pred_fallthru
      _
    // Predicated region
    $region10: #{polymer_net_forward.1} parent=1 // pred_check
      _
    $region11: #{polymer_net_forward.1} parent=1 // pred_check_branch
      %21 = sbr.rel (0) target = $region13
    $region12: #{polymer_net_forward.1} parent=1 // pred_region
      _
    $region13: #{polymer_net_forward.1} parent=1 // pred_fallthru
      _
    // Predicated region
    $region14: #{polymer_net_forward.1} parent=1 // pred_check
      _
    $region15: #{polymer_net_forward.1} parent=1 // pred_check_branch
      %23 = sbr.rel (0) target = $region17
    $region16: #{polymer_net_forward.1} parent=1 // pred_region
      _
    $region17: #{polymer_net_forward.1} parent=1 // pred_fallthru
      _
    // Predicated region
    $region18: #{polymer_net_forward.1} parent=1 // pred_check
      _
    $region19: #{polymer_net_forward.1} parent=1 // pred_check_branch
      %25 = sbr.rel (0) target = $region21
    $region20: #{polymer_net_forward.1} parent=1 // pred_region
      _
    $region21: #{polymer_net_forward.1} parent=1 // pred_fallthru
      _
    // Predicated region
    $region22: #{polymer_net_forward.1} parent=1 // pred_check
      _
    $region23: #{polymer_net_forward.1} parent=1 // pred_check_branch
      %27 = sbr.rel (0) target = $region25
    $region24: #{polymer_net_forward.1} parent=1 // pred_region
      _
    $region25: #{polymer_net_forward.1} parent=1 // pred_fallthru
      _
    // Predicated region
    $region26: #{polymer_net_forward.1} parent=1 // pred_check
      _
    $region27: #{polymer_net_forward.1} parent=1 // pred_check_branch
      %29 = sbr.rel (0) target = $region29
    $region28: #{polymer_net_forward.1} parent=1 // pred_region
      _
    $region29: #{polymer_net_forward.1} parent=1 // pred_fallthru
      _
    // Predicated region
    $region30: #{polymer_net_forward.1} parent=1 // pred_check
      _
    $region31: #{polymer_net_forward.1} parent=1 // pred_check_branch
      %31 = sbr.rel (0) target = $region33
    $region32: #{polymer_net_forward.1} parent=1 // pred_region
      %s33 = ssub.s32 24576, 24576
      %34 = vsyncadd [#allocation3], %s33
      %s35 = sshll.u32 [#allocation2], 4
      %s36 = int_to_ptr.vmem [resolvable:$true] %s35
      %41 = dma.hbm_to_vmem [thread:$0]  %s7, 24576, %s36, [#allocation3], 256, 256, 16
    $region33: #{polymer_net_forward.1} parent=1 // pred_fallthru
      _
    // Predicated region
    $region34: #{polymer_net_forward.1} parent=1 // pred_check
      _
    $region35: #{polymer_net_forward.1} parent=1 // pred_check_branch
      %43 = sbr.rel (0) target = $region37
    $region36: #{polymer_net_forward.1} parent=1 // pred_region
      _
    $region37: #{polymer_net_forward.1} parent=1 // pred_fallthru
      _
    // Predicated region
    $region38: #{polymer_net_forward.1} parent=1 // pred_check
      _
    $region39: #{polymer_net_forward.1} parent=1 // pred_check_branch
      %45 = sbr.rel (0) target = $region41
    $region40: #{polymer_net_forward.1} parent=1 // pred_region
      _
    $region41: #{polymer_net_forward.1} parent=1 // pred_fallthru
      _
    // Predicated region
    $region42: #{polymer_net_forward.1} parent=1 // pred_check
      _
    $region43: #{polymer_net_forward.1} parent=1 // pred_check_branch
      %47 = sbr.rel (0) target = $region45
    $region44: #{polymer_net_forward.1} parent=1 // pred_region
      %48 = dma.done [#allocation3], 24576
    $region45: #{polymer_net_forward.1} parent=1 // pred_fallthru
      _
    %v49 = vld [vmem:[%s0] sm:$0xff]
    %v50 = vld [vmem:[%s0 + $0x8] sm:$0xff]
    %v51 = vld [vmem:[%s0 + $0x10] sm:$0xff]
    %v52 = vld [vmem:[%s0 + $0x18] sm:$0xff]
    %v53 = vld [vmem:[%s0 + $0x20] sm:$0xff]
    %v54 = vld [vmem:[%s0 + $0x28] sm:$0xff]
    %v55 = vld [vmem:[%s0 + $0x30] sm:$0xff]
    %v56 = vld [vmem:[%s0 + $0x38] sm:$0xff]
    %v57 = vld [vmem:[%s5] sm:$0xff]
    %v58 = vld [vmem:[%s5 + $0x8] sm:$0xff]
    %v59 = vld [vmem:[%s9] sm:$0x1]
    %v60 = vlaneseq
    %v61 = vshrl.u32 %v60, 7
    %v62 = vsub.s32 0, %v61
    %v63 = vrot.slane %v59, %v62
    %vm64 = vcmask 130048
    %v66 = vsel %vm64, %v49, 0
    %v69 = vsel %vm64, %v50, 0
    %v72 = vsel %vm64, %v51, 0
    %v75 = vsel %vm64, %v52, 0
    %v78 = vsel %vm64, %v53, 0
    %v81 = vsel %vm64, %v54, 0
    %v84 = vsel %vm64, %v55, 0
    %v87 = vsel %vm64, %v56, 0
    %89 = vmatprep.subr.mxu0 0.0
    %90 = vmatpush1.msra.mxu0 %v57
    %91 = vmatprep.subr.mxu0 0.0
    %92 = vmatpush1.msra.mxu0 %v58
    %93 = vmatprep.subr.mxu0 0.0
    %94 = vmatpush1.msra.mxu0 0.0
    %95 = vmatprep.subr.mxu0 0.0
    %96 = vmatpush1.msra.mxu0 0.0
    %97 = vmatprep.subr.mxu0 0.0
    %98 = vmatpush1.msra.mxu0 0.0
    %99 = vmatprep.subr.mxu0 0.0
    %100 = vmatpush1.msra.mxu0 0.0
    %101 = vmatprep.subr.mxu0 0.0
    %102 = vmatpush1.msra.mxu0 0.0
    %103 = vmatprep.subr.mxu0 0.0
    %104 = vmatpush1.msra.mxu0 0.0
    %105 = vmatprep.subr.mxu0 0.0
    %106 = vmatpush1.msra.mxu0 0.0
    %107 = vmatprep.subr.mxu0 0.0
    %108 = vmatpush1.msra.mxu0 0.0
    %109 = vmatprep.subr.mxu0 0.0
    %110 = vmatpush1.msra.mxu0 0.0
    %111 = vmatprep.subr.mxu0 0.0
    %112 = vmatpush1.msra.mxu0 0.0
    %113 = vmatprep.subr.mxu0 0.0
    %114 = vmatpush1.msra.mxu0 0.0
    %115 = vmatprep.subr.mxu0 0.0
    %116 = vmatpush1.msra.mxu0 0.0
    %117 = vmatprep.subr.mxu0 0.0
    %118 = vmatpush1.msra.mxu0 0.0
    %119 = vmatprep.subr.mxu0 0.0
    %120 = vmatpush1.msra.mxu0 0.0
    %121 = vmatprep.subr.mxu0 0.0
    %122 = vmatpush1.msra.mxu0 0.0
    %123 = vmatprep.subr.mxu0 0.0
    %124 = vmatpush1.msra.mxu0 0.0
    %125 = vmatprep.subr.mxu0 0.0
    %126 = vmatpush1.msra.mxu0 0.0
    %127 = vmatprep.subr.mxu0 0.0
    %128 = vmatpush1.msra.mxu0 0.0
    %129 = vmatprep.subr.mxu0 0.0
    %130 = vmatpush1.msra.mxu0 0.0
    %131 = vmatprep.subr.mxu0 0.0
    %132 = vmatpush1.msra.mxu0 0.0
    %133 = vmatprep.subr.mxu0 0.0
    %134 = vmatpush1.msra.mxu0 0.0
    %135 = vmatprep.subr.mxu0 0.0
    %136 = vmatpush1.msra.mxu0 0.0
    %137 = vmatprep.subr.mxu0 0.0
    %138 = vmatpush1.msra.mxu0 0.0
    %139 = vmatprep.subr.mxu0 0.0
    %140 = vmatpush1.msra.mxu0 0.0
    %141 = vmatprep.subr.mxu0 0.0
    %142 = vmatpush1.msra.mxu0 0.0
    %143 = vmatprep.subr.mxu0 0.0
    %144 = vmatpush1.msra.mxu0 0.0
    %145 = vmatprep.subr.mxu0 0.0
    %146 = vmatpush1.msra.mxu0 0.0
    %147 = vmatprep.subr.mxu0 0.0
    %148 = vmatpush1.msra.mxu0 0.0
    %149 = vmatprep.subr.mxu0 0.0
    %150 = vmatpush1.msra.mxu0 0.0
    %151 = vmatprep.subr.mxu0 0.0
    %152 = vmatpush1.msra.mxu0 0.0
    %153 = vmatprep.mubr.f32.mxu0 0.0
    %154 = vmatmul.mubr.f32.gmra.mrb[0].mxu0 %v66
    %v155 = vpop.f32.mrb[0].mxu0
    %v156 = vadd.f32 %v63, %v155
    %v157 = vpop.f32.mrb[0].mxu0
    %158 = vmatprep.mubr.f32.mxu0 0.0
    %159 = vmatmul.mubr.f32.gmra.mrb[0].mxu0 %v69
    %v160 = vpop.f32.mrb[0].mxu0
    %v161 = vadd.f32 %v63, %v160
    %v162 = vpop.f32.mrb[0].mxu0
    %163 = vmatprep.mubr.f32.mxu0 0.0
    %164 = vmatmul.mubr.f32.gmra.mrb[0].mxu0 %v72
    %v165 = vpop.f32.mrb[0].mxu0
    %v166 = vadd.f32 %v63, %v165
    %v167 = vpop.f32.mrb[0].mxu0
    %168 = vmatprep.mubr.f32.mxu0 0.0
    %169 = vmatmul.mubr.f32.gmra.mrb[0].mxu0 %v75
    %v170 = vpop.f32.mrb[0].mxu0
    %v171 = vadd.f32 %v63, %v170
    %v172 = vpop.f32.mrb[0].mxu0
    %173 = vmatprep.mubr.f32.mxu0 0.0
    %174 = vmatmul.mubr.f32.gmra.mrb[0].mxu0 %v78
    %v175 = vpop.f32.mrb[0].mxu0
    %v176 = vadd.f32 %v63, %v175
    %v177 = vpop.f32.mrb[0].mxu0
    %178 = vmatprep.mubr.f32.mxu0 0.0
    %179 = vmatmul.mubr.f32.gmra.mrb[0].mxu0 %v81
    %v180 = vpop.f32.mrb[0].mxu0
    %v181 = vadd.f32 %v63, %v180
    %v182 = vpop.f32.mrb[0].mxu0
    %183 = vmatprep.mubr.f32.mxu0 0.0
    %184 = vmatmul.mubr.f32.gmra.mrb[0].mxu0 %v84
    %v185 = vpop.f32.mrb[0].mxu0
    %v186 = vadd.f32 %v63, %v185
    %v187 = vpop.f32.mrb[0].mxu0
    %188 = vmatprep.mubr.f32.mxu0 0.0
    %189 = vmatmul.mubr.f32.gmra.mrb[0].mxu0 %v87
    %v190 = vpop.f32.mrb[0].mxu0
    %v191 = vadd.f32 %v63, %v190
    %v192 = vpop.f32.mrb[0].mxu0
    %193 = vdwg.mxu0
    %vm194 = vcmp.ge.f32.partialorder %v156, 0.0
    %vm195 = vcmp.ge.f32.partialorder %v161, 0.0
    %vm196 = vcmp.ge.f32.partialorder %v166, 0.0
    %vm197 = vcmp.ge.f32.partialorder %v171, 0.0
    %vm198 = vcmp.ge.f32.partialorder %v176, 0.0
    %vm199 = vcmp.ge.f32.partialorder %v181, 0.0
    %vm200 = vcmp.ge.f32.partialorder %v186, 0.0
    %vm201 = vcmp.ge.f32.partialorder %v191, 0.0
    %v202 = vmul.f32 %v156, 0.01
    %v203 = vmul.f32 %v161, 0.01
    %v204 = vmul.f32 %v166, 0.01
    %v205 = vmul.f32 %v171, 0.01
    %v206 = vmul.f32 %v176, 0.01
    %v207 = vmul.f32 %v181, 0.01
    %v208 = vmul.f32 %v186, 0.01
    %v209 = vmul.f32 %v191, 0.01
    %v210 = vsel %vm194, %v156, %v202
    %v211 = vsel %vm195, %v161, %v203
    %v212 = vsel %vm196, %v166, %v204
    %v213 = vsel %vm197, %v171, %v205
    %v214 = vsel %vm198, %v176, %v206
    %v215 = vsel %vm199, %v181, %v207
    %v216 = vsel %vm200, %v186, %v208
    %v217 = vsel %vm201, %v191, %v209
    %v218 = vld [vmem:[%s1] sm:$0xff]
    %v219 = vld [vmem:[%s1 + $0x8] sm:$0xff]
    %v220 = vld [vmem:[%s1 + $0x10] sm:$0xff]
    %v221 = vld [vmem:[%s1 + $0x18] sm:$0xff]
    %v222 = vld [vmem:[%s1 + $0x20] sm:$0xff]
    %v223 = vld [vmem:[%s1 + $0x28] sm:$0xff]
    %v224 = vld [vmem:[%s1 + $0x30] sm:$0xff]
    %v225 = vld [vmem:[%s1 + $0x38] sm:$0xff]
    %v226 = vld [vmem:[%s1 + $0x40] sm:$0xff]
    %v227 = vld [vmem:[%s1 + $0x48] sm:$0xff]
    %v228 = vld [vmem:[%s1 + $0x50] sm:$0xff]
    %v229 = vld [vmem:[%s1 + $0x58] sm:$0xff]
    %v230 = vld [vmem:[%s1 + $0x60] sm:$0xff]
    %v231 = vld [vmem:[%s1 + $0x68] sm:$0xff]
    %v232 = vld [vmem:[%s1 + $0x70] sm:$0xff]
    %v233 = vld [vmem:[%s1 + $0x78] sm:$0xff]
    %v234 = vld [vmem:[%s6] sm:$0xff]
    %v235 = vld [vmem:[%s9 + $0x1] sm:$0x1]
    %v236 = vlaneseq
    %v237 = vshrl.u32 %v236, 7
    %v238 = vsub.s32 0, %v237
    %v239 = vrot.slane %v235, %v238
    %vm240 = vcmask 64512
    %v242 = vsel %vm240, %v218, 0
    %v245 = vsel %vm240, %v219, 0
    %v248 = vsel %vm240, %v220, 0
    %v251 = vsel %vm240, %v221, 0
    %v254 = vsel %vm240, %v222, 0
    %v257 = vsel %vm240, %v223, 0
    %v260 = vsel %vm240, %v224, 0
    %v263 = vsel %vm240, %v225, 0
    %v266 = vsel %vm240, %v226, 0
    %v269 = vsel %vm240, %v227, 0
    %v272 = vsel %vm240, %v228, 0
    %v275 = vsel %vm240, %v229, 0
    %v278 = vsel %vm240, %v230, 0
    %v281 = vsel %vm240, %v231, 0
    %v284 = vsel %vm240, %v232, 0
    %v287 = vsel %vm240, %v233, 0
    %289 = vmatprep.subr.mxu0 0.0
    %290 = vmatpush1.msra.mxu0 %v234
    %291 = vmatprep.subr.mxu0 0.0
    %292 = vmatpush1.msra.mxu0 0.0
    %293 = vmatprep.subr.mxu0 0.0
    %294 = vmatpush1.msra.mxu0 0.0
    %295 = vmatprep.subr.mxu0 0.0
    %296 = vmatpush1.msra.mxu0 0.0
    %297 = vmatprep.subr.mxu0 0.0
    %298 = vmatpush1.msra.mxu0 0.0
    %299 = vmatprep.subr.mxu0 0.0
    %300 = vmatpush1.msra.mxu0 0.0
    %301 = vmatprep.subr.mxu0 0.0
    %302 = vmatpush1.msra.mxu0 0.0
    %303 = vmatprep.subr.mxu0 0.0
    %304 = vmatpush1.msra.mxu0 0.0
    %305 = vmatprep.subr.mxu0 0.0
    %306 = vmatpush1.msra.mxu0 0.0
    %307 = vmatprep.subr.mxu0 0.0
    %308 = vmatpush1.msra.mxu0 0.0
    %309 = vmatprep.subr.mxu0 0.0
    %310 = vmatpush1.msra.mxu0 0.0
    %311 = vmatprep.subr.mxu0 0.0
    %312 = vmatpush1.msra.mxu0 0.0
    %313 = vmatprep.subr.mxu0 0.0
    %314 = vmatpush1.msra.mxu0 0.0
    %315 = vmatprep.subr.mxu0 0.0
    %316 = vmatpush1.msra.mxu0 0.0
    %317 = vmatprep.subr.mxu0 0.0
    %318 = vmatpush1.msra.mxu0 0.0
    %319 = vmatprep.subr.mxu0 0.0
    %320 = vmatpush1.msra.mxu0 0.0
    %321 = vmatprep.subr.mxu0 0.0
    %322 = vmatpush1.msra.mxu0 0.0
    %323 = vmatprep.subr.mxu0 0.0
    %324 = vmatpush1.msra.mxu0 0.0
    %325 = vmatprep.subr.mxu0 0.0
    %326 = vmatpush1.msra.mxu0 0.0
    %327 = vmatprep.subr.mxu0 0.0
    %328 = vmatpush1.msra.mxu0 0.0
    %329 = vmatprep.subr.mxu0 0.0
    %330 = vmatpush1.msra.mxu0 0.0
    %331 = vmatprep.subr.mxu0 0.0
    %332 = vmatpush1.msra.mxu0 0.0
    %333 = vmatprep.subr.mxu0 0.0
    %334 = vmatpush1.msra.mxu0 0.0
    %335 = vmatprep.subr.mxu0 0.0
    %336 = vmatpush1.msra.mxu0 0.0
    %337 = vmatprep.subr.mxu0 0.0
    %338 = vmatpush1.msra.mxu0 0.0
    %339 = vmatprep.subr.mxu0 0.0
    %340 = vmatpush1.msra.mxu0 0.0
    %341 = vmatprep.subr.mxu0 0.0
    %342 = vmatpush1.msra.mxu0 0.0
    %343 = vmatprep.subr.mxu0 0.0
    %344 = vmatpush1.msra.mxu0 0.0
    %345 = vmatprep.subr.mxu0 0.0
    %346 = vmatpush1.msra.mxu0 0.0
    %347 = vmatprep.subr.mxu0 0.0
    %348 = vmatpush1.msra.mxu0 0.0
    %349 = vmatprep.subr.mxu0 0.0
    %350 = vmatpush1.msra.mxu0 0.0
    %351 = vmatprep.subr.mxu0 0.0
    %352 = vmatpush1.msra.mxu0 0.0
    %353 = vmatprep.mubr.f32.mxu0 0.0
    %354 = vmatmul.mubr.f32.gmra.mrb[0].mxu0 %v242
    %v355 = vpop.f32.mrb[0].mxu0
    %v356 = vadd.f32 %v239, %v355
    %v357 = vpop.f32.mrb[0].mxu0
    %358 = vmatprep.mubr.f32.mxu0 0.0
    %359 = vmatmul.mubr.f32.gmra.mrb[0].mxu0 %v245
    %v360 = vpop.f32.mrb[0].mxu0
    %v361 = vadd.f32 %v239, %v360
    %v362 = vpop.f32.mrb[0].mxu0
    %363 = vmatprep.mubr.f32.mxu0 0.0
    %364 = vmatmul.mubr.f32.gmra.mrb[0].mxu0 %v248
    %v365 = vpop.f32.mrb[0].mxu0
    %v366 = vadd.f32 %v239, %v365
    %v367 = vpop.f32.mrb[0].mxu0
    %368 = vmatprep.mubr.f32.mxu0 0.0
    %369 = vmatmul.mubr.f32.gmra.mrb[0].mxu0 %v251
    %v370 = vpop.f32.mrb[0].mxu0
    %v371 = vadd.f32 %v239, %v370
    %v372 = vpop.f32.mrb[0].mxu0
    %373 = vmatprep.mubr.f32.mxu0 0.0
    %374 = vmatmul.mubr.f32.gmra.mrb[0].mxu0 %v254
    %v375 = vpop.f32.mrb[0].mxu0
    %v376 = vadd.f32 %v239, %v375
    %v377 = vpop.f32.mrb[0].mxu0
    %378 = vmatprep.mubr.f32.mxu0 0.0
    %379 = vmatmul.mubr.f32.gmra.mrb[0].mxu0 %v257
    %v380 = vpop.f32.mrb[0].mxu0
    %v381 = vadd.f32 %v239, %v380
    %v382 = vpop.f32.mrb[0].mxu0
    %383 = vmatprep.mubr.f32.mxu0 0.0
    %384 = vmatmul.mubr.f32.gmra.mrb[0].mxu0 %v260
    %v385 = vpop.f32.mrb[0].mxu0
    %v386 = vadd.f32 %v239, %v385
    %v387 = vpop.f32.mrb[0].mxu0
    %388 = vmatprep.mubr.f32.mxu0 0.0
    %389 = vmatmul.mubr.f32.gmra.mrb[0].mxu0 %v263
    %v390 = vpop.f32.mrb[0].mxu0
    %v391 = vadd.f32 %v239, %v390
    %v392 = vpop.f32.mrb[0].mxu0
    %393 = vmatprep.mubr.f32.mxu0 0.0
    %394 = vmatmul.mubr.f32.gmra.mrb[0].mxu0 %v266
    %v395 = vpop.f32.mrb[0].mxu0
    %v396 = vadd.f32 %v239, %v395
    %v397 = vpop.f32.mrb[0].mxu0
    %398 = vmatprep.mubr.f32.mxu0 0.0
    %399 = vmatmul.mubr.f32.gmra.mrb[0].mxu0 %v269
    %v400 = vpop.f32.mrb[0].mxu0
    %v401 = vadd.f32 %v239, %v400
    %v402 = vpop.f32.mrb[0].mxu0
    %403 = vmatprep.mubr.f32.mxu0 0.0
    %404 = vmatmul.mubr.f32.gmra.mrb[0].mxu0 %v272
    %v405 = vpop.f32.mrb[0].mxu0
    %v406 = vadd.f32 %v239, %v405
    %v407 = vpop.f32.mrb[0].mxu0
    %408 = vmatprep.mubr.f32.mxu0 0.0
    %409 = vmatmul.mubr.f32.gmra.mrb[0].mxu0 %v275
    %v410 = vpop.f32.mrb[0].mxu0
    %v411 = vadd.f32 %v239, %v410
    %v412 = vpop.f32.mrb[0].mxu0
    %413 = vmatprep.mubr.f32.mxu0 0.0
    %414 = vmatmul.mubr.f32.gmra.mrb[0].mxu0 %v278
    %v415 = vpop.f32.mrb[0].mxu0
    %v416 = vadd.f32 %v239, %v415
    %v417 = vpop.f32.mrb[0].mxu0
    %418 = vmatprep.mubr.f32.mxu0 0.0
    %419 = vmatmul.mubr.f32.gmra.mrb[0].mxu0 %v281
    %v420 = vpop.f32.mrb[0].mxu0
    %v421 = vadd.f32 %v239, %v420
    %v422 = vpop.f32.mrb[0].mxu0
    %423 = vmatprep.mubr.f32.mxu0 0.0
    %424 = vmatmul.mubr.f32.gmra.mrb[0].mxu0 %v284
    %v425 = vpop.f32.mrb[0].mxu0
    %v426 = vadd.f32 %v239, %v425
    %v427 = vpop.f32.mrb[0].mxu0
    %428 = vmatprep.mubr.f32.mxu0 0.0
    %429 = vmatmul.mubr.f32.gmra.mrb[0].mxu0 %v287
    %v430 = vpop.f32.mrb[0].mxu0
    %v431 = vadd.f32 %v239, %v430
    %v432 = vpop.f32.mrb[0].mxu0
    %433 = vdwg.mxu0
    %vm434 = vcmp.ge.f32.partialorder %v356, 0.0
    %vm435 = vcmp.ge.f32.partialorder %v361, 0.0
    %vm436 = vcmp.ge.f32.partialorder %v366, 0.0
    %vm437 = vcmp.ge.f32.partialorder %v371, 0.0
    %vm438 = vcmp.ge.f32.partialorder %v376, 0.0
    %vm439 = vcmp.ge.f32.partialorder %v381, 0.0
    %vm440 = vcmp.ge.f32.partialorder %v386, 0.0
    %vm441 = vcmp.ge.f32.partialorder %v391, 0.0
    %vm442 = vcmp.ge.f32.partialorder %v396, 0.0
    %vm443 = vcmp.ge.f32.partialorder %v401, 0.0
    %vm444 = vcmp.ge.f32.partialorder %v406, 0.0
    %vm445 = vcmp.ge.f32.partialorder %v411, 0.0
    %vm446 = vcmp.ge.f32.partialorder %v416, 0.0
    %vm447 = vcmp.ge.f32.partialorder %v421, 0.0
    %vm448 = vcmp.ge.f32.partialorder %v426, 0.0
    %vm449 = vcmp.ge.f32.partialorder %v431, 0.0
    %v450 = vmul.f32 %v356, 0.01
    %v451 = vmul.f32 %v361, 0.01
    %v452 = vmul.f32 %v366, 0.01
    %v453 = vmul.f32 %v371, 0.01
    %v454 = vmul.f32 %v376, 0.01
    %v455 = vmul.f32 %v381, 0.01
    %v456 = vmul.f32 %v386, 0.01
    %v457 = vmul.f32 %v391, 0.01
    %v458 = vmul.f32 %v396, 0.01
    %v459 = vmul.f32 %v401, 0.01
    %v460 = vmul.f32 %v406, 0.01
    %v461 = vmul.f32 %v411, 0.01
    %v462 = vmul.f32 %v416, 0.01
    %v463 = vmul.f32 %v421, 0.01
    %v464 = vmul.f32 %v426, 0.01
    %v465 = vmul.f32 %v431, 0.01
    %v466 = vsel %vm434, %v356, %v450
    %v467 = vsel %vm435, %v361, %v451
    %v468 = vsel %vm436, %v366, %v452
    %v469 = vsel %vm437, %v371, %v453
    %v470 = vsel %vm438, %v376, %v454
    %v471 = vsel %vm439, %v381, %v455
    %v472 = vsel %vm440, %v386, %v456
    %v473 = vsel %vm441, %v391, %v457
    %v474 = vsel %vm442, %v396, %v458
    %v475 = vsel %vm443, %v401, %v459
    %v476 = vsel %vm444, %v406, %v460
    %v477 = vsel %vm445, %v411, %v461
    %v478 = vsel %vm446, %v416, %v462
    %v479 = vsel %vm447, %v421, %v463
    %v480 = vsel %vm448, %v426, %v464
    %v481 = vsel %vm449, %v431, %v465
    %v482 = vld [vmem:[%s2] sm:$0xff]
    %v483 = vld [vmem:[%s2 + $0x8] sm:$0xff]
    %v484 = vld [vmem:[%s2 + $0x10] sm:$0xff]
    %v485 = vld [vmem:[%s2 + $0x18] sm:$0xff]
    %v486 = vld [vmem:[%s2 + $0x20] sm:$0xff]
    %v487 = vld [vmem:[%s2 + $0x28] sm:$0xff]
    %v488 = vld [vmem:[%s2 + $0x30] sm:$0xff]
    %v489 = vld [vmem:[%s2 + $0x38] sm:$0xff]
    %v490 = vld [vmem:[%s2 + $0x40] sm:$0xff]
    %v491 = vld [vmem:[%s2 + $0x48] sm:$0xff]
    %v492 = vld [vmem:[%s2 + $0x50] sm:$0xff]
    %v493 = vld [vmem:[%s2 + $0x58] sm:$0xff]
    %v494 = vld [vmem:[%s2 + $0x60] sm:$0xff]
    %v495 = vld [vmem:[%s2 + $0x68] sm:$0xff]
    %v496 = vld [vmem:[%s2 + $0x70] sm:$0xff]
    %v497 = vld [vmem:[%s2 + $0x78] sm:$0xff]
    %v498 = vld [vmem:[%s2 + $0x80] sm:$0xff]
    %v499 = vld [vmem:[%s2 + $0x88] sm:$0xff]
    %v500 = vld [vmem:[%s2 + $0x90] sm:$0xff]
    %v501 = vld [vmem:[%s2 + $0x98] sm:$0xff]
    %v502 = vld [vmem:[%s2 + $0xa0] sm:$0xff]
    %v503 = vld [vmem:[%s2 + $0xa8] sm:$0xff]
    %v504 = vld [vmem:[%s2 + $0xb0] sm:$0xff]
    %v505 = vld [vmem:[%s2 + $0xb8] sm:$0xff]
    %v506 = vld [vmem:[%s2 + $0xc0] sm:$0xff]
    %v507 = vld [vmem:[%s2 + $0xc8] sm:$0xff]
    %v508 = vld [vmem:[%s2 + $0xd0] sm:$0xff]
    %v509 = vld [vmem:[%s2 + $0xd8] sm:$0xff]
    %v510 = vld [vmem:[%s2 + $0xe0] sm:$0xff]
    %v511 = vld [vmem:[%s2 + $0xe8] sm:$0xff]
    %v512 = vld [vmem:[%s2 + $0xf0] sm:$0xff]
    %v513 = vld [vmem:[%s2 + $0xf8] sm:$0xff]
    %vm514 = vcmask 523264
    %v516 = vsel %vm514, %v482, 0
    %v519 = vsel %vm514, %v483, 0
    %v522 = vsel %vm514, %v484, 0
    %v525 = vsel %vm514, %v485, 0
    %v528 = vsel %vm514, %v486, 0
    %v531 = vsel %vm514, %v487, 0
    %v534 = vsel %vm514, %v488, 0
    %v537 = vsel %vm514, %v489, 0
    %v540 = vsel %vm514, %v490, 0
    %v543 = vsel %vm514, %v491, 0
    %v546 = vsel %vm514, %v492, 0
    %v549 = vsel %vm514, %v493, 0
    %v552 = vsel %vm514, %v494, 0
    %v555 = vsel %vm514, %v495, 0
    %v558 = vsel %vm514, %v496, 0
    %v561 = vsel %vm514, %v497, 0
    %v564 = vsel %vm514, %v498, 0
    %v567 = vsel %vm514, %v499, 0
    %v570 = vsel %vm514, %v500, 0
    %v573 = vsel %vm514, %v501, 0
    %v576 = vsel %vm514, %v502, 0
    %v579 = vsel %vm514, %v503, 0
    %v582 = vsel %vm514, %v504, 0
    %v585 = vsel %vm514, %v505, 0
    %v588 = vsel %vm514, %v506, 0
    %v591 = vsel %vm514, %v507, 0
    %v594 = vsel %vm514, %v508, 0
    %v597 = vsel %vm514, %v509, 0
    %v600 = vsel %vm514, %v510, 0
    %v603 = vsel %vm514, %v511, 0
    %v606 = vsel %vm514, %v512, 0
    %v609 = vsel %vm514, %v513, 0
    %611 = vmatprep.subr.mxu0 0.0
    %612 = vmatpush1.msra.mxu0 %v210
    %613 = vmatprep.subr.mxu0 0.0
    %614 = vmatpush1.msra.mxu0 %v211
    %615 = vmatprep.subr.mxu0 0.0
    %616 = vmatpush1.msra.mxu0 %v212
    %617 = vmatprep.subr.mxu0 0.0
    %618 = vmatpush1.msra.mxu0 %v213
    %619 = vmatprep.subr.mxu0 0.0
    %620 = vmatpush1.msra.mxu0 %v214
    %621 = vmatprep.subr.mxu0 0.0
    %622 = vmatpush1.msra.mxu0 %v215
    %623 = vmatprep.subr.mxu0 0.0
    %624 = vmatpush1.msra.mxu0 %v216
    %625 = vmatprep.subr.mxu0 0.0
    %626 = vmatpush1.msra.mxu0 %v217
    %627 = vmatprep.subr.mxu0 0.0
    %628 = vmatpush1.msra.mxu0 0.0
    %629 = vmatprep.subr.mxu0 0.0
    %630 = vmatpush1.msra.mxu0 0.0
    %631 = vmatprep.subr.mxu0 0.0
    %632 = vmatpush1.msra.mxu0 0.0
    %633 = vmatprep.subr.mxu0 0.0
    %634 = vmatpush1.msra.mxu0 0.0
    %635 = vmatprep.subr.mxu0 0.0
    %636 = vmatpush1.msra.mxu0 0.0
    %637 = vmatprep.subr.mxu0 0.0
    %638 = vmatpush1.msra.mxu0 0.0
    %639 = vmatprep.subr.mxu0 0.0
    %640 = vmatpush1.msra.mxu0 0.0
    %641 = vmatprep.subr.mxu0 0.0
    %642 = vmatpush1.msra.mxu0 0.0
    %643 = vmatprep.subr.mxu0 0.0
    %644 = vmatpush1.msra.mxu0 0.0
    %645 = vmatprep.subr.mxu0 0.0
    %646 = vmatpush1.msra.mxu0 0.0
    %647 = vmatprep.subr.mxu0 0.0
    %648 = vmatpush1.msra.mxu0 0.0
    %649 = vmatprep.subr.mxu0 0.0
    %650 = vmatpush1.msra.mxu0 0.0
    %651 = vmatprep.subr.mxu0 0.0
    %652 = vmatpush1.msra.mxu0 0.0
    %653 = vmatprep.subr.mxu0 0.0
    %654 = vmatpush1.msra.mxu0 0.0
    %655 = vmatprep.subr.mxu0 0.0
    %656 = vmatpush1.msra.mxu0 0.0
    %657 = vmatprep.subr.mxu0 0.0
    %658 = vmatpush1.msra.mxu0 0.0
    %659 = vmatprep.subr.mxu0 0.0
    %660 = vmatpush1.msra.mxu0 0.0
    %661 = vmatprep.subr.mxu0 0.0
    %662 = vmatpush1.msra.mxu0 0.0
    %663 = vmatprep.subr.mxu0 0.0
    %664 = vmatpush1.msra.mxu0 0.0
    %665 = vmatprep.subr.mxu0 0.0
    %666 = vmatpush1.msra.mxu0 0.0
    %667 = vmatprep.subr.mxu0 0.0
    %668 = vmatpush1.msra.mxu0 0.0
    %669 = vmatprep.subr.mxu0 0.0
    %670 = vmatpush1.msra.mxu0 0.0
    %671 = vmatprep.subr.mxu0 0.0
    %672 = vmatpush1.msra.mxu0 0.0
    %673 = vmatprep.subr.mxu0 0.0
    %674 = vmatpush1.msra.mxu0 0.0
    %675 = vmatprep.mubr.f32.mxu0 0.0
    %676 = vmatmul.mubr.f32.gmra.mrb[0].mxu0 %v516
    %v677 = vpop.f32.mrb[0].mxu0
    %v678 = vadd.f32 0.0, %v677
    %v679 = vpop.f32.mrb[0].mxu0
    %680 = vmatprep.mubr.f32.mxu0 0.0
    %681 = vmatmul.mubr.f32.gmra.mrb[0].mxu0 %v519
    %v682 = vpop.f32.mrb[0].mxu0
    %v683 = vadd.f32 0.0, %v682
    %v684 = vpop.f32.mrb[0].mxu0
    %685 = vmatprep.mubr.f32.mxu0 0.0
    %686 = vmatmul.mubr.f32.gmra.mrb[0].mxu0 %v522
    %v687 = vpop.f32.mrb[0].mxu0
    %v688 = vadd.f32 0.0, %v687
    %v689 = vpop.f32.mrb[0].mxu0
    %690 = vmatprep.mubr.f32.mxu0 0.0
    %691 = vmatmul.mubr.f32.gmra.mrb[0].mxu0 %v525
    %v692 = vpop.f32.mrb[0].mxu0
    %v693 = vadd.f32 0.0, %v692
    %v694 = vpop.f32.mrb[0].mxu0
    %695 = vmatprep.mubr.f32.mxu0 0.0
    %696 = vmatmul.mubr.f32.gmra.mrb[0].mxu0 %v528
    %v697 = vpop.f32.mrb[0].mxu0
    %v698 = vadd.f32 0.0, %v697
    %v699 = vpop.f32.mrb[0].mxu0
    %700 = vmatprep.mubr.f32.mxu0 0.0
    %701 = vmatmul.mubr.f32.gmra.mrb[0].mxu0 %v531
    %v702 = vpop.f32.mrb[0].mxu0
    %v703 = vadd.f32 0.0, %v702
    %v704 = vpop.f32.mrb[0].mxu0
    %705 = vmatprep.mubr.f32.mxu0 0.0
    %706 = vmatmul.mubr.f32.gmra.mrb[0].mxu0 %v534
    %v707 = vpop.f32.mrb[0].mxu0
    %v708 = vadd.f32 0.0, %v707
    %v709 = vpop.f32.mrb[0].mxu0
    %710 = vmatprep.mubr.f32.mxu0 0.0
    %711 = vmatmul.mubr.f32.gmra.mrb[0].mxu0 %v537
    %v712 = vpop.f32.mrb[0].mxu0
    %v713 = vadd.f32 0.0, %v712
    %v714 = vpop.f32.mrb[0].mxu0
    %715 = vmatprep.mubr.f32.mxu0 0.0
    %716 = vmatmul.mubr.f32.gmra.mrb[0].mxu0 %v540
    %v717 = vpop.f32.mrb[0].mxu0
    %v718 = vadd.f32 0.0, %v717
    %v719 = vpop.f32.mrb[0].mxu0
    %720 = vmatprep.mubr.f32.mxu0 0.0
    %721 = vmatmul.mubr.f32.gmra.mrb[0].mxu0 %v543
    %v722 = vpop.f32.mrb[0].mxu0
    %v723 = vadd.f32 0.0, %v722
    %v724 = vpop.f32.mrb[0].mxu0
    %725 = vmatprep.mubr.f32.mxu0 0.0
    %726 = vmatmul.mubr.f32.gmra.mrb[0].mxu0 %v546
    %v727 = vpop.f32.mrb[0].mxu0
    %v728 = vadd.f32 0.0, %v727
    %v729 = vpop.f32.mrb[0].mxu0
    %730 = vmatprep.mubr.f32.mxu0 0.0
    %731 = vmatmul.mubr.f32.gmra.mrb[0].mxu0 %v549
    %v732 = vpop.f32.mrb[0].mxu0
    %v733 = vadd.f32 0.0, %v732
    %v734 = vpop.f32.mrb[0].mxu0
    %735 = vmatprep.mubr.f32.mxu0 0.0
    %736 = vmatmul.mubr.f32.gmra.mrb[0].mxu0 %v552
    %v737 = vpop.f32.mrb[0].mxu0
    %v738 = vadd.f32 0.0, %v737
    %v739 = vpop.f32.mrb[0].mxu0
    %740 = vmatprep.mubr.f32.mxu0 0.0
    %741 = vmatmul.mubr.f32.gmra.mrb[0].mxu0 %v555
    %v742 = vpop.f32.mrb[0].mxu0
    %v743 = vadd.f32 0.0, %v742
    %v744 = vpop.f32.mrb[0].mxu0
    %745 = vmatprep.mubr.f32.mxu0 0.0
    %746 = vmatmul.mubr.f32.gmra.mrb[0].mxu0 %v558
    %v747 = vpop.f32.mrb[0].mxu0
    %v748 = vadd.f32 0.0, %v747
    %v749 = vpop.f32.mrb[0].mxu0
    %750 = vmatprep.mubr.f32.mxu0 0.0
    %751 = vmatmul.mubr.f32.gmra.mrb[0].mxu0 %v561
    %v752 = vpop.f32.mrb[0].mxu0
    %v753 = vadd.f32 0.0, %v752
    %v754 = vpop.f32.mrb[0].mxu0
    %755 = vmatprep.mubr.f32.mxu0 0.0
    %756 = vmatmul.mubr.f32.gmra.mrb[0].mxu0 %v564
    %v757 = vpop.f32.mrb[0].mxu0
    %v758 = vadd.f32 0.0, %v757
    %v759 = vpop.f32.mrb[0].mxu0
    %760 = vmatprep.mubr.f32.mxu0 0.0
    %761 = vmatmul.mubr.f32.gmra.mrb[0].mxu0 %v567
    %v762 = vpop.f32.mrb[0].mxu0
    %v763 = vadd.f32 0.0, %v762
    %v764 = vpop.f32.mrb[0].mxu0
    %765 = vmatprep.mubr.f32.mxu0 0.0
    %766 = vmatmul.mubr.f32.gmra.mrb[0].mxu0 %v570
    %v767 = vpop.f32.mrb[0].mxu0
    %v768 = vadd.f32 0.0, %v767
    %v769 = vpop.f32.mrb[0].mxu0
    %770 = vmatprep.mubr.f32.mxu0 0.0
    %771 = vmatmul.mubr.f32.gmra.mrb[0].mxu0 %v573
    %v772 = vpop.f32.mrb[0].mxu0
    %v773 = vadd.f32 0.0, %v772
    %v774 = vpop.f32.mrb[0].mxu0
    %775 = vmatprep.mubr.f32.mxu0 0.0
    %776 = vmatmul.mubr.f32.gmra.mrb[0].mxu0 %v576
    %v777 = vpop.f32.mrb[0].mxu0
    %v778 = vadd.f32 0.0, %v777
    %v779 = vpop.f32.mrb[0].mxu0
    %780 = vmatprep.mubr.f32.mxu0 0.0
    %781 = vmatmul.mubr.f32.gmra.mrb[0].mxu0 %v579
    %v782 = vpop.f32.mrb[0].mxu0
    %v783 = vadd.f32 0.0, %v782
    %v784 = vpop.f32.mrb[0].mxu0
    %785 = vmatprep.mubr.f32.mxu0 0.0
    %786 = vmatmul.mubr.f32.gmra.mrb[0].mxu0 %v582
    %v787 = vpop.f32.mrb[0].mxu0
    %v788 = vadd.f32 0.0, %v787
    %v789 = vpop.f32.mrb[0].mxu0
    %790 = vmatprep.mubr.f32.mxu0 0.0
    %791 = vmatmul.mubr.f32.gmra.mrb[0].mxu0 %v585
    %v792 = vpop.f32.mrb[0].mxu0
    %v793 = vadd.f32 0.0, %v792
    %v794 = vpop.f32.mrb[0].mxu0
    %795 = vmatprep.mubr.f32.mxu0 0.0
    %796 = vmatmul.mubr.f32.gmra.mrb[0].mxu0 %v588
    %v797 = vpop.f32.mrb[0].mxu0
    %v798 = vadd.f32 0.0, %v797
    %v799 = vpop.f32.mrb[0].mxu0
    %800 = vmatprep.mubr.f32.mxu0 0.0
    %801 = vmatmul.mubr.f32.gmra.mrb[0].mxu0 %v591
    %v802 = vpop.f32.mrb[0].mxu0
    %v803 = vadd.f32 0.0, %v802
    %v804 = vpop.f32.mrb[0].mxu0
    %805 = vmatprep.mubr.f32.mxu0 0.0
    %806 = vmatmul.mubr.f32.gmra.mrb[0].mxu0 %v594
    %v807 = vpop.f32.mrb[0].mxu0
    %v808 = vadd.f32 0.0, %v807
    %v809 = vpop.f32.mrb[0].mxu0
    %810 = vmatprep.mubr.f32.mxu0 0.0
    %811 = vmatmul.mubr.f32.gmra.mrb[0].mxu0 %v597
    %v812 = vpop.f32.mrb[0].mxu0
    %v813 = vadd.f32 0.0, %v812
    %v814 = vpop.f32.mrb[0].mxu0
    %815 = vmatprep.mubr.f32.mxu0 0.0
    %816 = vmatmul.mubr.f32.gmra.mrb[0].mxu0 %v600
    %v817 = vpop.f32.mrb[0].mxu0
    %v818 = vadd.f32 0.0, %v817
    %v819 = vpop.f32.mrb[0].mxu0
    %820 = vmatprep.mubr.f32.mxu0 0.0
    %821 = vmatmul.mubr.f32.gmra.mrb[0].mxu0 %v603
    %v822 = vpop.f32.mrb[0].mxu0
    %v823 = vadd.f32 0.0, %v822
    %v824 = vpop.f32.mrb[0].mxu0
    %825 = vmatprep.mubr.f32.mxu0 0.0
    %826 = vmatmul.mubr.f32.gmra.mrb[0].mxu0 %v606
    %v827 = vpop.f32.mrb[0].mxu0
    %v828 = vadd.f32 0.0, %v827
    %v829 = vpop.f32.mrb[0].mxu0
    %830 = vmatprep.mubr.f32.mxu0 0.0
    %831 = vmatmul.mubr.f32.gmra.mrb[0].mxu0 %v609
    %v832 = vpop.f32.mrb[0].mxu0
    %v833 = vadd.f32 0.0, %v832
    %v834 = vpop.f32.mrb[0].mxu0
    %835 = vdwg.mxu0
    %v836 = vld [vmem:[#allocation2] sm:$0xff]
    %v837 = vld [vmem:[#allocation2 + $0x8] sm:$0xff]
    %v838 = vld [vmem:[#allocation2 + $0x10] sm:$0xff]
    %v839 = vld [vmem:[#allocation2 + $0x18] sm:$0xff]
    %v840 = vld [vmem:[#allocation2 + $0x20] sm:$0xff]
    %v841 = vld [vmem:[#allocation2 + $0x28] sm:$0xff]
    %v842 = vld [vmem:[#allocation2 + $0x30] sm:$0xff]
    %v843 = vld [vmem:[#allocation2 + $0x38] sm:$0xff]
    %v844 = vld [vmem:[#allocation2 + $0x40] sm:$0xff]
    %v845 = vld [vmem:[#allocation2 + $0x48] sm:$0xff]
    %v846 = vld [vmem:[#allocation2 + $0x50] sm:$0xff]
    %v847 = vld [vmem:[#allocation2 + $0x58] sm:$0xff]
    %v848 = vld [vmem:[#allocation2 + $0x60] sm:$0xff]
    %v849 = vld [vmem:[#allocation2 + $0x68] sm:$0xff]
    %v850 = vld [vmem:[#allocation2 + $0x70] sm:$0xff]
    %v851 = vld [vmem:[#allocation2 + $0x78] sm:$0xff]
    %v852 = vld [vmem:[#allocation2 + $0x80] sm:$0xff]
    %v853 = vld [vmem:[#allocation2 + $0x88] sm:$0xff]
    %v854 = vld [vmem:[#allocation2 + $0x90] sm:$0xff]
    %v855 = vld [vmem:[#allocation2 + $0x98] sm:$0xff]
    %v856 = vld [vmem:[#allocation2 + $0xa0] sm:$0xff]
    %v857 = vld [vmem:[#allocation2 + $0xa8] sm:$0xff]
    %v858 = vld [vmem:[#allocation2 + $0xb0] sm:$0xff]
    %v859 = vld [vmem:[#allocation2 + $0xb8] sm:$0xff]
    %v860 = vld [vmem:[#allocation2 + $0xc0] sm:$0xff]
    %v861 = vld [vmem:[#allocation2 + $0xc8] sm:$0xff]
    %v862 = vld [vmem:[#allocation2 + $0xd0] sm:$0xff]
    %v863 = vld [vmem:[#allocation2 + $0xd8] sm:$0xff]
    %v864 = vld [vmem:[#allocation2 + $0xe0] sm:$0xff]
    %v865 = vld [vmem:[#allocation2 + $0xe8] sm:$0xff]
    %v866 = vld [vmem:[#allocation2 + $0xf0] sm:$0xff]
    %v867 = vld [vmem:[#allocation2 + $0xf8] sm:$0xff]
    %v868 = vld [vmem:[#allocation2 + $0x100] sm:$0xff]
    %v869 = vld [vmem:[#allocation2 + $0x108] sm:$0xff]
    %v870 = vld [vmem:[#allocation2 + $0x110] sm:$0xff]
    %v871 = vld [vmem:[#allocation2 + $0x118] sm:$0xff]
    %v872 = vld [vmem:[#allocation2 + $0x120] sm:$0xff]
    %v873 = vld [vmem:[#allocation2 + $0x128] sm:$0xff]
    %v874 = vld [vmem:[#allocation2 + $0x130] sm:$0xff]
    %v875 = vld [vmem:[#allocation2 + $0x138] sm:$0xff]
    %v876 = vld [vmem:[#allocation2 + $0x140] sm:$0xff]
    %v877 = vld [vmem:[#allocation2 + $0x148] sm:$0xff]
    %v878 = vld [vmem:[#allocation2 + $0x150] sm:$0xff]
    %v879 = vld [vmem:[#allocation2 + $0x158] sm:$0xff]
    %v880 = vld [vmem:[#allocation2 + $0x160] sm:$0xff]
    %v881 = vld [vmem:[#allocation2 + $0x168] sm:$0xff]
    %v882 = vld [vmem:[#allocation2 + $0x170] sm:$0xff]
    %v883 = vld [vmem:[#allocation2 + $0x178] sm:$0xff]
    %v884 = vld [vmem:[#allocation2 + $0x180] sm:$0xff]
    %v885 = vld [vmem:[#allocation2 + $0x188] sm:$0xff]
    %v886 = vld [vmem:[#allocation2 + $0x190] sm:$0xff]
    %v887 = vld [vmem:[#allocation2 + $0x198] sm:$0xff]
    %v888 = vld [vmem:[#allocation2 + $0x1a0] sm:$0xff]
    %v889 = vld [vmem:[#allocation2 + $0x1a8] sm:$0xff]
    %v890 = vld [vmem:[#allocation2 + $0x1b0] sm:$0xff]
    %v891 = vld [vmem:[#allocation2 + $0x1b8] sm:$0xff]
    %v892 = vld [vmem:[#allocation2 + $0x1c0] sm:$0xff]
    %v893 = vld [vmem:[#allocation2 + $0x1c8] sm:$0xff]
    %v894 = vld [vmem:[#allocation2 + $0x1d0] sm:$0xff]
    %v895 = vld [vmem:[#allocation2 + $0x1d8] sm:$0xff]
    %v896 = vld [vmem:[#allocation2 + $0x1e0] sm:$0xff]
    %v897 = vld [vmem:[#allocation2 + $0x1e8] sm:$0xff]
    %v898 = vld [vmem:[#allocation2 + $0x1f0] sm:$0xff]
    %v899 = vld [vmem:[#allocation2 + $0x1f8] sm:$0xff]
    %900 = vmatprep.subr.mxu0 %v869
    %901 = vmatpush1.msra.mxu0 %v868
    %902 = vmatprep.subr.mxu0 %v871
    %903 = vmatpush1.msra.mxu0 %v870
    %904 = vmatprep.subr.mxu0 %v873
    %905 = vmatpush1.msra.mxu0 %v872
    %906 = vmatprep.subr.mxu0 %v875
    %907 = vmatpush1.msra.mxu0 %v874
    %908 = vmatprep.subr.mxu0 %v877
    %909 = vmatpush1.msra.mxu0 %v876
    %910 = vmatprep.subr.mxu0 %v879
    %911 = vmatpush1.msra.mxu0 %v878
    %912 = vmatprep.subr.mxu0 %v881
    %913 = vmatpush1.msra.mxu0 %v880
    %914 = vmatprep.subr.mxu0 %v883
    %915 = vmatpush1.msra.mxu0 %v882
    %916 = vmatprep.subr.mxu0 %v885
    %917 = vmatpush1.msra.mxu0 %v884
    %918 = vmatprep.subr.mxu0 %v887
    %919 = vmatpush1.msra.mxu0 %v886
    %920 = vmatprep.subr.mxu0 %v889
    %921 = vmatpush1.msra.mxu0 %v888
    %922 = vmatprep.subr.mxu0 %v891
    %923 = vmatpush1.msra.mxu0 %v890
    %924 = vmatprep.subr.mxu0 %v893
    %925 = vmatpush1.msra.mxu0 %v892
    %926 = vmatprep.subr.mxu0 %v895
    %927 = vmatpush1.msra.mxu0 %v894
    %928 = vmatprep.subr.mxu0 %v897
    %929 = vmatpush1.msra.mxu0 %v896
    %930 = vmatprep.subr.mxu0 %v899
    %931 = vmatpush1.msra.mxu0 %v898
    %932 = vmatprep.subr.mxu0 0.0
    %933 = vmatpush1.msra.mxu0 0.0
    %934 = vmatprep.subr.mxu0 0.0
    %935 = vmatpush1.msra.mxu0 0.0
    %936 = vmatprep.subr.mxu0 0.0
    %937 = vmatpush1.msra.mxu0 0.0
    %938 = vmatprep.subr.mxu0 0.0
    %939 = vmatpush1.msra.mxu0 0.0
    %940 = vmatprep.subr.mxu0 0.0
    %941 = vmatpush1.msra.mxu0 0.0
    %942 = vmatprep.subr.mxu0 0.0
    %943 = vmatpush1.msra.mxu0 0.0
    %944 = vmatprep.subr.mxu0 0.0
    %945 = vmatpush1.msra.mxu0 0.0
    %946 = vmatprep.subr.mxu0 0.0
    %947 = vmatpush1.msra.mxu0 0.0
    %948 = vmatprep.subr.mxu0 0.0
    %949 = vmatpush1.msra.mxu0 0.0
    %950 = vmatprep.subr.mxu0 0.0
    %951 = vmatpush1.msra.mxu0 0.0
    %952 = vmatprep.subr.mxu0 0.0
    %953 = vmatpush1.msra.mxu0 0.0
    %954 = vmatprep.subr.mxu0 0.0
    %955 = vmatpush1.msra.mxu0 0.0
    %956 = vmatprep.subr.mxu0 0.0
    %957 = vmatpush1.msra.mxu0 0.0
    %958 = vmatprep.subr.mxu0 0.0
    %959 = vmatpush1.msra.mxu0 0.0
    %960 = vmatprep.subr.mxu0 0.0
    %961 = vmatpush1.msra.mxu0 0.0
    %962 = vmatprep.subr.mxu0 0.0
    %963 = vmatpush1.msra.mxu0 0.0
    %964 = vmatprep.mubr.f32.mxu0 0.0
    %965 = vmatmul.mubr.f32.gmra.mrb[0].mxu0 %v758
    %v966 = vpop.f32.mrb[0].mxu0
    %v967 = vadd.f32 0.0, %v966
    %v968 = vpop.f32.mrb[0].mxu0
    %v969 = vadd.f32 0.0, %v968
    %970 = vmatprep.mubr.f32.mxu0 0.0
    %971 = vmatmul.mubr.f32.gmra.mrb[0].mxu0 %v763
    %v972 = vpop.f32.mrb[0].mxu0
    %v973 = vadd.f32 0.0, %v972
    %v974 = vpop.f32.mrb[0].mxu0
    %v975 = vadd.f32 0.0, %v974
    %976 = vmatprep.mubr.f32.mxu0 0.0
    %977 = vmatmul.mubr.f32.gmra.mrb[0].mxu0 %v768
    %v978 = vpop.f32.mrb[0].mxu0
    %v979 = vadd.f32 0.0, %v978
    %v980 = vpop.f32.mrb[0].mxu0
    %v981 = vadd.f32 0.0, %v980
    %982 = vmatprep.mubr.f32.mxu0 0.0
    %983 = vmatmul.mubr.f32.gmra.mrb[0].mxu0 %v773
    %v984 = vpop.f32.mrb[0].mxu0
    %v985 = vadd.f32 0.0, %v984
    %v986 = vpop.f32.mrb[0].mxu0
    %v987 = vadd.f32 0.0, %v986
    %988 = vmatprep.mubr.f32.mxu0 0.0
    %989 = vmatmul.mubr.f32.gmra.mrb[0].mxu0 %v778
    %v990 = vpop.f32.mrb[0].mxu0
    %v991 = vadd.f32 0.0, %v990
    %v992 = vpop.f32.mrb[0].mxu0
    %v993 = vadd.f32 0.0, %v992
    %994 = vmatprep.mubr.f32.mxu0 0.0
    %995 = vmatmul.mubr.f32.gmra.mrb[0].mxu0 %v783
    %v996 = vpop.f32.mrb[0].mxu0
    %v997 = vadd.f32 0.0, %v996
    %v998 = vpop.f32.mrb[0].mxu0
    %v999 = vadd.f32 0.0, %v998
    %1000 = vmatprep.mubr.f32.mxu0 0.0
    %1001 = vmatmul.mubr.f32.gmra.mrb[0].mxu0 %v788
    %v1002 = vpop.f32.mrb[0].mxu0
    %v1003 = vadd.f32 0.0, %v1002
    %v1004 = vpop.f32.mrb[0].mxu0
    %v1005 = vadd.f32 0.0, %v1004
    %1006 = vmatprep.mubr.f32.mxu0 0.0
    %1007 = vmatmul.mubr.f32.gmra.mrb[0].mxu0 %v793
    %v1008 = vpop.f32.mrb[0].mxu0
    %v1009 = vadd.f32 0.0, %v1008
    %v1010 = vpop.f32.mrb[0].mxu0
    %v1011 = vadd.f32 0.0, %v1010
    %1012 = vmatprep.mubr.f32.mxu0 0.0
    %1013 = vmatmul.mubr.f32.gmra.mrb[0].mxu0 %v798
    %v1014 = vpop.f32.mrb[0].mxu0
    %v1015 = vadd.f32 0.0, %v1014
    %v1016 = vpop.f32.mrb[0].mxu0
    %v1017 = vadd.f32 0.0, %v1016
    %1018 = vmatprep.mubr.f32.mxu0 0.0
    %1019 = vmatmul.mubr.f32.gmra.mrb[0].mxu0 %v803
    %v1020 = vpop.f32.mrb[0].mxu0
    %v1021 = vadd.f32 0.0, %v1020
    %v1022 = vpop.f32.mrb[0].mxu0
    %v1023 = vadd.f32 0.0, %v1022
    %1024 = vmatprep.mubr.f32.mxu0 0.0
    %1025 = vmatmul.mubr.f32.gmra.mrb[0].mxu0 %v808
    %v1026 = vpop.f32.mrb[0].mxu0
    %v1027 = vadd.f32 0.0, %v1026
    %v1028 = vpop.f32.mrb[0].mxu0
    %v1029 = vadd.f32 0.0, %v1028
    %1030 = vmatprep.mubr.f32.mxu0 0.0
    %1031 = vmatmul.mubr.f32.gmra.mrb[0].mxu0 %v813
    %v1032 = vpop.f32.mrb[0].mxu0
    %v1033 = vadd.f32 0.0, %v1032
    %v1034 = vpop.f32.mrb[0].mxu0
    %v1035 = vadd.f32 0.0, %v1034
    %1036 = vmatprep.mubr.f32.mxu0 0.0
    %1037 = vmatmul.mubr.f32.gmra.mrb[0].mxu0 %v818
    %v1038 = vpop.f32.mrb[0].mxu0
    %v1039 = vadd.f32 0.0, %v1038
    %v1040 = vpop.f32.mrb[0].mxu0
    %v1041 = vadd.f32 0.0, %v1040
    %1042 = vmatprep.mubr.f32.mxu0 0.0
    %1043 = vmatmul.mubr.f32.gmra.mrb[0].mxu0 %v823
    %v1044 = vpop.f32.mrb[0].mxu0
    %v1045 = vadd.f32 0.0, %v1044
    %v1046 = vpop.f32.mrb[0].mxu0
    %v1047 = vadd.f32 0.0, %v1046
    %1048 = vmatprep.mubr.f32.mxu0 0.0
    %1049 = vmatmul.mubr.f32.gmra.mrb[0].mxu0 %v828
    %v1050 = vpop.f32.mrb[0].mxu0
    %v1051 = vadd.f32 0.0, %v1050
    %v1052 = vpop.f32.mrb[0].mxu0
    %v1053 = vadd.f32 0.0, %v1052
    %1054 = vmatprep.mubr.f32.mxu0 0.0
    %1055 = vmatmul.mubr.f32.gmra.mrb[0].mxu0 %v833
    %v1056 = vpop.f32.mrb[0].mxu0
    %v1057 = vadd.f32 0.0, %v1056
    %v1058 = vpop.f32.mrb[0].mxu0
    %v1059 = vadd.f32 0.0, %v1058
    %1060 = vdwg.mxu0
    %1061 = vmatprep.subr.mxu0 %v837
    %1062 = vmatpush1.msra.mxu0 %v836
    %1063 = vmatprep.subr.mxu0 %v839
    %1064 = vmatpush1.msra.mxu0 %v838
    %1065 = vmatprep.subr.mxu0 %v841
    %1066 = vmatpush1.msra.mxu0 %v840
    %1067 = vmatprep.subr.mxu0 %v843
    %1068 = vmatpush1.msra.mxu0 %v842
    %1069 = vmatprep.subr.mxu0 %v845
    %1070 = vmatpush1.msra.mxu0 %v844
    %1071 = vmatprep.subr.mxu0 %v847
    %1072 = vmatpush1.msra.mxu0 %v846
    %1073 = vmatprep.subr.mxu0 %v849
    %1074 = vmatpush1.msra.mxu0 %v848
    %1075 = vmatprep.subr.mxu0 %v851
    %1076 = vmatpush1.msra.mxu0 %v850
    %1077 = vmatprep.subr.mxu0 %v853
    %1078 = vmatpush1.msra.mxu0 %v852
    %1079 = vmatprep.subr.mxu0 %v855
    %1080 = vmatpush1.msra.mxu0 %v854
    %1081 = vmatprep.subr.mxu0 %v857
    %1082 = vmatpush1.msra.mxu0 %v856
    %1083 = vmatprep.subr.mxu0 %v859
    %1084 = vmatpush1.msra.mxu0 %v858
    %1085 = vmatprep.subr.mxu0 %v861
    %1086 = vmatpush1.msra.mxu0 %v860
    %1087 = vmatprep.subr.mxu0 %v863
    %1088 = vmatpush1.msra.mxu0 %v862
    %1089 = vmatprep.subr.mxu0 %v865
    %1090 = vmatpush1.msra.mxu0 %v864
    %1091 = vmatprep.subr.mxu0 %v867
    %1092 = vmatpush1.msra.mxu0 %v866
    %1093 = vmatprep.subr.mxu0 0.0
    %1094 = vmatpush1.msra.mxu0 0.0
    %1095 = vmatprep.subr.mxu0 0.0
    %1096 = vmatpush1.msra.mxu0 0.0
    %1097 = vmatprep.subr.mxu0 0.0
    %1098 = vmatpush1.msra.mxu0 0.0
    %1099 = vmatprep.subr.mxu0 0.0
    %1100 = vmatpush1.msra.mxu0 0.0
    %1101 = vmatprep.subr.mxu0 0.0
    %1102 = vmatpush1.msra.mxu0 0.0
    %1103 = vmatprep.subr.mxu0 0.0
    %1104 = vmatpush1.msra.mxu0 0.0
    %1105 = vmatprep.subr.mxu0 0.0
    %1106 = vmatpush1.msra.mxu0 0.0
    %1107 = vmatprep.subr.mxu0 0.0
    %1108 = vmatpush1.msra.mxu0 0.0
    %1109 = vmatprep.subr.mxu0 0.0
    %1110 = vmatpush1.msra.mxu0 0.0
    %1111 = vmatprep.subr.mxu0 0.0
    %1112 = vmatpush1.msra.mxu0 0.0
    %1113 = vmatprep.subr.mxu0 0.0
    %1114 = vmatpush1.msra.mxu0 0.0
    %1115 = vmatprep.subr.mxu0 0.0
    %1116 = vmatpush1.msra.mxu0 0.0
    %1117 = vmatprep.subr.mxu0 0.0
    %1118 = vmatpush1.msra.mxu0 0.0
    %1119 = vmatprep.subr.mxu0 0.0
    %1120 = vmatpush1.msra.mxu0 0.0
    %1121 = vmatprep.subr.mxu0 0.0
    %1122 = vmatpush1.msra.mxu0 0.0
    %1123 = vmatprep.subr.mxu0 0.0
    %1124 = vmatpush1.msra.mxu0 0.0
    %1125 = vmatprep.mubr.f32.mxu0 0.0
    %1126 = vmatmul.mubr.f32.gmra.mrb[0].mxu0 %v678
    %v1127 = vpop.f32.mrb[0].mxu0
    %v1128 = vadd.f32 %v967, %v1127
    %v1129 = vpop.f32.mrb[0].mxu0
    %v1130 = vadd.f32 %v969, %v1129
    %1131 = vmatprep.mubr.f32.mxu0 0.0
    %1132 = vmatmul.mubr.f32.gmra.mrb[0].mxu0 %v683
    %v1133 = vpop.f32.mrb[0].mxu0
    %v1134 = vadd.f32 %v973, %v1133
    %v1135 = vpop.f32.mrb[0].mxu0
    %v1136 = vadd.f32 %v975, %v1135
    %1137 = vmatprep.mubr.f32.mxu0 0.0
    %1138 = vmatmul.mubr.f32.gmra.mrb[0].mxu0 %v688
    %v1139 = vpop.f32.mrb[0].mxu0
    %v1140 = vadd.f32 %v979, %v1139
    %v1141 = vpop.f32.mrb[0].mxu0
    %v1142 = vadd.f32 %v981, %v1141
    %1143 = vmatprep.mubr.f32.mxu0 0.0
    %1144 = vmatmul.mubr.f32.gmra.mrb[0].mxu0 %v693
    %v1145 = vpop.f32.mrb[0].mxu0
    %v1146 = vadd.f32 %v985, %v1145
    %v1147 = vpop.f32.mrb[0].mxu0
    %v1148 = vadd.f32 %v987, %v1147
    %1149 = vmatprep.mubr.f32.mxu0 0.0
    %1150 = vmatmul.mubr.f32.gmra.mrb[0].mxu0 %v698
    %v1151 = vpop.f32.mrb[0].mxu0
    %v1152 = vadd.f32 %v991, %v1151
    %v1153 = vpop.f32.mrb[0].mxu0
    %v1154 = vadd.f32 %v993, %v1153
    %1155 = vmatprep.mubr.f32.mxu0 0.0
    %1156 = vmatmul.mubr.f32.gmra.mrb[0].mxu0 %v703
    %v1157 = vpop.f32.mrb[0].mxu0
    %v1158 = vadd.f32 %v997, %v1157
    %v1159 = vpop.f32.mrb[0].mxu0
    %v1160 = vadd.f32 %v999, %v1159
    %1161 = vmatprep.mubr.f32.mxu0 0.0
    %1162 = vmatmul.mubr.f32.gmra.mrb[0].mxu0 %v708
    %v1163 = vpop.f32.mrb[0].mxu0
    %v1164 = vadd.f32 %v1003, %v1163
    %v1165 = vpop.f32.mrb[0].mxu0
    %v1166 = vadd.f32 %v1005, %v1165
    %1167 = vmatprep.mubr.f32.mxu0 0.0
    %1168 = vmatmul.mubr.f32.gmra.mrb[0].mxu0 %v713
    %v1169 = vpop.f32.mrb[0].mxu0
    %v1170 = vadd.f32 %v1009, %v1169
    %v1171 = vpop.f32.mrb[0].mxu0
    %v1172 = vadd.f32 %v1011, %v1171
    %1173 = vmatprep.mubr.f32.mxu0 0.0
    %1174 = vmatmul.mubr.f32.gmra.mrb[0].mxu0 %v718
    %v1175 = vpop.f32.mrb[0].mxu0
    %v1176 = vadd.f32 %v1015, %v1175
    %v1177 = vpop.f32.mrb[0].mxu0
    %v1178 = vadd.f32 %v1017, %v1177
    %1179 = vmatprep.mubr.f32.mxu0 0.0
    %1180 = vmatmul.mubr.f32.gmra.mrb[0].mxu0 %v723
    %v1181 = vpop.f32.mrb[0].mxu0
    %v1182 = vadd.f32 %v1021, %v1181
    %v1183 = vpop.f32.mrb[0].mxu0
    %v1184 = vadd.f32 %v1023, %v1183
    %1185 = vmatprep.mubr.f32.mxu0 0.0
    %1186 = vmatmul.mubr.f32.gmra.mrb[0].mxu0 %v728
    %v1187 = vpop.f32.mrb[0].mxu0
    %v1188 = vadd.f32 %v1027, %v1187
    %v1189 = vpop.f32.mrb[0].mxu0
    %v1190 = vadd.f32 %v1029, %v1189
    %1191 = vmatprep.mubr.f32.mxu0 0.0
    %1192 = vmatmul.mubr.f32.gmra.mrb[0].mxu0 %v733
    %v1193 = vpop.f32.mrb[0].mxu0
    %v1194 = vadd.f32 %v1033, %v1193
    %v1195 = vpop.f32.mrb[0].mxu0
    %v1196 = vadd.f32 %v1035, %v1195
    %1197 = vmatprep.mubr.f32.mxu0 0.0
    %1198 = vmatmul.mubr.f32.gmra.mrb[0].mxu0 %v738
    %v1199 = vpop.f32.mrb[0].mxu0
    %v1200 = vadd.f32 %v1039, %v1199
    %v1201 = vpop.f32.mrb[0].mxu0
    %v1202 = vadd.f32 %v1041, %v1201
    %1203 = vmatprep.mubr.f32.mxu0 0.0
    %1204 = vmatmul.mubr.f32.gmra.mrb[0].mxu0 %v743
    %v1205 = vpop.f32.mrb[0].mxu0
    %v1206 = vadd.f32 %v1045, %v1205
    %v1207 = vpop.f32.mrb[0].mxu0
    %v1208 = vadd.f32 %v1047, %v1207
    %1209 = vmatprep.mubr.f32.mxu0 0.0
    %1210 = vmatmul.mubr.f32.gmra.mrb[0].mxu0 %v748
    %v1211 = vpop.f32.mrb[0].mxu0
    %v1212 = vadd.f32 %v1051, %v1211
    %v1213 = vpop.f32.mrb[0].mxu0
    %v1214 = vadd.f32 %v1053, %v1213
    %1215 = vmatprep.mubr.f32.mxu0 0.0
    %1216 = vmatmul.mubr.f32.gmra.mrb[0].mxu0 %v753
    %v1217 = vpop.f32.mrb[0].mxu0
    %v1218 = vadd.f32 %v1057, %v1217
    %v1219 = vpop.f32.mrb[0].mxu0
    %v1220 = vadd.f32 %v1059, %v1219
    %1221 = vdwg.mxu0
    %v1222 = vld [vmem:[#allocation2 + $0x200] sm:$0xff]
    %v1223 = vld [vmem:[#allocation2 + $0x208] sm:$0xff]
    %v1224 = vld [vmem:[#allocation2 + $0x210] sm:$0xff]
    %v1225 = vld [vmem:[#allocation2 + $0x218] sm:$0xff]
    %v1226 = vld [vmem:[#allocation2 + $0x220] sm:$0xff]
    %v1227 = vld [vmem:[#allocation2 + $0x228] sm:$0xff]
    %v1228 = vld [vmem:[#allocation2 + $0x230] sm:$0xff]
    %v1229 = vld [vmem:[#allocation2 + $0x238] sm:$0xff]
    %v1230 = vld [vmem:[#allocation2 + $0x240] sm:$0xff]
    %v1231 = vld [vmem:[#allocation2 + $0x248] sm:$0xff]
    %v1232 = vld [vmem:[#allocation2 + $0x250] sm:$0xff]
    %v1233 = vld [vmem:[#allocation2 + $0x258] sm:$0xff]
    %v1234 = vld [vmem:[#allocation2 + $0x260] sm:$0xff]
    %v1235 = vld [vmem:[#allocation2 + $0x268] sm:$0xff]
    %v1236 = vld [vmem:[#allocation2 + $0x270] sm:$0xff]
    %v1237 = vld [vmem:[#allocation2 + $0x278] sm:$0xff]
    %v1238 = vld [vmem:[#allocation2 + $0x280] sm:$0xff]
    %v1239 = vld [vmem:[#allocation2 + $0x288] sm:$0xff]
    %v1240 = vld [vmem:[#allocation2 + $0x290] sm:$0xff]
    %v1241 = vld [vmem:[#allocation2 + $0x298] sm:$0xff]
    %v1242 = vld [vmem:[#allocation2 + $0x2a0] sm:$0xff]
    %v1243 = vld [vmem:[#allocation2 + $0x2a8] sm:$0xff]
    %v1244 = vld [vmem:[#allocation2 + $0x2b0] sm:$0xff]
    %v1245 = vld [vmem:[#allocation2 + $0x2b8] sm:$0xff]
    %v1246 = vld [vmem:[#allocation2 + $0x2c0] sm:$0xff]
    %v1247 = vld [vmem:[#allocation2 + $0x2c8] sm:$0xff]
    %v1248 = vld [vmem:[#allocation2 + $0x2d0] sm:$0xff]
    %v1249 = vld [vmem:[#allocation2 + $0x2d8] sm:$0xff]
    %v1250 = vld [vmem:[#allocation2 + $0x2e0] sm:$0xff]
    %v1251 = vld [vmem:[#allocation2 + $0x2e8] sm:$0xff]
    %v1252 = vld [vmem:[#allocation2 + $0x2f0] sm:$0xff]
    %v1253 = vld [vmem:[#allocation2 + $0x2f8] sm:$0xff]
    %1254 = vmatprep.subr.mxu0 %v1223
    %1255 = vmatpush1.msra.mxu0 %v1222
    %1256 = vmatprep.subr.mxu0 %v1225
    %1257 = vmatpush1.msra.mxu0 %v1224
    %1258 = vmatprep.subr.mxu0 %v1227
    %1259 = vmatpush1.msra.mxu0 %v1226
    %1260 = vmatprep.subr.mxu0 %v1229
    %1261 = vmatpush1.msra.mxu0 %v1228
    %1262 = vmatprep.subr.mxu0 %v1231
    %1263 = vmatpush1.msra.mxu0 %v1230
    %1264 = vmatprep.subr.mxu0 %v1233
    %1265 = vmatpush1.msra.mxu0 %v1232
    %1266 = vmatprep.subr.mxu0 %v1235
    %1267 = vmatpush1.msra.mxu0 %v1234
    %1268 = vmatprep.subr.mxu0 %v1237
    %1269 = vmatpush1.msra.mxu0 %v1236
    %1270 = vmatprep.subr.mxu0 %v1239
    %1271 = vmatpush1.msra.mxu0 %v1238
    %1272 = vmatprep.subr.mxu0 %v1241
    %1273 = vmatpush1.msra.mxu0 %v1240
    %1274 = vmatprep.subr.mxu0 %v1243
    %1275 = vmatpush1.msra.mxu0 %v1242
    %1276 = vmatprep.subr.mxu0 %v1245
    %1277 = vmatpush1.msra.mxu0 %v1244
    %1278 = vmatprep.subr.mxu0 %v1247
    %1279 = vmatpush1.msra.mxu0 %v1246
    %1280 = vmatprep.subr.mxu0 %v1249
    %1281 = vmatpush1.msra.mxu0 %v1248
    %1282 = vmatprep.subr.mxu0 %v1251
    %1283 = vmatpush1.msra.mxu0 %v1250
    %1284 = vmatprep.subr.mxu0 %v1253
    %1285 = vmatpush1.msra.mxu0 %v1252
    %1286 = vmatprep.subr.mxu0 0.0
    %1287 = vmatpush1.msra.mxu0 0.0
    %1288 = vmatprep.subr.mxu0 0.0
    %1289 = vmatpush1.msra.mxu0 0.0
    %1290 = vmatprep.subr.mxu0 0.0
    %1291 = vmatpush1.msra.mxu0 0.0
    %1292 = vmatprep.subr.mxu0 0.0
    %1293 = vmatpush1.msra.mxu0 0.0
    %1294 = vmatprep.subr.mxu0 0.0
    %1295 = vmatpush1.msra.mxu0 0.0
    %1296 = vmatprep.subr.mxu0 0.0
    %1297 = vmatpush1.msra.mxu0 0.0
    %1298 = vmatprep.subr.mxu0 0.0
    %1299 = vmatpush1.msra.mxu0 0.0
    %1300 = vmatprep.subr.mxu0 0.0
    %1301 = vmatpush1.msra.mxu0 0.0
    %1302 = vmatprep.subr.mxu0 0.0
    %1303 = vmatpush1.msra.mxu0 0.0
    %1304 = vmatprep.subr.mxu0 0.0
    %1305 = vmatpush1.msra.mxu0 0.0
    %1306 = vmatprep.subr.mxu0 0.0
    %1307 = vmatpush1.msra.mxu0 0.0
    %1308 = vmatprep.subr.mxu0 0.0
    %1309 = vmatpush1.msra.mxu0 0.0
    %1310 = vmatprep.subr.mxu0 0.0
    %1311 = vmatpush1.msra.mxu0 0.0
    %1312 = vmatprep.subr.mxu0 0.0
    %1313 = vmatpush1.msra.mxu0 0.0
    %1314 = vmatprep.subr.mxu0 0.0
    %1315 = vmatpush1.msra.mxu0 0.0
    %1316 = vmatprep.subr.mxu0 0.0
    %1317 = vmatpush1.msra.mxu0 0.0
    %1318 = vmatprep.mubr.f32.mxu0 0.0
    %1319 = vmatmul.mubr.f32.gmra.mrb[0].mxu0 %v466
    %v1320 = vpop.f32.mrb[0].mxu0
    %v1321 = vadd.f32 0.0, %v1320
    %v1322 = vpop.f32.mrb[0].mxu0
    %v1323 = vadd.f32 0.0, %v1322
    %1324 = vmatprep.mubr.f32.mxu0 0.0
    %1325 = vmatmul.mubr.f32.gmra.mrb[0].mxu0 %v467
    %v1326 = vpop.f32.mrb[0].mxu0
    %v1327 = vadd.f32 0.0, %v1326
    %v1328 = vpop.f32.mrb[0].mxu0
    %v1329 = vadd.f32 0.0, %v1328
    %1330 = vmatprep.mubr.f32.mxu0 0.0
    %1331 = vmatmul.mubr.f32.gmra.mrb[0].mxu0 %v468
    %v1332 = vpop.f32.mrb[0].mxu0
    %v1333 = vadd.f32 0.0, %v1332
    %v1334 = vpop.f32.mrb[0].mxu0
    %v1335 = vadd.f32 0.0, %v1334
    %1336 = vmatprep.mubr.f32.mxu0 0.0
    %1337 = vmatmul.mubr.f32.gmra.mrb[0].mxu0 %v469
    %v1338 = vpop.f32.mrb[0].mxu0
    %v1339 = vadd.f32 0.0, %v1338
    %v1340 = vpop.f32.mrb[0].mxu0
    %v1341 = vadd.f32 0.0, %v1340
    %1342 = vmatprep.mubr.f32.mxu0 0.0
    %1343 = vmatmul.mubr.f32.gmra.mrb[0].mxu0 %v470
    %v1344 = vpop.f32.mrb[0].mxu0
    %v1345 = vadd.f32 0.0, %v1344
    %v1346 = vpop.f32.mrb[0].mxu0
    %v1347 = vadd.f32 0.0, %v1346
    %1348 = vmatprep.mubr.f32.mxu0 0.0
    %1349 = vmatmul.mubr.f32.gmra.mrb[0].mxu0 %v471
    %v1350 = vpop.f32.mrb[0].mxu0
    %v1351 = vadd.f32 0.0, %v1350
    %v1352 = vpop.f32.mrb[0].mxu0
    %v1353 = vadd.f32 0.0, %v1352
    %1354 = vmatprep.mubr.f32.mxu0 0.0
    %1355 = vmatmul.mubr.f32.gmra.mrb[0].mxu0 %v472
    %v1356 = vpop.f32.mrb[0].mxu0
    %v1357 = vadd.f32 0.0, %v1356
    %v1358 = vpop.f32.mrb[0].mxu0
    %v1359 = vadd.f32 0.0, %v1358
    %1360 = vmatprep.mubr.f32.mxu0 0.0
    %1361 = vmatmul.mubr.f32.gmra.mrb[0].mxu0 %v473
    %v1362 = vpop.f32.mrb[0].mxu0
    %v1363 = vadd.f32 0.0, %v1362
    %v1364 = vpop.f32.mrb[0].mxu0
    %v1365 = vadd.f32 0.0, %v1364
    %1366 = vmatprep.mubr.f32.mxu0 0.0
    %1367 = vmatmul.mubr.f32.gmra.mrb[0].mxu0 %v474
    %v1368 = vpop.f32.mrb[0].mxu0
    %v1369 = vadd.f32 0.0, %v1368
    %v1370 = vpop.f32.mrb[0].mxu0
    %v1371 = vadd.f32 0.0, %v1370
    %1372 = vmatprep.mubr.f32.mxu0 0.0
    %1373 = vmatmul.mubr.f32.gmra.mrb[0].mxu0 %v475
    %v1374 = vpop.f32.mrb[0].mxu0
    %v1375 = vadd.f32 0.0, %v1374
    %v1376 = vpop.f32.mrb[0].mxu0
    %v1377 = vadd.f32 0.0, %v1376
    %1378 = vmatprep.mubr.f32.mxu0 0.0
    %1379 = vmatmul.mubr.f32.gmra.mrb[0].mxu0 %v476
    %v1380 = vpop.f32.mrb[0].mxu0
    %v1381 = vadd.f32 0.0, %v1380
    %v1382 = vpop.f32.mrb[0].mxu0
    %v1383 = vadd.f32 0.0, %v1382
    %1384 = vmatprep.mubr.f32.mxu0 0.0
    %1385 = vmatmul.mubr.f32.gmra.mrb[0].mxu0 %v477
    %v1386 = vpop.f32.mrb[0].mxu0
    %v1387 = vadd.f32 0.0, %v1386
    %v1388 = vpop.f32.mrb[0].mxu0
    %v1389 = vadd.f32 0.0, %v1388
    %1390 = vmatprep.mubr.f32.mxu0 0.0
    %1391 = vmatmul.mubr.f32.gmra.mrb[0].mxu0 %v478
    %v1392 = vpop.f32.mrb[0].mxu0
    %v1393 = vadd.f32 0.0, %v1392
    %v1394 = vpop.f32.mrb[0].mxu0
    %v1395 = vadd.f32 0.0, %v1394
    %1396 = vmatprep.mubr.f32.mxu0 0.0
    %1397 = vmatmul.mubr.f32.gmra.mrb[0].mxu0 %v479
    %v1398 = vpop.f32.mrb[0].mxu0
    %v1399 = vadd.f32 0.0, %v1398
    %v1400 = vpop.f32.mrb[0].mxu0
    %v1401 = vadd.f32 0.0, %v1400
    %1402 = vmatprep.mubr.f32.mxu0 0.0
    %1403 = vmatmul.mubr.f32.gmra.mrb[0].mxu0 %v480
    %v1404 = vpop.f32.mrb[0].mxu0
    %v1405 = vadd.f32 0.0, %v1404
    %v1406 = vpop.f32.mrb[0].mxu0
    %v1407 = vadd.f32 0.0, %v1406
    %1408 = vmatprep.mubr.f32.mxu0 0.0
    %1409 = vmatmul.mubr.f32.gmra.mrb[0].mxu0 %v481
    %v1410 = vpop.f32.mrb[0].mxu0
    %v1411 = vadd.f32 0.0, %v1410
    %v1412 = vpop.f32.mrb[0].mxu0
    %v1413 = vadd.f32 0.0, %v1412
    %1414 = vdwg.mxu0
    %v1415 = vadd.f32 %v1128, %v1321
    %v1416 = vadd.f32 %v1130, %v1323
    %v1417 = vadd.f32 %v1134, %v1327
    %v1418 = vadd.f32 %v1136, %v1329
    %v1419 = vadd.f32 %v1140, %v1333
    %v1420 = vadd.f32 %v1142, %v1335
    %v1421 = vadd.f32 %v1146, %v1339
    %v1422 = vadd.f32 %v1148, %v1341
    %v1423 = vadd.f32 %v1152, %v1345
    %v1424 = vadd.f32 %v1154, %v1347
    %v1425 = vadd.f32 %v1158, %v1351
    %v1426 = vadd.f32 %v1160, %v1353
    %v1427 = vadd.f32 %v1164, %v1357
    %v1428 = vadd.f32 %v1166, %v1359
    %v1429 = vadd.f32 %v1170, %v1363
    %v1430 = vadd.f32 %v1172, %v1365
    %v1431 = vadd.f32 %v1176, %v1369
    %v1432 = vadd.f32 %v1178, %v1371
    %v1433 = vadd.f32 %v1182, %v1375
    %v1434 = vadd.f32 %v1184, %v1377
    %v1435 = vadd.f32 %v1188, %v1381
    %v1436 = vadd.f32 %v1190, %v1383
    %v1437 = vadd.f32 %v1194, %v1387
    %v1438 = vadd.f32 %v1196, %v1389
    %v1439 = vadd.f32 %v1200, %v1393
    %v1440 = vadd.f32 %v1202, %v1395
    %v1441 = vadd.f32 %v1206, %v1399
    %v1442 = vadd.f32 %v1208, %v1401
    %v1443 = vadd.f32 %v1212, %v1405
    %v1444 = vadd.f32 %v1214, %v1407
    %v1445 = vadd.f32 %v1218, %v1411
    %v1446 = vadd.f32 %v1220, %v1413
    %v1447 = vld [vmem:[%s9 + $0x2] sm:$0x1]
    %v1448 = vlaneseq
    %v1449 = vshrl.u32 %v1448, 7
    %v1450 = vsub.s32 0, %v1449
    %v1451 = vrot.slane %v1447, %v1450
    %v1452 = vadd.f32 %v1415, %v1451
    %v1453 = vadd.f32 %v1417, %v1451
    %v1454 = vadd.f32 %v1419, %v1451
    %v1455 = vadd.f32 %v1421, %v1451
    %v1456 = vadd.f32 %v1423, %v1451
    %v1457 = vadd.f32 %v1425, %v1451
    %v1458 = vadd.f32 %v1427, %v1451
    %v1459 = vadd.f32 %v1429, %v1451
    %v1460 = vadd.f32 %v1431, %v1451
    %v1461 = vadd.f32 %v1433, %v1451
    %v1462 = vadd.f32 %v1435, %v1451
    %v1463 = vadd.f32 %v1437, %v1451
    %v1464 = vadd.f32 %v1439, %v1451
    %v1465 = vadd.f32 %v1441, %v1451
    %v1466 = vadd.f32 %v1443, %v1451
    %v1467 = vadd.f32 %v1445, %v1451
    %v1468 = vld [vmem:[%s9 + $0x3] sm:$0x1]
    %v1469 = vlaneseq
    %v1470 = vshrl.u32 %v1469, 7
    %v1471 = vsub.s32 0, %v1470
    %v1472 = vrot.slane %v1468, %v1471
    %v1473 = vadd.f32 %v1416, %v1472
    %v1474 = vadd.f32 %v1418, %v1472
    %v1475 = vadd.f32 %v1420, %v1472
    %v1476 = vadd.f32 %v1422, %v1472
    %v1477 = vadd.f32 %v1424, %v1472
    %v1478 = vadd.f32 %v1426, %v1472
    %v1479 = vadd.f32 %v1428, %v1472
    %v1480 = vadd.f32 %v1430, %v1472
    %v1481 = vadd.f32 %v1432, %v1472
    %v1482 = vadd.f32 %v1434, %v1472
    %v1483 = vadd.f32 %v1436, %v1472
    %v1484 = vadd.f32 %v1438, %v1472
    %v1485 = vadd.f32 %v1440, %v1472
    %v1486 = vadd.f32 %v1442, %v1472
    %v1487 = vadd.f32 %v1444, %v1472
    %v1488 = vadd.f32 %v1446, %v1472
    %v1489 = vsub.f32 0.0, %v1452
    %v1490 = vsub.f32 0.0, %v1453
    %v1491 = vsub.f32 0.0, %v1454
    %v1492 = vsub.f32 0.0, %v1455
    %v1493 = vsub.f32 0.0, %v1456
    %v1494 = vsub.f32 0.0, %v1457
    %v1495 = vsub.f32 0.0, %v1458
    %v1496 = vsub.f32 0.0, %v1459
    %v1497 = vsub.f32 0.0, %v1460
    %v1498 = vsub.f32 0.0, %v1461
    %v1499 = vsub.f32 0.0, %v1462
    %v1500 = vsub.f32 0.0, %v1463
    %v1501 = vsub.f32 0.0, %v1464
    %v1502 = vsub.f32 0.0, %v1465
    %v1503 = vsub.f32 0.0, %v1466
    %v1504 = vsub.f32 0.0, %v1467
    %v1505 = vmul.f32 %v1489, 1.442695
    %v1506 = vpow.pop %v1505
    %v1507 = vmul.f32 %v1490, 1.442695
    %v1508 = vpow.pop %v1507
    %v1509 = vmul.f32 %v1491, 1.442695
    %v1510 = vpow.pop %v1509
    %v1511 = vmul.f32 %v1492, 1.442695
    %v1512 = vpow.pop %v1511
    %v1513 = vmul.f32 %v1493, 1.442695
    %v1514 = vpow.pop %v1513
    %v1515 = vmul.f32 %v1494, 1.442695
    %v1516 = vpow.pop %v1515
    %v1517 = vmul.f32 %v1495, 1.442695
    %v1518 = vpow.pop %v1517
    %v1519 = vmul.f32 %v1496, 1.442695
    %v1520 = vpow.pop %v1519
    %v1521 = vmul.f32 %v1497, 1.442695
    %v1522 = vpow.pop %v1521
    %v1523 = vmul.f32 %v1498, 1.442695
    %v1524 = vpow.pop %v1523
    %v1525 = vmul.f32 %v1499, 1.442695
    %v1526 = vpow.pop %v1525
    %v1527 = vmul.f32 %v1500, 1.442695
    %v1528 = vpow.pop %v1527
    %v1529 = vmul.f32 %v1501, 1.442695
    %v1530 = vpow.pop %v1529
    %v1531 = vmul.f32 %v1502, 1.442695
    %v1532 = vpow.pop %v1531
    %v1533 = vmul.f32 %v1503, 1.442695
    %v1534 = vpow.pop %v1533
    %v1535 = vmul.f32 %v1504, 1.442695
    %v1536 = vpow.pop %v1535
    %v1537 = vadd.f32 %v1506, 1.0
    %v1538 = vadd.f32 %v1508, 1.0
    %v1539 = vadd.f32 %v1510, 1.0
    %v1540 = vadd.f32 %v1512, 1.0
    %v1541 = vadd.f32 %v1514, 1.0
    %v1542 = vadd.f32 %v1516, 1.0
    %v1543 = vadd.f32 %v1518, 1.0
    %v1544 = vadd.f32 %v1520, 1.0
    %v1545 = vadd.f32 %v1522, 1.0
    %v1546 = vadd.f32 %v1524, 1.0
    %v1547 = vadd.f32 %v1526, 1.0
    %v1548 = vadd.f32 %v1528, 1.0
    %v1549 = vadd.f32 %v1530, 1.0
    %v1550 = vadd.f32 %v1532, 1.0
    %v1551 = vadd.f32 %v1534, 1.0
    %v1552 = vadd.f32 %v1536, 1.0
    %v1553 = vrcp.pop %v1537
    %v1554 = vmul.f32 1.0, %v1553
    %v1555 = vrcp.pop %v1538
    %v1556 = vmul.f32 1.0, %v1555
    %v1557 = vrcp.pop %v1539
    %v1558 = vmul.f32 1.0, %v1557
    %v1559 = vrcp.pop %v1540
    %v1560 = vmul.f32 1.0, %v1559
    %v1561 = vrcp.pop %v1541
    %v1562 = vmul.f32 1.0, %v1561
    %v1563 = vrcp.pop %v1542
    %v1564 = vmul.f32 1.0, %v1563
    %v1565 = vrcp.pop %v1543
    %v1566 = vmul.f32 1.0, %v1565
    %v1567 = vrcp.pop %v1544
    %v1568 = vmul.f32 1.0, %v1567
    %v1569 = vrcp.pop %v1545
    %v1570 = vmul.f32 1.0, %v1569
    %v1571 = vrcp.pop %v1546
    %v1572 = vmul.f32 1.0, %v1571
    %v1573 = vrcp.pop %v1547
    %v1574 = vmul.f32 1.0, %v1573
    %v1575 = vrcp.pop %v1548
    %v1576 = vmul.f32 1.0, %v1575
    %v1577 = vrcp.pop %v1549
    %v1578 = vmul.f32 1.0, %v1577
    %v1579 = vrcp.pop %v1550
    %v1580 = vmul.f32 1.0, %v1579
    %v1581 = vrcp.pop %v1551
    %v1582 = vmul.f32 1.0, %v1581
    %v1583 = vrcp.pop %v1552
    %v1584 = vmul.f32 1.0, %v1583
    %v1585 = vmax.f32 %v1473, 0.0
    %v1586 = vmax.f32 %v1474, 0.0
    %v1587 = vmax.f32 %v1475, 0.0
    %v1588 = vmax.f32 %v1476, 0.0
    %v1589 = vmax.f32 %v1477, 0.0
    %v1590 = vmax.f32 %v1478, 0.0
    %v1591 = vmax.f32 %v1479, 0.0
    %v1592 = vmax.f32 %v1480, 0.0
    %v1593 = vmax.f32 %v1481, 0.0
    %v1594 = vmax.f32 %v1482, 0.0
    %v1595 = vmax.f32 %v1483, 0.0
    %v1596 = vmax.f32 %v1484, 0.0
    %v1597 = vmax.f32 %v1485, 0.0
    %v1598 = vmax.f32 %v1486, 0.0
    %v1599 = vmax.f32 %v1487, 0.0
    %v1600 = vmax.f32 %v1488, 0.0
    %v1601 = vand.u32 2147483647, %v1473
    %v1602 = vand.u32 2147483647, %v1474
    %v1603 = vand.u32 2147483647, %v1475
    %v1604 = vand.u32 2147483647, %v1476
    %v1605 = vand.u32 2147483647, %v1477
    %v1606 = vand.u32 2147483647, %v1478
    %v1607 = vand.u32 2147483647, %v1479
    %v1608 = vand.u32 2147483647, %v1480
    %v1609 = vand.u32 2147483647, %v1481
    %v1610 = vand.u32 2147483647, %v1482
    %v1611 = vand.u32 2147483647, %v1483
    %v1612 = vand.u32 2147483647, %v1484
    %v1613 = vand.u32 2147483647, %v1485
    %v1614 = vand.u32 2147483647, %v1486
    %v1615 = vand.u32 2147483647, %v1487
    %v1616 = vand.u32 2147483647, %v1488
    %v1617 = vsub.f32 0.0, %v1601
    %v1618 = vsub.f32 0.0, %v1602
    %v1619 = vsub.f32 0.0, %v1603
    %v1620 = vsub.f32 0.0, %v1604
    %v1621 = vsub.f32 0.0, %v1605
    %v1622 = vsub.f32 0.0, %v1606
    %v1623 = vsub.f32 0.0, %v1607
    %v1624 = vsub.f32 0.0, %v1608
    %v1625 = vsub.f32 0.0, %v1609
    %v1626 = vsub.f32 0.0, %v1610
    %v1627 = vsub.f32 0.0, %v1611
    %v1628 = vsub.f32 0.0, %v1612
    %v1629 = vsub.f32 0.0, %v1613
    %v1630 = vsub.f32 0.0, %v1614
    %v1631 = vsub.f32 0.0, %v1615
    %v1632 = vsub.f32 0.0, %v1616
    %v1633 = vmul.f32 %v1617, 1.442695
    %v1634 = vpow.pop %v1633
    %v1635 = vmul.f32 %v1618, 1.442695
    %v1636 = vpow.pop %v1635
    %v1637 = vmul.f32 %v1619, 1.442695
    %v1638 = vpow.pop %v1637
    %v1639 = vmul.f32 %v1620, 1.442695
    %v1640 = vpow.pop %v1639
    %v1641 = vmul.f32 %v1621, 1.442695
    %v1642 = vpow.pop %v1641
    %v1643 = vmul.f32 %v1622, 1.442695
    %v1644 = vpow.pop %v1643
    %v1645 = vmul.f32 %v1623, 1.442695
    %v1646 = vpow.pop %v1645
    %v1647 = vmul.f32 %v1624, 1.442695
    %v1648 = vpow.pop %v1647
    %v1649 = vmul.f32 %v1625, 1.442695
    %v1650 = vpow.pop %v1649
    %v1651 = vmul.f32 %v1626, 1.442695
    %v1652 = vpow.pop %v1651
    %v1653 = vmul.f32 %v1627, 1.442695
    %v1654 = vpow.pop %v1653
    %v1655 = vmul.f32 %v1628, 1.442695
    %v1656 = vpow.pop %v1655
    %v1657 = vmul.f32 %v1629, 1.442695
    %v1658 = vpow.pop %v1657
    %v1659 = vmul.f32 %v1630, 1.442695
    %v1660 = vpow.pop %v1659
    %v1661 = vmul.f32 %v1631, 1.442695
    %v1662 = vpow.pop %v1661
    %v1663 = vmul.f32 %v1632, 1.442695
    %v1664 = vpow.pop %v1663
    %v1665 = vadd.f32 %v1634, 1.0
    %v1666 = vadd.f32 %v1636, 1.0
    %v1667 = vadd.f32 %v1638, 1.0
    %v1668 = vadd.f32 %v1640, 1.0
    %v1669 = vadd.f32 %v1642, 1.0
    %v1670 = vadd.f32 %v1644, 1.0
    %v1671 = vadd.f32 %v1646, 1.0
    %v1672 = vadd.f32 %v1648, 1.0
    %v1673 = vadd.f32 %v1650, 1.0
    %v1674 = vadd.f32 %v1652, 1.0
    %v1675 = vadd.f32 %v1654, 1.0
    %v1676 = vadd.f32 %v1656, 1.0
    %v1677 = vadd.f32 %v1658, 1.0
    %v1678 = vadd.f32 %v1660, 1.0
    %v1679 = vadd.f32 %v1662, 1.0
    %v1680 = vadd.f32 %v1664, 1.0
    %v1681 = vlog2.pop %v1665
    %v1682 = vmul.f32 %v1681, 0.6931472
    %v1683 = vlog2.pop %v1666
    %v1684 = vmul.f32 %v1683, 0.6931472
    %v1685 = vlog2.pop %v1667
    %v1686 = vmul.f32 %v1685, 0.6931472
    %v1687 = vlog2.pop %v1668
    %v1688 = vmul.f32 %v1687, 0.6931472
    %v1689 = vlog2.pop %v1669
    %v1690 = vmul.f32 %v1689, 0.6931472
    %v1691 = vlog2.pop %v1670
    %v1692 = vmul.f32 %v1691, 0.6931472
    %v1693 = vlog2.pop %v1671
    %v1694 = vmul.f32 %v1693, 0.6931472
    %v1695 = vlog2.pop %v1672
    %v1696 = vmul.f32 %v1695, 0.6931472
    %v1697 = vlog2.pop %v1673
    %v1698 = vmul.f32 %v1697, 0.6931472
    %v1699 = vlog2.pop %v1674
    %v1700 = vmul.f32 %v1699, 0.6931472
    %v1701 = vlog2.pop %v1675
    %v1702 = vmul.f32 %v1701, 0.6931472
    %v1703 = vlog2.pop %v1676
    %v1704 = vmul.f32 %v1703, 0.6931472
    %v1705 = vlog2.pop %v1677
    %v1706 = vmul.f32 %v1705, 0.6931472
    %v1707 = vlog2.pop %v1678
    %v1708 = vmul.f32 %v1707, 0.6931472
    %v1709 = vlog2.pop %v1679
    %v1710 = vmul.f32 %v1709, 0.6931472
    %v1711 = vlog2.pop %v1680
    %v1712 = vmul.f32 %v1711, 0.6931472
    %v1713 = vadd.f32 %v1585, %v1682
    %v1714 = vadd.f32 %v1586, %v1684
    %v1715 = vadd.f32 %v1587, %v1686
    %v1716 = vadd.f32 %v1588, %v1688
    %v1717 = vadd.f32 %v1589, %v1690
    %v1718 = vadd.f32 %v1590, %v1692
    %v1719 = vadd.f32 %v1591, %v1694
    %v1720 = vadd.f32 %v1592, %v1696
    %v1721 = vadd.f32 %v1593, %v1698
    %v1722 = vadd.f32 %v1594, %v1700
    %v1723 = vadd.f32 %v1595, %v1702
    %v1724 = vadd.f32 %v1596, %v1704
    %v1725 = vadd.f32 %v1597, %v1706
    %v1726 = vadd.f32 %v1598, %v1708
    %v1727 = vadd.f32 %v1599, %v1710
    %v1728 = vadd.f32 %v1600, %v1712
    %v1729 = vmul.f32 %v1554, %v1713
    %v1730 = vmul.f32 %v1556, %v1714
    %v1731 = vmul.f32 %v1558, %v1715
    %v1732 = vmul.f32 %v1560, %v1716
    %v1733 = vmul.f32 %v1562, %v1717
    %v1734 = vmul.f32 %v1564, %v1718
    %v1735 = vmul.f32 %v1566, %v1719
    %v1736 = vmul.f32 %v1568, %v1720
    %v1737 = vmul.f32 %v1570, %v1721
    %v1738 = vmul.f32 %v1572, %v1722
    %v1739 = vmul.f32 %v1574, %v1723
    %v1740 = vmul.f32 %v1576, %v1724
    %v1741 = vmul.f32 %v1578, %v1725
    %v1742 = vmul.f32 %v1580, %v1726
    %v1743 = vmul.f32 %v1582, %v1727
    %v1744 = vmul.f32 %v1584, %v1728
    %v1745 = vld [vmem:[%s3] sm:$0xff]
    %v1746 = vld [vmem:[%s3 + $0x8] sm:$0xff]
    %v1747 = vld [vmem:[%s3 + $0x10] sm:$0xff]
    %v1748 = vld [vmem:[%s3 + $0x18] sm:$0xff]
    %v1749 = vld [vmem:[%s3 + $0x20] sm:$0xff]
    %v1750 = vld [vmem:[%s3 + $0x28] sm:$0xff]
    %v1751 = vld [vmem:[%s3 + $0x30] sm:$0xff]
    %v1752 = vld [vmem:[%s3 + $0x38] sm:$0xff]
    %1753 = vmatprep.subr.mxu0 0.0
    %1754 = vmatpush1.msra.mxu0 %v1729
    %1755 = vmatprep.subr.mxu0 0.0
    %1756 = vmatpush1.msra.mxu0 %v1730
    %1757 = vmatprep.subr.mxu0 0.0
    %1758 = vmatpush1.msra.mxu0 %v1731
    %1759 = vmatprep.subr.mxu0 0.0
    %1760 = vmatpush1.msra.mxu0 %v1732
    %1761 = vmatprep.subr.mxu0 0.0
    %1762 = vmatpush1.msra.mxu0 %v1733
    %1763 = vmatprep.subr.mxu0 0.0
    %1764 = vmatpush1.msra.mxu0 %v1734
    %1765 = vmatprep.subr.mxu0 0.0
    %1766 = vmatpush1.msra.mxu0 %v1735
    %1767 = vmatprep.subr.mxu0 0.0
    %1768 = vmatpush1.msra.mxu0 %v1736
    %1769 = vmatprep.subr.mxu0 0.0
    %1770 = vmatpush1.msra.mxu0 %v1737
    %1771 = vmatprep.subr.mxu0 0.0
    %1772 = vmatpush1.msra.mxu0 %v1738
    %1773 = vmatprep.subr.mxu0 0.0
    %1774 = vmatpush1.msra.mxu0 %v1739
    %1775 = vmatprep.subr.mxu0 0.0
    %1776 = vmatpush1.msra.mxu0 %v1740
    %1777 = vmatprep.subr.mxu0 0.0
    %1778 = vmatpush1.msra.mxu0 %v1741
    %1779 = vmatprep.subr.mxu0 0.0
    %1780 = vmatpush1.msra.mxu0 %v1742
    %1781 = vmatprep.subr.mxu0 0.0
    %1782 = vmatpush1.msra.mxu0 %v1743
    %1783 = vmatprep.subr.mxu0 0.0
    %1784 = vmatpush1.msra.mxu0 %v1744
    %1785 = vmatprep.subr.mxu0 0.0
    %1786 = vmatpush1.msra.mxu0 0.0
    %1787 = vmatprep.subr.mxu0 0.0
    %1788 = vmatpush1.msra.mxu0 0.0
    %1789 = vmatprep.subr.mxu0 0.0
    %1790 = vmatpush1.msra.mxu0 0.0
    %1791 = vmatprep.subr.mxu0 0.0
    %1792 = vmatpush1.msra.mxu0 0.0
    %1793 = vmatprep.subr.mxu0 0.0
    %1794 = vmatpush1.msra.mxu0 0.0
    %1795 = vmatprep.subr.mxu0 0.0
    %1796 = vmatpush1.msra.mxu0 0.0
    %1797 = vmatprep.subr.mxu0 0.0
    %1798 = vmatpush1.msra.mxu0 0.0
    %1799 = vmatprep.subr.mxu0 0.0
    %1800 = vmatpush1.msra.mxu0 0.0
    %1801 = vmatprep.subr.mxu0 0.0
    %1802 = vmatpush1.msra.mxu0 0.0
    %1803 = vmatprep.subr.mxu0 0.0
    %1804 = vmatpush1.msra.mxu0 0.0
    %1805 = vmatprep.subr.mxu0 0.0
    %1806 = vmatpush1.msra.mxu0 0.0
    %1807 = vmatprep.subr.mxu0 0.0
    %1808 = vmatpush1.msra.mxu0 0.0
    %1809 = vmatprep.subr.mxu0 0.0
    %1810 = vmatpush1.msra.mxu0 0.0
    %1811 = vmatprep.subr.mxu0 0.0
    %1812 = vmatpush1.msra.mxu0 0.0
    %1813 = vmatprep.subr.mxu0 0.0
    %1814 = vmatpush1.msra.mxu0 0.0
    %1815 = vmatprep.subr.mxu0 0.0
    %1816 = vmatpush1.msra.mxu0 0.0
    %1817 = vmatprep.mubr.f32.mxu0 0.0
    %1818 = vmatmul.mubr.f32.gmra.mrb[0].mxu0 %v1745
    %v1819 = vpop.f32.mrb[0].mxu0
    %v1820 = vadd.f32 0.0, %v1819
    %v1821 = vpop.f32.mrb[0].mxu0
    %1822 = vmatprep.mubr.f32.mxu0 0.0
    %1823 = vmatmul.mubr.f32.gmra.mrb[0].mxu0 %v1746
    %v1824 = vpop.f32.mrb[0].mxu0
    %v1825 = vadd.f32 0.0, %v1824
    %v1826 = vpop.f32.mrb[0].mxu0
    %1827 = vmatprep.mubr.f32.mxu0 0.0
    %1828 = vmatmul.mubr.f32.gmra.mrb[0].mxu0 %v1747
    %v1829 = vpop.f32.mrb[0].mxu0
    %v1830 = vadd.f32 0.0, %v1829
    %v1831 = vpop.f32.mrb[0].mxu0
    %1832 = vmatprep.mubr.f32.mxu0 0.0
    %1833 = vmatmul.mubr.f32.gmra.mrb[0].mxu0 %v1748
    %v1834 = vpop.f32.mrb[0].mxu0
    %v1835 = vadd.f32 0.0, %v1834
    %v1836 = vpop.f32.mrb[0].mxu0
    %1837 = vmatprep.mubr.f32.mxu0 0.0
    %1838 = vmatmul.mubr.f32.gmra.mrb[0].mxu0 %v1749
    %v1839 = vpop.f32.mrb[0].mxu0
    %v1840 = vadd.f32 0.0, %v1839
    %v1841 = vpop.f32.mrb[0].mxu0
    %1842 = vmatprep.mubr.f32.mxu0 0.0
    %1843 = vmatmul.mubr.f32.gmra.mrb[0].mxu0 %v1750
    %v1844 = vpop.f32.mrb[0].mxu0
    %v1845 = vadd.f32 0.0, %v1844
    %v1846 = vpop.f32.mrb[0].mxu0
    %1847 = vmatprep.mubr.f32.mxu0 0.0
    %1848 = vmatmul.mubr.f32.gmra.mrb[0].mxu0 %v1751
    %v1849 = vpop.f32.mrb[0].mxu0
    %v1850 = vadd.f32 0.0, %v1849
    %v1851 = vpop.f32.mrb[0].mxu0
    %1852 = vmatprep.mubr.f32.mxu0 0.0
    %1853 = vmatmul.mubr.f32.gmra.mrb[0].mxu0 %v1752
    %v1854 = vpop.f32.mrb[0].mxu0
    %v1855 = vadd.f32 0.0, %v1854
    %v1856 = vpop.f32.mrb[0].mxu0
    %1857 = vdwg.mxu0
    %v1858 = vadd.f32 %v1820, %v1825
    %v1859 = vadd.f32 %v1858, %v1830
    %v1860 = vadd.f32 %v1859, %v1835
    %v1861 = vadd.f32 %v1860, %v1840
    %v1862 = vadd.f32 %v1861, %v1845
    %v1863 = vadd.f32 %v1862, %v1850
    %v1864 = vadd.f32 %v1863, %v1855
    %v1865 = vrot.slane %v1864, 4
    %v1866 = vadd.f32 %v1864, %v1865
    %v1867 = vrot.slane %v1866, 2
    %v1868 = vadd.f32 %v1866, %v1867
    %v1869 = vrot.slane %v1868, 1
    %v1870 = vadd.f32 %v1868, %v1869
    %v1871 = vmul.f32 %v1870, 0.015625
    %v1872 = vmul.f32 %v1820, %v1820
    %v1873 = vmul.f32 %v1825, %v1825
    %v1874 = vmul.f32 %v1830, %v1830
    %v1875 = vmul.f32 %v1835, %v1835
    %v1876 = vmul.f32 %v1840, %v1840
    %v1877 = vmul.f32 %v1845, %v1845
    %v1878 = vmul.f32 %v1850, %v1850
    %v1879 = vmul.f32 %v1855, %v1855
    %v1880 = vadd.f32 %v1872, %v1873
    %v1881 = vadd.f32 %v1880, %v1874
    %v1882 = vadd.f32 %v1881, %v1875
    %v1883 = vadd.f32 %v1882, %v1876
    %v1884 = vadd.f32 %v1883, %v1877
    %v1885 = vadd.f32 %v1884, %v1878
    %v1886 = vadd.f32 %v1885, %v1879
    %v1887 = vrot.slane %v1886, 4
    %v1888 = vadd.f32 %v1886, %v1887
    %v1889 = vrot.slane %v1888, 2
    %v1890 = vadd.f32 %v1888, %v1889
    %v1891 = vrot.slane %v1890, 1
    %v1892 = vadd.f32 %v1890, %v1891
    %v1893 = vmul.f32 %v1892, 0.015625
    %v1894 = vmul.f32 %v1871, %v1871
    %v1895 = vsub.f32 %v1893, %v1894
    %v1896 = vmax.f32 %v1895, 0.0
    %v1897 = vld [vmem:[%s9 + $0x4] sm:$0x1]
    %v1898 = vsub.f32 %v1820, %v1871
    %v1899 = vsub.f32 %v1825, %v1871
    %v1900 = vsub.f32 %v1830, %v1871
    %v1901 = vsub.f32 %v1835, %v1871
    %v1902 = vsub.f32 %v1840, %v1871
    %v1903 = vsub.f32 %v1845, %v1871
    %v1904 = vsub.f32 %v1850, %v1871
    %v1905 = vsub.f32 %v1855, %v1871
    %v1906 = vlaneseq
    %v1907 = vshrl.u32 %v1906, 7
    %v1908 = vsub.s32 0, %v1907
    %v1909 = vrot.slane %v1897, %v1908
    %v1910 = vmul.f32 %v1909, %v1898
    %v1911 = vmul.f32 %v1909, %v1899
    %v1912 = vmul.f32 %v1909, %v1900
    %v1913 = vmul.f32 %v1909, %v1901
    %v1914 = vmul.f32 %v1909, %v1902
    %v1915 = vmul.f32 %v1909, %v1903
    %v1916 = vmul.f32 %v1909, %v1904
    %v1917 = vmul.f32 %v1909, %v1905
    %v1918 = vadd.f32 %v1896, 1e-05
    %v1919 = vrsqrt.pop %v1918
    %v1920 = vmul.f32 %v1910, %v1919
    %v1921 = vmul.f32 %v1911, %v1919
    %v1922 = vmul.f32 %v1912, %v1919
    %v1923 = vmul.f32 %v1913, %v1919
    %v1924 = vmul.f32 %v1914, %v1919
    %v1925 = vmul.f32 %v1915, %v1919
    %v1926 = vmul.f32 %v1916, %v1919
    %v1927 = vmul.f32 %v1917, %v1919
    %v1928 = vld [vmem:[%s9 + $0x5] sm:$0x1]
    %v1929 = vlaneseq
    %v1930 = vshrl.u32 %v1929, 7
    %v1931 = vsub.s32 0, %v1930
    %v1932 = vrot.slane %v1928, %v1931
    %v1933 = vadd.f32 %v1920, %v1932
    %v1934 = vadd.f32 %v1921, %v1932
    %v1935 = vadd.f32 %v1922, %v1932
    %v1936 = vadd.f32 %v1923, %v1932
    %v1937 = vadd.f32 %v1924, %v1932
    %v1938 = vadd.f32 %v1925, %v1932
    %v1939 = vadd.f32 %v1926, %v1932
    %v1940 = vadd.f32 %v1927, %v1932
    %v1941 = vadd.f32 %v1933, %v210
    %v1942 = vadd.f32 %v1934, %v211
    %v1943 = vadd.f32 %v1935, %v212
    %v1944 = vadd.f32 %v1936, %v213
    %v1945 = vadd.f32 %v1937, %v214
    %v1946 = vadd.f32 %v1938, %v215
    %v1947 = vadd.f32 %v1939, %v216
    %v1948 = vadd.f32 %v1940, %v217
    %1949 = vmatprep.subr.mxu0 0.0
    %1950 = vmatpush1.msra.mxu0 %v1941
    %1951 = vmatprep.subr.mxu0 0.0
    %1952 = vmatpush1.msra.mxu0 %v1942
    %1953 = vmatprep.subr.mxu0 0.0
    %1954 = vmatpush1.msra.mxu0 %v1943
    %1955 = vmatprep.subr.mxu0 0.0
    %1956 = vmatpush1.msra.mxu0 %v1944
    %1957 = vmatprep.subr.mxu0 0.0
    %1958 = vmatpush1.msra.mxu0 %v1945
    %1959 = vmatprep.subr.mxu0 0.0
    %1960 = vmatpush1.msra.mxu0 %v1946
    %1961 = vmatprep.subr.mxu0 0.0
    %1962 = vmatpush1.msra.mxu0 %v1947
    %1963 = vmatprep.subr.mxu0 0.0
    %1964 = vmatpush1.msra.mxu0 %v1948
    %1965 = vmatprep.subr.mxu0 0.0
    %1966 = vmatpush1.msra.mxu0 0.0
    %1967 = vmatprep.subr.mxu0 0.0
    %1968 = vmatpush1.msra.mxu0 0.0
    %1969 = vmatprep.subr.mxu0 0.0
    %1970 = vmatpush1.msra.mxu0 0.0
    %1971 = vmatprep.subr.mxu0 0.0
    %1972 = vmatpush1.msra.mxu0 0.0
    %1973 = vmatprep.subr.mxu0 0.0
    %1974 = vmatpush1.msra.mxu0 0.0
    %1975 = vmatprep.subr.mxu0 0.0
    %1976 = vmatpush1.msra.mxu0 0.0
    %1977 = vmatprep.subr.mxu0 0.0
    %1978 = vmatpush1.msra.mxu0 0.0
    %1979 = vmatprep.subr.mxu0 0.0
    %1980 = vmatpush1.msra.mxu0 0.0
    %1981 = vmatprep.subr.mxu0 0.0
    %1982 = vmatpush1.msra.mxu0 0.0
    %1983 = vmatprep.subr.mxu0 0.0
    %1984 = vmatpush1.msra.mxu0 0.0
    %1985 = vmatprep.subr.mxu0 0.0
    %1986 = vmatpush1.msra.mxu0 0.0
    %1987 = vmatprep.subr.mxu0 0.0
    %1988 = vmatpush1.msra.mxu0 0.0
    %1989 = vmatprep.subr.mxu0 0.0
    %1990 = vmatpush1.msra.mxu0 0.0
    %1991 = vmatprep.subr.mxu0 0.0
    %1992 = vmatpush1.msra.mxu0 0.0
    %1993 = vmatprep.subr.mxu0 0.0
    %1994 = vmatpush1.msra.mxu0 0.0
    %1995 = vmatprep.subr.mxu0 0.0
    %1996 = vmatpush1.msra.mxu0 0.0
    %1997 = vmatprep.subr.mxu0 0.0
    %1998 = vmatpush1.msra.mxu0 0.0
    %1999 = vmatprep.subr.mxu0 0.0
    %2000 = vmatpush1.msra.mxu0 0.0
    %2001 = vmatprep.subr.mxu0 0.0
    %2002 = vmatpush1.msra.mxu0 0.0
    %2003 = vmatprep.subr.mxu0 0.0
    %2004 = vmatpush1.msra.mxu0 0.0
    %2005 = vmatprep.subr.mxu0 0.0
    %2006 = vmatpush1.msra.mxu0 0.0
    %2007 = vmatprep.subr.mxu0 0.0
    %2008 = vmatpush1.msra.mxu0 0.0
    %2009 = vmatprep.subr.mxu0 0.0
    %2010 = vmatpush1.msra.mxu0 0.0
    %2011 = vmatprep.subr.mxu0 0.0
    %2012 = vmatpush1.msra.mxu0 0.0
    %2013 = vmatprep.mubr.f32.mxu0 0.0
    %2014 = vmatmul.mubr.f32.gmra.mrb[0].mxu0 %v516
    %v2015 = vpop.f32.mrb[0].mxu0
    %v2016 = vadd.f32 0.0, %v2015
    %v2017 = vpop.f32.mrb[0].mxu0
    %2018 = vmatprep.mubr.f32.mxu0 0.0
    %2019 = vmatmul.mubr.f32.gmra.mrb[0].mxu0 %v519
    %v2020 = vpop.f32.mrb[0].mxu0
    %v2021 = vadd.f32 0.0, %v2020
    %v2022 = vpop.f32.mrb[0].mxu0
    %2023 = vmatprep.mubr.f32.mxu0 0.0
    %2024 = vmatmul.mubr.f32.gmra.mrb[0].mxu0 %v522
    %v2025 = vpop.f32.mrb[0].mxu0
    %v2026 = vadd.f32 0.0, %v2025
    %v2027 = vpop.f32.mrb[0].mxu0
    %2028 = vmatprep.mubr.f32.mxu0 0.0
    %2029 = vmatmul.mubr.f32.gmra.mrb[0].mxu0 %v525
    %v2030 = vpop.f32.mrb[0].mxu0
    %v2031 = vadd.f32 0.0, %v2030
    %v2032 = vpop.f32.mrb[0].mxu0
    %2033 = vmatprep.mubr.f32.mxu0 0.0
    %2034 = vmatmul.mubr.f32.gmra.mrb[0].mxu0 %v528
    %v2035 = vpop.f32.mrb[0].mxu0
    %v2036 = vadd.f32 0.0, %v2035
    %v2037 = vpop.f32.mrb[0].mxu0
    %2038 = vmatprep.mubr.f32.mxu0 0.0
    %2039 = vmatmul.mubr.f32.gmra.mrb[0].mxu0 %v531
    %v2040 = vpop.f32.mrb[0].mxu0
    %v2041 = vadd.f32 0.0, %v2040
    %v2042 = vpop.f32.mrb[0].mxu0
    %2043 = vmatprep.mubr.f32.mxu0 0.0
    %2044 = vmatmul.mubr.f32.gmra.mrb[0].mxu0 %v534
    %v2045 = vpop.f32.mrb[0].mxu0
    %v2046 = vadd.f32 0.0, %v2045
    %v2047 = vpop.f32.mrb[0].mxu0
    %2048 = vmatprep.mubr.f32.mxu0 0.0
    %2049 = vmatmul.mubr.f32.gmra.mrb[0].mxu0 %v537
    %v2050 = vpop.f32.mrb[0].mxu0
    %v2051 = vadd.f32 0.0, %v2050
    %v2052 = vpop.f32.mrb[0].mxu0
    %2053 = vmatprep.mubr.f32.mxu0 0.0
    %2054 = vmatmul.mubr.f32.gmra.mrb[0].mxu0 %v540
    %v2055 = vpop.f32.mrb[0].mxu0
    %v2056 = vadd.f32 0.0, %v2055
    %v2057 = vpop.f32.mrb[0].mxu0
    %2058 = vmatprep.mubr.f32.mxu0 0.0
    %2059 = vmatmul.mubr.f32.gmra.mrb[0].mxu0 %v543
    %v2060 = vpop.f32.mrb[0].mxu0
    %v2061 = vadd.f32 0.0, %v2060
    %v2062 = vpop.f32.mrb[0].mxu0
    %2063 = vmatprep.mubr.f32.mxu0 0.0
    %2064 = vmatmul.mubr.f32.gmra.mrb[0].mxu0 %v546
    %v2065 = vpop.f32.mrb[0].mxu0
    %v2066 = vadd.f32 0.0, %v2065
    %v2067 = vpop.f32.mrb[0].mxu0
    %2068 = vmatprep.mubr.f32.mxu0 0.0
    %2069 = vmatmul.mubr.f32.gmra.mrb[0].mxu0 %v549
    %v2070 = vpop.f32.mrb[0].mxu0
    %v2071 = vadd.f32 0.0, %v2070
    %v2072 = vpop.f32.mrb[0].mxu0
    %2073 = vmatprep.mubr.f32.mxu0 0.0
    %2074 = vmatmul.mubr.f32.gmra.mrb[0].mxu0 %v552
    %v2075 = vpop.f32.mrb[0].mxu0
    %v2076 = vadd.f32 0.0, %v2075
    %v2077 = vpop.f32.mrb[0].mxu0
    %2078 = vmatprep.mubr.f32.mxu0 0.0
    %2079 = vmatmul.mubr.f32.gmra.mrb[0].mxu0 %v555
    %v2080 = vpop.f32.mrb[0].mxu0
    %v2081 = vadd.f32 0.0, %v2080
    %v2082 = vpop.f32.mrb[0].mxu0
    %2083 = vmatprep.mubr.f32.mxu0 0.0
    %2084 = vmatmul.mubr.f32.gmra.mrb[0].mxu0 %v558
    %v2085 = vpop.f32.mrb[0].mxu0
    %v2086 = vadd.f32 0.0, %v2085
    %v2087 = vpop.f32.mrb[0].mxu0
    %2088 = vmatprep.mubr.f32.mxu0 0.0
    %2089 = vmatmul.mubr.f32.gmra.mrb[0].mxu0 %v561
    %v2090 = vpop.f32.mrb[0].mxu0
    %v2091 = vadd.f32 0.0, %v2090
    %v2092 = vpop.f32.mrb[0].mxu0
    %2093 = vmatprep.mubr.f32.mxu0 0.0
    %2094 = vmatmul.mubr.f32.gmra.mrb[0].mxu0 %v564
    %v2095 = vpop.f32.mrb[0].mxu0
    %v2096 = vadd.f32 0.0, %v2095
    %v2097 = vpop.f32.mrb[0].mxu0
    %2098 = vmatprep.mubr.f32.mxu0 0.0
    %2099 = vmatmul.mubr.f32.gmra.mrb[0].mxu0 %v567
    %v2100 = vpop.f32.mrb[0].mxu0
    %v2101 = vadd.f32 0.0, %v2100
    %v2102 = vpop.f32.mrb[0].mxu0
    %2103 = vmatprep.mubr.f32.mxu0 0.0
    %2104 = vmatmul.mubr.f32.gmra.mrb[0].mxu0 %v570
    %v2105 = vpop.f32.mrb[0].mxu0
    %v2106 = vadd.f32 0.0, %v2105
    %v2107 = vpop.f32.mrb[0].mxu0
    %2108 = vmatprep.mubr.f32.mxu0 0.0
    %2109 = vmatmul.mubr.f32.gmra.mrb[0].mxu0 %v573
    %v2110 = vpop.f32.mrb[0].mxu0
    %v2111 = vadd.f32 0.0, %v2110
    %v2112 = vpop.f32.mrb[0].mxu0
    %2113 = vmatprep.mubr.f32.mxu0 0.0
    %2114 = vmatmul.mubr.f32.gmra.mrb[0].mxu0 %v576
    %v2115 = vpop.f32.mrb[0].mxu0
    %v2116 = vadd.f32 0.0, %v2115
    %v2117 = vpop.f32.mrb[0].mxu0
    %2118 = vmatprep.mubr.f32.mxu0 0.0
    %2119 = vmatmul.mubr.f32.gmra.mrb[0].mxu0 %v579
    %v2120 = vpop.f32.mrb[0].mxu0
    %v2121 = vadd.f32 0.0, %v2120
    %v2122 = vpop.f32.mrb[0].mxu0
    %2123 = vmatprep.mubr.f32.mxu0 0.0
    %2124 = vmatmul.mubr.f32.gmra.mrb[0].mxu0 %v582
    %v2125 = vpop.f32.mrb[0].mxu0
    %v2126 = vadd.f32 0.0, %v2125
    %v2127 = vpop.f32.mrb[0].mxu0
    %2128 = vmatprep.mubr.f32.mxu0 0.0
    %2129 = vmatmul.mubr.f32.gmra.mrb[0].mxu0 %v585
    %v2130 = vpop.f32.mrb[0].mxu0
    %v2131 = vadd.f32 0.0, %v2130
    %v2132 = vpop.f32.mrb[0].mxu0
    %2133 = vmatprep.mubr.f32.mxu0 0.0
    %2134 = vmatmul.mubr.f32.gmra.mrb[0].mxu0 %v588
    %v2135 = vpop.f32.mrb[0].mxu0
    %v2136 = vadd.f32 0.0, %v2135
    %v2137 = vpop.f32.mrb[0].mxu0
    %2138 = vmatprep.mubr.f32.mxu0 0.0
    %2139 = vmatmul.mubr.f32.gmra.mrb[0].mxu0 %v591
    %v2140 = vpop.f32.mrb[0].mxu0
    %v2141 = vadd.f32 0.0, %v2140
    %v2142 = vpop.f32.mrb[0].mxu0
    %2143 = vmatprep.mubr.f32.mxu0 0.0
    %2144 = vmatmul.mubr.f32.gmra.mrb[0].mxu0 %v594
    %v2145 = vpop.f32.mrb[0].mxu0
    %v2146 = vadd.f32 0.0, %v2145
    %v2147 = vpop.f32.mrb[0].mxu0
    %2148 = vmatprep.mubr.f32.mxu0 0.0
    %2149 = vmatmul.mubr.f32.gmra.mrb[0].mxu0 %v597
    %v2150 = vpop.f32.mrb[0].mxu0
    %v2151 = vadd.f32 0.0, %v2150
    %v2152 = vpop.f32.mrb[0].mxu0
    %2153 = vmatprep.mubr.f32.mxu0 0.0
    %2154 = vmatmul.mubr.f32.gmra.mrb[0].mxu0 %v600
    %v2155 = vpop.f32.mrb[0].mxu0
    %v2156 = vadd.f32 0.0, %v2155
    %v2157 = vpop.f32.mrb[0].mxu0
    %2158 = vmatprep.mubr.f32.mxu0 0.0
    %2159 = vmatmul.mubr.f32.gmra.mrb[0].mxu0 %v603
    %v2160 = vpop.f32.mrb[0].mxu0
    %v2161 = vadd.f32 0.0, %v2160
    %v2162 = vpop.f32.mrb[0].mxu0
    %2163 = vmatprep.mubr.f32.mxu0 0.0
    %2164 = vmatmul.mubr.f32.gmra.mrb[0].mxu0 %v606
    %v2165 = vpop.f32.mrb[0].mxu0
    %v2166 = vadd.f32 0.0, %v2165
    %v2167 = vpop.f32.mrb[0].mxu0
    %2168 = vmatprep.mubr.f32.mxu0 0.0
    %2169 = vmatmul.mubr.f32.gmra.mrb[0].mxu0 %v609
    %v2170 = vpop.f32.mrb[0].mxu0
    %v2171 = vadd.f32 0.0, %v2170
    %v2172 = vpop.f32.mrb[0].mxu0
    %2173 = vdwg.mxu0
    %s2174 = scalar_lea.vmem [#allocation2], 768
    %v2175 = vld [vmem:[%s2174] sm:$0xff]
    %v2176 = vld [vmem:[%s2174 + $0x8] sm:$0xff]
    %v2177 = vld [vmem:[%s2174 + $0x10] sm:$0xff]
    %v2178 = vld [vmem:[%s2174 + $0x18] sm:$0xff]
    %v2179 = vld [vmem:[%s2174 + $0x20] sm:$0xff]
    %v2180 = vld [vmem:[%s2174 + $0x28] sm:$0xff]
    %v2181 = vld [vmem:[%s2174 + $0x30] sm:$0xff]
    %v2182 = vld [vmem:[%s2174 + $0x38] sm:$0xff]
    %v2183 = vld [vmem:[%s2174 + $0x40] sm:$0xff]
    %v2184 = vld [vmem:[%s2174 + $0x48] sm:$0xff]
    %v2185 = vld [vmem:[%s2174 + $0x50] sm:$0xff]
    %v2186 = vld [vmem:[%s2174 + $0x58] sm:$0xff]
    %v2187 = vld [vmem:[%s2174 + $0x60] sm:$0xff]
    %v2188 = vld [vmem:[%s2174 + $0x68] sm:$0xff]
    %v2189 = vld [vmem:[%s2174 + $0x70] sm:$0xff]
    %v2190 = vld [vmem:[%s2174 + $0x78] sm:$0xff]
    %v2191 = vld [vmem:[%s2174 + $0x80] sm:$0xff]
    %v2192 = vld [vmem:[%s2174 + $0x88] sm:$0xff]
    %v2193 = vld [vmem:[%s2174 + $0x90] sm:$0xff]
    %v2194 = vld [vmem:[%s2174 + $0x98] sm:$0xff]
    %v2195 = vld [vmem:[%s2174 + $0xa0] sm:$0xff]
    %v2196 = vld [vmem:[%s2174 + $0xa8] sm:$0xff]
    %v2197 = vld [vmem:[%s2174 + $0xb0] sm:$0xff]
    %v2198 = vld [vmem:[%s2174 + $0xb8] sm:$0xff]
    %v2199 = vld [vmem:[%s2174 + $0xc0] sm:$0xff]
    %v2200 = vld [vmem:[%s2174 + $0xc8] sm:$0xff]
    %v2201 = vld [vmem:[%s2174 + $0xd0] sm:$0xff]
    %v2202 = vld [vmem:[%s2174 + $0xd8] sm:$0xff]
    %v2203 = vld [vmem:[%s2174 + $0xe0] sm:$0xff]
    %v2204 = vld [vmem:[%s2174 + $0xe8] sm:$0xff]
    %v2205 = vld [vmem:[%s2174 + $0xf0] sm:$0xff]
    %v2206 = vld [vmem:[%s2174 + $0xf8] sm:$0xff]
    %v2207 = vld [vmem:[%s2174 + $0x100] sm:$0xff]
    %v2208 = vld [vmem:[%s2174 + $0x108] sm:$0xff]
    %v2209 = vld [vmem:[%s2174 + $0x110] sm:$0xff]
    %v2210 = vld [vmem:[%s2174 + $0x118] sm:$0xff]
    %v2211 = vld [vmem:[%s2174 + $0x120] sm:$0xff]
    %v2212 = vld [vmem:[%s2174 + $0x128] sm:$0xff]
    %v2213 = vld [vmem:[%s2174 + $0x130] sm:$0xff]
    %v2214 = vld [vmem:[%s2174 + $0x138] sm:$0xff]
    %v2215 = vld [vmem:[%s2174 + $0x140] sm:$0xff]
    %v2216 = vld [vmem:[%s2174 + $0x148] sm:$0xff]
    %v2217 = vld [vmem:[%s2174 + $0x150] sm:$0xff]
    %v2218 = vld [vmem:[%s2174 + $0x158] sm:$0xff]
    %v2219 = vld [vmem:[%s2174 + $0x160] sm:$0xff]
    %v2220 = vld [vmem:[%s2174 + $0x168] sm:$0xff]
    %v2221 = vld [vmem:[%s2174 + $0x170] sm:$0xff]
    %v2222 = vld [vmem:[%s2174 + $0x178] sm:$0xff]
    %v2223 = vld [vmem:[%s2174 + $0x180] sm:$0xff]
    %v2224 = vld [vmem:[%s2174 + $0x188] sm:$0xff]
    %v2225 = vld [vmem:[%s2174 + $0x190] sm:$0xff]
    %v2226 = vld [vmem:[%s2174 + $0x198] sm:$0xff]
    %v2227 = vld [vmem:[%s2174 + $0x1a0] sm:$0xff]
    %v2228 = vld [vmem:[%s2174 + $0x1a8] sm:$0xff]
    %v2229 = vld [vmem:[%s2174 + $0x1b0] sm:$0xff]
    %v2230 = vld [vmem:[%s2174 + $0x1b8] sm:$0xff]
    %v2231 = vld [vmem:[%s2174 + $0x1c0] sm:$0xff]
    %v2232 = vld [vmem:[%s2174 + $0x1c8] sm:$0xff]
    %v2233 = vld [vmem:[%s2174 + $0x1d0] sm:$0xff]
    %v2234 = vld [vmem:[%s2174 + $0x1d8] sm:$0xff]
    %v2235 = vld [vmem:[%s2174 + $0x1e0] sm:$0xff]
    %v2236 = vld [vmem:[%s2174 + $0x1e8] sm:$0xff]
    %v2237 = vld [vmem:[%s2174 + $0x1f0] sm:$0xff]
    %v2238 = vld [vmem:[%s2174 + $0x1f8] sm:$0xff]
    %2239 = vmatprep.subr.mxu0 %v2208
    %2240 = vmatpush1.msra.mxu0 %v2207
    %2241 = vmatprep.subr.mxu0 %v2210
    %2242 = vmatpush1.msra.mxu0 %v2209
    %2243 = vmatprep.subr.mxu0 %v2212
    %2244 = vmatpush1.msra.mxu0 %v2211
    %2245 = vmatprep.subr.mxu0 %v2214
    %2246 = vmatpush1.msra.mxu0 %v2213
    %2247 = vmatprep.subr.mxu0 %v2216
    %2248 = vmatpush1.msra.mxu0 %v2215
    %2249 = vmatprep.subr.mxu0 %v2218
    %2250 = vmatpush1.msra.mxu0 %v2217
    %2251 = vmatprep.subr.mxu0 %v2220
    %2252 = vmatpush1.msra.mxu0 %v2219
    %2253 = vmatprep.subr.mxu0 %v2222
    %2254 = vmatpush1.msra.mxu0 %v2221
    %2255 = vmatprep.subr.mxu0 %v2224
    %2256 = vmatpush1.msra.mxu0 %v2223
    %2257 = vmatprep.subr.mxu0 %v2226
    %2258 = vmatpush1.msra.mxu0 %v2225
    %2259 = vmatprep.subr.mxu0 %v2228
    %2260 = vmatpush1.msra.mxu0 %v2227
    %2261 = vmatprep.subr.mxu0 %v2230
    %2262 = vmatpush1.msra.mxu0 %v2229
    %2263 = vmatprep.subr.mxu0 %v2232
    %2264 = vmatpush1.msra.mxu0 %v2231
    %2265 = vmatprep.subr.mxu0 %v2234
    %2266 = vmatpush1.msra.mxu0 %v2233
    %2267 = vmatprep.subr.mxu0 %v2236
    %2268 = vmatpush1.msra.mxu0 %v2235
    %2269 = vmatprep.subr.mxu0 %v2238
    %2270 = vmatpush1.msra.mxu0 %v2237
    %2271 = vmatprep.subr.mxu0 0.0
    %2272 = vmatpush1.msra.mxu0 0.0
    %2273 = vmatprep.subr.mxu0 0.0
    %2274 = vmatpush1.msra.mxu0 0.0
    %2275 = vmatprep.subr.mxu0 0.0
    %2276 = vmatpush1.msra.mxu0 0.0
    %2277 = vmatprep.subr.mxu0 0.0
    %2278 = vmatpush1.msra.mxu0 0.0
    %2279 = vmatprep.subr.mxu0 0.0
    %2280 = vmatpush1.msra.mxu0 0.0
    %2281 = vmatprep.subr.mxu0 0.0
    %2282 = vmatpush1.msra.mxu0 0.0
    %2283 = vmatprep.subr.mxu0 0.0
    %2284 = vmatpush1.msra.mxu0 0.0
    %2285 = vmatprep.subr.mxu0 0.0
    %2286 = vmatpush1.msra.mxu0 0.0
    %2287 = vmatprep.subr.mxu0 0.0
    %2288 = vmatpush1.msra.mxu0 0.0
    %2289 = vmatprep.subr.mxu0 0.0
    %2290 = vmatpush1.msra.mxu0 0.0
    %2291 = vmatprep.subr.mxu0 0.0
    %2292 = vmatpush1.msra.mxu0 0.0
    %2293 = vmatprep.subr.mxu0 0.0
    %2294 = vmatpush1.msra.mxu0 0.0
    %2295 = vmatprep.subr.mxu0 0.0
    %2296 = vmatpush1.msra.mxu0 0.0
    %2297 = vmatprep.subr.mxu0 0.0
    %2298 = vmatpush1.msra.mxu0 0.0
    %2299 = vmatprep.subr.mxu0 0.0
    %2300 = vmatpush1.msra.mxu0 0.0
    %2301 = vmatprep.subr.mxu0 0.0
    %2302 = vmatpush1.msra.mxu0 0.0
    %2303 = vmatprep.mubr.f32.mxu0 0.0
    %2304 = vmatmul.mubr.f32.gmra.mrb[0].mxu0 %v2096
    %v2305 = vpop.f32.mrb[0].mxu0
    %v2306 = vadd.f32 0.0, %v2305
    %v2307 = vpop.f32.mrb[0].mxu0
    %v2308 = vadd.f32 0.0, %v2307
    %2309 = vmatprep.mubr.f32.mxu0 0.0
    %2310 = vmatmul.mubr.f32.gmra.mrb[0].mxu0 %v2101
    %v2311 = vpop.f32.mrb[0].mxu0
    %v2312 = vadd.f32 0.0, %v2311
    %v2313 = vpop.f32.mrb[0].mxu0
    %v2314 = vadd.f32 0.0, %v2313
    %2315 = vmatprep.mubr.f32.mxu0 0.0
    %2316 = vmatmul.mubr.f32.gmra.mrb[0].mxu0 %v2106
    %v2317 = vpop.f32.mrb[0].mxu0
    %v2318 = vadd.f32 0.0, %v2317
    %v2319 = vpop.f32.mrb[0].mxu0
    %v2320 = vadd.f32 0.0, %v2319
    %2321 = vmatprep.mubr.f32.mxu0 0.0
    %2322 = vmatmul.mubr.f32.gmra.mrb[0].mxu0 %v2111
    %v2323 = vpop.f32.mrb[0].mxu0
    %v2324 = vadd.f32 0.0, %v2323
    %v2325 = vpop.f32.mrb[0].mxu0
    %v2326 = vadd.f32 0.0, %v2325
    %2327 = vmatprep.mubr.f32.mxu0 0.0
    %2328 = vmatmul.mubr.f32.gmra.mrb[0].mxu0 %v2116
    %v2329 = vpop.f32.mrb[0].mxu0
    %v2330 = vadd.f32 0.0, %v2329
    %v2331 = vpop.f32.mrb[0].mxu0
    %v2332 = vadd.f32 0.0, %v2331
    %2333 = vmatprep.mubr.f32.mxu0 0.0
    %2334 = vmatmul.mubr.f32.gmra.mrb[0].mxu0 %v2121
    %v2335 = vpop.f32.mrb[0].mxu0
    %v2336 = vadd.f32 0.0, %v2335
    %v2337 = vpop.f32.mrb[0].mxu0
    %v2338 = vadd.f32 0.0, %v2337
    %2339 = vmatprep.mubr.f32.mxu0 0.0
    %2340 = vmatmul.mubr.f32.gmra.mrb[0].mxu0 %v2126
    %v2341 = vpop.f32.mrb[0].mxu0
    %v2342 = vadd.f32 0.0, %v2341
    %v2343 = vpop.f32.mrb[0].mxu0
    %v2344 = vadd.f32 0.0, %v2343
    %2345 = vmatprep.mubr.f32.mxu0 0.0
    %2346 = vmatmul.mubr.f32.gmra.mrb[0].mxu0 %v2131
    %v2347 = vpop.f32.mrb[0].mxu0
    %v2348 = vadd.f32 0.0, %v2347
    %v2349 = vpop.f32.mrb[0].mxu0
    %v2350 = vadd.f32 0.0, %v2349
    %2351 = vmatprep.mubr.f32.mxu0 0.0
    %2352 = vmatmul.mubr.f32.gmra.mrb[0].mxu0 %v2136
    %v2353 = vpop.f32.mrb[0].mxu0
    %v2354 = vadd.f32 0.0, %v2353
    %v2355 = vpop.f32.mrb[0].mxu0
    %v2356 = vadd.f32 0.0, %v2355
    %2357 = vmatprep.mubr.f32.mxu0 0.0
    %2358 = vmatmul.mubr.f32.gmra.mrb[0].mxu0 %v2141
    %v2359 = vpop.f32.mrb[0].mxu0
    %v2360 = vadd.f32 0.0, %v2359
    %v2361 = vpop.f32.mrb[0].mxu0
    %v2362 = vadd.f32 0.0, %v2361
    %2363 = vmatprep.mubr.f32.mxu0 0.0
    %2364 = vmatmul.mubr.f32.gmra.mrb[0].mxu0 %v2146
    %v2365 = vpop.f32.mrb[0].mxu0
    %v2366 = vadd.f32 0.0, %v2365
    %v2367 = vpop.f32.mrb[0].mxu0
    %v2368 = vadd.f32 0.0, %v2367
    %2369 = vmatprep.mubr.f32.mxu0 0.0
    %2370 = vmatmul.mubr.f32.gmra.mrb[0].mxu0 %v2151
    %v2371 = vpop.f32.mrb[0].mxu0
    %v2372 = vadd.f32 0.0, %v2371
    %v2373 = vpop.f32.mrb[0].mxu0
    %v2374 = vadd.f32 0.0, %v2373
    %2375 = vmatprep.mubr.f32.mxu0 0.0
    %2376 = vmatmul.mubr.f32.gmra.mrb[0].mxu0 %v2156
    %v2377 = vpop.f32.mrb[0].mxu0
    %v2378 = vadd.f32 0.0, %v2377
    %v2379 = vpop.f32.mrb[0].mxu0
    %v2380 = vadd.f32 0.0, %v2379
    %2381 = vmatprep.mubr.f32.mxu0 0.0
    %2382 = vmatmul.mubr.f32.gmra.mrb[0].mxu0 %v2161
    %v2383 = vpop.f32.mrb[0].mxu0
    %v2384 = vadd.f32 0.0, %v2383
    %v2385 = vpop.f32.mrb[0].mxu0
    %v2386 = vadd.f32 0.0, %v2385
    %2387 = vmatprep.mubr.f32.mxu0 0.0
    %2388 = vmatmul.mubr.f32.gmra.mrb[0].mxu0 %v2166
    %v2389 = vpop.f32.mrb[0].mxu0
    %v2390 = vadd.f32 0.0, %v2389
    %v2391 = vpop.f32.mrb[0].mxu0
    %v2392 = vadd.f32 0.0, %v2391
    %2393 = vmatprep.mubr.f32.mxu0 0.0
    %2394 = vmatmul.mubr.f32.gmra.mrb[0].mxu0 %v2171
    %v2395 = vpop.f32.mrb[0].mxu0
    %v2396 = vadd.f32 0.0, %v2395
    %v2397 = vpop.f32.mrb[0].mxu0
    %v2398 = vadd.f32 0.0, %v2397
    %2399 = vdwg.mxu0
    %2400 = vmatprep.subr.mxu0 %v2176
    %2401 = vmatpush1.msra.mxu0 %v2175
    %2402 = vmatprep.subr.mxu0 %v2178
    %2403 = vmatpush1.msra.mxu0 %v2177
    %2404 = vmatprep.subr.mxu0 %v2180
    %2405 = vmatpush1.msra.mxu0 %v2179
    %2406 = vmatprep.subr.mxu0 %v2182
    %2407 = vmatpush1.msra.mxu0 %v2181
    %2408 = vmatprep.subr.mxu0 %v2184
    %2409 = vmatpush1.msra.mxu0 %v2183
    %2410 = vmatprep.subr.mxu0 %v2186
    %2411 = vmatpush1.msra.mxu0 %v2185
    %2412 = vmatprep.subr.mxu0 %v2188
    %2413 = vmatpush1.msra.mxu0 %v2187
    %2414 = vmatprep.subr.mxu0 %v2190
    %2415 = vmatpush1.msra.mxu0 %v2189
    %2416 = vmatprep.subr.mxu0 %v2192
    %2417 = vmatpush1.msra.mxu0 %v2191
    %2418 = vmatprep.subr.mxu0 %v2194
    %2419 = vmatpush1.msra.mxu0 %v2193
    %2420 = vmatprep.subr.mxu0 %v2196
    %2421 = vmatpush1.msra.mxu0 %v2195
    %2422 = vmatprep.subr.mxu0 %v2198
    %2423 = vmatpush1.msra.mxu0 %v2197
    %2424 = vmatprep.subr.mxu0 %v2200
    %2425 = vmatpush1.msra.mxu0 %v2199
    %2426 = vmatprep.subr.mxu0 %v2202
    %2427 = vmatpush1.msra.mxu0 %v2201
    %2428 = vmatprep.subr.mxu0 %v2204
    %2429 = vmatpush1.msra.mxu0 %v2203
    %2430 = vmatprep.subr.mxu0 %v2206
    %2431 = vmatpush1.msra.mxu0 %v2205
    %2432 = vmatprep.subr.mxu0 0.0
    %2433 = vmatpush1.msra.mxu0 0.0
    %2434 = vmatprep.subr.mxu0 0.0
    %2435 = vmatpush1.msra.mxu0 0.0
    %2436 = vmatprep.subr.mxu0 0.0
    %2437 = vmatpush1.msra.mxu0 0.0
    %2438 = vmatprep.subr.mxu0 0.0
    %2439 = vmatpush1.msra.mxu0 0.0
    %2440 = vmatprep.subr.mxu0 0.0
    %2441 = vmatpush1.msra.mxu0 0.0
    %2442 = vmatprep.subr.mxu0 0.0
    %2443 = vmatpush1.msra.mxu0 0.0
    %2444 = vmatprep.subr.mxu0 0.0
    %2445 = vmatpush1.msra.mxu0 0.0
    %2446 = vmatprep.subr.mxu0 0.0
    %2447 = vmatpush1.msra.mxu0 0.0
    %2448 = vmatprep.subr.mxu0 0.0
    %2449 = vmatpush1.msra.mxu0 0.0
    %2450 = vmatprep.subr.mxu0 0.0
    %2451 = vmatpush1.msra.mxu0 0.0
    %2452 = vmatprep.subr.mxu0 0.0
    %2453 = vmatpush1.msra.mxu0 0.0
    %2454 = vmatprep.subr.mxu0 0.0
    %2455 = vmatpush1.msra.mxu0 0.0
    %2456 = vmatprep.subr.mxu0 0.0
    %2457 = vmatpush1.msra.mxu0 0.0
    %2458 = vmatprep.subr.mxu0 0.0
    %2459 = vmatpush1.msra.mxu0 0.0
    %2460 = vmatprep.subr.mxu0 0.0
    %2461 = vmatpush1.msra.mxu0 0.0
    %2462 = vmatprep.subr.mxu0 0.0
    %2463 = vmatpush1.msra.mxu0 0.0
    %2464 = vmatprep.mubr.f32.mxu0 0.0
    %2465 = vmatmul.mubr.f32.gmra.mrb[0].mxu0 %v2016
    %v2466 = vpop.f32.mrb[0].mxu0
    %v2467 = vadd.f32 %v2306, %v2466
    %v2468 = vpop.f32.mrb[0].mxu0
    %v2469 = vadd.f32 %v2308, %v2468
    %2470 = vmatprep.mubr.f32.mxu0 0.0
    %2471 = vmatmul.mubr.f32.gmra.mrb[0].mxu0 %v2021
    %v2472 = vpop.f32.mrb[0].mxu0
    %v2473 = vadd.f32 %v2312, %v2472
    %v2474 = vpop.f32.mrb[0].mxu0
    %v2475 = vadd.f32 %v2314, %v2474
    %2476 = vmatprep.mubr.f32.mxu0 0.0
    %2477 = vmatmul.mubr.f32.gmra.mrb[0].mxu0 %v2026
    %v2478 = vpop.f32.mrb[0].mxu0
    %v2479 = vadd.f32 %v2318, %v2478
    %v2480 = vpop.f32.mrb[0].mxu0
    %v2481 = vadd.f32 %v2320, %v2480
    %2482 = vmatprep.mubr.f32.mxu0 0.0
    %2483 = vmatmul.mubr.f32.gmra.mrb[0].mxu0 %v2031
    %v2484 = vpop.f32.mrb[0].mxu0
    %v2485 = vadd.f32 %v2324, %v2484
    %v2486 = vpop.f32.mrb[0].mxu0
    %v2487 = vadd.f32 %v2326, %v2486
    %2488 = vmatprep.mubr.f32.mxu0 0.0
    %2489 = vmatmul.mubr.f32.gmra.mrb[0].mxu0 %v2036
    %v2490 = vpop.f32.mrb[0].mxu0
    %v2491 = vadd.f32 %v2330, %v2490
    %v2492 = vpop.f32.mrb[0].mxu0
    %v2493 = vadd.f32 %v2332, %v2492
    %2494 = vmatprep.mubr.f32.mxu0 0.0
    %2495 = vmatmul.mubr.f32.gmra.mrb[0].mxu0 %v2041
    %v2496 = vpop.f32.mrb[0].mxu0
    %v2497 = vadd.f32 %v2336, %v2496
    %v2498 = vpop.f32.mrb[0].mxu0
    %v2499 = vadd.f32 %v2338, %v2498
    %2500 = vmatprep.mubr.f32.mxu0 0.0
    %2501 = vmatmul.mubr.f32.gmra.mrb[0].mxu0 %v2046
    %v2502 = vpop.f32.mrb[0].mxu0
    %v2503 = vadd.f32 %v2342, %v2502
    %v2504 = vpop.f32.mrb[0].mxu0
    %v2505 = vadd.f32 %v2344, %v2504
    %2506 = vmatprep.mubr.f32.mxu0 0.0
    %2507 = vmatmul.mubr.f32.gmra.mrb[0].mxu0 %v2051
    %v2508 = vpop.f32.mrb[0].mxu0
    %v2509 = vadd.f32 %v2348, %v2508
    %v2510 = vpop.f32.mrb[0].mxu0
    %v2511 = vadd.f32 %v2350, %v2510
    %2512 = vmatprep.mubr.f32.mxu0 0.0
    %2513 = vmatmul.mubr.f32.gmra.mrb[0].mxu0 %v2056
    %v2514 = vpop.f32.mrb[0].mxu0
    %v2515 = vadd.f32 %v2354, %v2514
    %v2516 = vpop.f32.mrb[0].mxu0
    %v2517 = vadd.f32 %v2356, %v2516
    %2518 = vmatprep.mubr.f32.mxu0 0.0
    %2519 = vmatmul.mubr.f32.gmra.mrb[0].mxu0 %v2061
    %v2520 = vpop.f32.mrb[0].mxu0
    %v2521 = vadd.f32 %v2360, %v2520
    %v2522 = vpop.f32.mrb[0].mxu0
    %v2523 = vadd.f32 %v2362, %v2522
    %2524 = vmatprep.mubr.f32.mxu0 0.0
    %2525 = vmatmul.mubr.f32.gmra.mrb[0].mxu0 %v2066
    %v2526 = vpop.f32.mrb[0].mxu0
    %v2527 = vadd.f32 %v2366, %v2526
    %v2528 = vpop.f32.mrb[0].mxu0
    %v2529 = vadd.f32 %v2368, %v2528
    %2530 = vmatprep.mubr.f32.mxu0 0.0
    %2531 = vmatmul.mubr.f32.gmra.mrb[0].mxu0 %v2071
    %v2532 = vpop.f32.mrb[0].mxu0
    %v2533 = vadd.f32 %v2372, %v2532
    %v2534 = vpop.f32.mrb[0].mxu0
    %v2535 = vadd.f32 %v2374, %v2534
    %2536 = vmatprep.mubr.f32.mxu0 0.0
    %2537 = vmatmul.mubr.f32.gmra.mrb[0].mxu0 %v2076
    %v2538 = vpop.f32.mrb[0].mxu0
    %v2539 = vadd.f32 %v2378, %v2538
    %v2540 = vpop.f32.mrb[0].mxu0
    %v2541 = vadd.f32 %v2380, %v2540
    %2542 = vmatprep.mubr.f32.mxu0 0.0
    %2543 = vmatmul.mubr.f32.gmra.mrb[0].mxu0 %v2081
    %v2544 = vpop.f32.mrb[0].mxu0
    %v2545 = vadd.f32 %v2384, %v2544
    %v2546 = vpop.f32.mrb[0].mxu0
    %v2547 = vadd.f32 %v2386, %v2546
    %2548 = vmatprep.mubr.f32.mxu0 0.0
    %2549 = vmatmul.mubr.f32.gmra.mrb[0].mxu0 %v2086
    %v2550 = vpop.f32.mrb[0].mxu0
    %v2551 = vadd.f32 %v2390, %v2550
    %v2552 = vpop.f32.mrb[0].mxu0
    %v2553 = vadd.f32 %v2392, %v2552
    %2554 = vmatprep.mubr.f32.mxu0 0.0
    %2555 = vmatmul.mubr.f32.gmra.mrb[0].mxu0 %v2091
    %v2556 = vpop.f32.mrb[0].mxu0
    %v2557 = vadd.f32 %v2396, %v2556
    %v2558 = vpop.f32.mrb[0].mxu0
    %v2559 = vadd.f32 %v2398, %v2558
    %2560 = vdwg.mxu0
    %v2561 = vld [vmem:[%s2174 + $0x200] sm:$0xff]
    %v2562 = vld [vmem:[%s2174 + $0x208] sm:$0xff]
    %v2563 = vld [vmem:[%s2174 + $0x210] sm:$0xff]
    %v2564 = vld [vmem:[%s2174 + $0x218] sm:$0xff]
    %v2565 = vld [vmem:[%s2174 + $0x220] sm:$0xff]
    %v2566 = vld [vmem:[%s2174 + $0x228] sm:$0xff]
    %v2567 = vld [vmem:[%s2174 + $0x230] sm:$0xff]
    %v2568 = vld [vmem:[%s2174 + $0x238] sm:$0xff]
    %v2569 = vld [vmem:[%s2174 + $0x240] sm:$0xff]
    %v2570 = vld [vmem:[%s2174 + $0x248] sm:$0xff]
    %v2571 = vld [vmem:[%s2174 + $0x250] sm:$0xff]
    %v2572 = vld [vmem:[%s2174 + $0x258] sm:$0xff]
    %v2573 = vld [vmem:[%s2174 + $0x260] sm:$0xff]
    %v2574 = vld [vmem:[%s2174 + $0x268] sm:$0xff]
    %v2575 = vld [vmem:[%s2174 + $0x270] sm:$0xff]
    %v2576 = vld [vmem:[%s2174 + $0x278] sm:$0xff]
    %v2577 = vld [vmem:[%s2174 + $0x280] sm:$0xff]
    %v2578 = vld [vmem:[%s2174 + $0x288] sm:$0xff]
    %v2579 = vld [vmem:[%s2174 + $0x290] sm:$0xff]
    %v2580 = vld [vmem:[%s2174 + $0x298] sm:$0xff]
    %v2581 = vld [vmem:[%s2174 + $0x2a0] sm:$0xff]
    %v2582 = vld [vmem:[%s2174 + $0x2a8] sm:$0xff]
    %v2583 = vld [vmem:[%s2174 + $0x2b0] sm:$0xff]
    %v2584 = vld [vmem:[%s2174 + $0x2b8] sm:$0xff]
    %v2585 = vld [vmem:[%s2174 + $0x2c0] sm:$0xff]
    %v2586 = vld [vmem:[%s2174 + $0x2c8] sm:$0xff]
    %v2587 = vld [vmem:[%s2174 + $0x2d0] sm:$0xff]
    %v2588 = vld [vmem:[%s2174 + $0x2d8] sm:$0xff]
    %v2589 = vld [vmem:[%s2174 + $0x2e0] sm:$0xff]
    %v2590 = vld [vmem:[%s2174 + $0x2e8] sm:$0xff]
    %v2591 = vld [vmem:[%s2174 + $0x2f0] sm:$0xff]
    %v2592 = vld [vmem:[%s2174 + $0x2f8] sm:$0xff]
    %2593 = vmatprep.subr.mxu0 %v2562
    %2594 = vmatpush1.msra.mxu0 %v2561
    %2595 = vmatprep.subr.mxu0 %v2564
    %2596 = vmatpush1.msra.mxu0 %v2563
    %2597 = vmatprep.subr.mxu0 %v2566
    %2598 = vmatpush1.msra.mxu0 %v2565
    %2599 = vmatprep.subr.mxu0 %v2568
    %2600 = vmatpush1.msra.mxu0 %v2567
    %2601 = vmatprep.subr.mxu0 %v2570
    %2602 = vmatpush1.msra.mxu0 %v2569
    %2603 = vmatprep.subr.mxu0 %v2572
    %2604 = vmatpush1.msra.mxu0 %v2571
    %2605 = vmatprep.subr.mxu0 %v2574
    %2606 = vmatpush1.msra.mxu0 %v2573
    %2607 = vmatprep.subr.mxu0 %v2576
    %2608 = vmatpush1.msra.mxu0 %v2575
    %2609 = vmatprep.subr.mxu0 %v2578
    %2610 = vmatpush1.msra.mxu0 %v2577
    %2611 = vmatprep.subr.mxu0 %v2580
    %2612 = vmatpush1.msra.mxu0 %v2579
    %2613 = vmatprep.subr.mxu0 %v2582
    %2614 = vmatpush1.msra.mxu0 %v2581
    %2615 = vmatprep.subr.mxu0 %v2584
    %2616 = vmatpush1.msra.mxu0 %v2583
    %2617 = vmatprep.subr.mxu0 %v2586
    %2618 = vmatpush1.msra.mxu0 %v2585
    %2619 = vmatprep.subr.mxu0 %v2588
    %2620 = vmatpush1.msra.mxu0 %v2587
    %2621 = vmatprep.subr.mxu0 %v2590
    %2622 = vmatpush1.msra.mxu0 %v2589
    %2623 = vmatprep.subr.mxu0 %v2592
    %2624 = vmatpush1.msra.mxu0 %v2591
    %2625 = vmatprep.subr.mxu0 0.0
    %2626 = vmatpush1.msra.mxu0 0.0
    %2627 = vmatprep.subr.mxu0 0.0
    %2628 = vmatpush1.msra.mxu0 0.0
    %2629 = vmatprep.subr.mxu0 0.0
    %2630 = vmatpush1.msra.mxu0 0.0
    %2631 = vmatprep.subr.mxu0 0.0
    %2632 = vmatpush1.msra.mxu0 0.0
    %2633 = vmatprep.subr.mxu0 0.0
    %2634 = vmatpush1.msra.mxu0 0.0
    %2635 = vmatprep.subr.mxu0 0.0
    %2636 = vmatpush1.msra.mxu0 0.0
    %2637 = vmatprep.subr.mxu0 0.0
    %2638 = vmatpush1.msra.mxu0 0.0
    %2639 = vmatprep.subr.mxu0 0.0
    %2640 = vmatpush1.msra.mxu0 0.0
    %2641 = vmatprep.subr.mxu0 0.0
    %2642 = vmatpush1.msra.mxu0 0.0
    %2643 = vmatprep.subr.mxu0 0.0
    %2644 = vmatpush1.msra.mxu0 0.0
    %2645 = vmatprep.subr.mxu0 0.0
    %2646 = vmatpush1.msra.mxu0 0.0
    %2647 = vmatprep.subr.mxu0 0.0
    %2648 = vmatpush1.msra.mxu0 0.0
    %2649 = vmatprep.subr.mxu0 0.0
    %2650 = vmatpush1.msra.mxu0 0.0
    %2651 = vmatprep.subr.mxu0 0.0
    %2652 = vmatpush1.msra.mxu0 0.0
    %2653 = vmatprep.subr.mxu0 0.0
    %2654 = vmatpush1.msra.mxu0 0.0
    %2655 = vmatprep.subr.mxu0 0.0
    %2656 = vmatpush1.msra.mxu0 0.0
    %2657 = vmatprep.mubr.f32.mxu0 0.0
    %2658 = vmatmul.mubr.f32.gmra.mrb[0].mxu0 %v466
    %v2659 = vpop.f32.mrb[0].mxu0
    %v2660 = vadd.f32 0.0, %v2659
    %v2661 = vpop.f32.mrb[0].mxu0
    %v2662 = vadd.f32 0.0, %v2661
    %2663 = vmatprep.mubr.f32.mxu0 0.0
    %2664 = vmatmul.mubr.f32.gmra.mrb[0].mxu0 %v467
    %v2665 = vpop.f32.mrb[0].mxu0
    %v2666 = vadd.f32 0.0, %v2665
    %v2667 = vpop.f32.mrb[0].mxu0
    %v2668 = vadd.f32 0.0, %v2667
    %2669 = vmatprep.mubr.f32.mxu0 0.0
    %2670 = vmatmul.mubr.f32.gmra.mrb[0].mxu0 %v468
    %v2671 = vpop.f32.mrb[0].mxu0
    %v2672 = vadd.f32 0.0, %v2671
    %v2673 = vpop.f32.mrb[0].mxu0
    %v2674 = vadd.f32 0.0, %v2673
    %2675 = vmatprep.mubr.f32.mxu0 0.0
    %2676 = vmatmul.mubr.f32.gmra.mrb[0].mxu0 %v469
    %v2677 = vpop.f32.mrb[0].mxu0
    %v2678 = vadd.f32 0.0, %v2677
    %v2679 = vpop.f32.mrb[0].mxu0
    %v2680 = vadd.f32 0.0, %v2679
    %2681 = vmatprep.mubr.f32.mxu0 0.0
    %2682 = vmatmul.mubr.f32.gmra.mrb[0].mxu0 %v470
    %v2683 = vpop.f32.mrb[0].mxu0
    %v2684 = vadd.f32 0.0, %v2683
    %v2685 = vpop.f32.mrb[0].mxu0
    %v2686 = vadd.f32 0.0, %v2685
    %2687 = vmatprep.mubr.f32.mxu0 0.0
    %2688 = vmatmul.mubr.f32.gmra.mrb[0].mxu0 %v471
    %v2689 = vpop.f32.mrb[0].mxu0
    %v2690 = vadd.f32 0.0, %v2689
    %v2691 = vpop.f32.mrb[0].mxu0
    %v2692 = vadd.f32 0.0, %v2691
    %2693 = vmatprep.mubr.f32.mxu0 0.0
    %2694 = vmatmul.mubr.f32.gmra.mrb[0].mxu0 %v472
    %v2695 = vpop.f32.mrb[0].mxu0
    %v2696 = vadd.f32 0.0, %v2695
    %v2697 = vpop.f32.mrb[0].mxu0
    %v2698 = vadd.f32 0.0, %v2697
    %2699 = vmatprep.mubr.f32.mxu0 0.0
    %2700 = vmatmul.mubr.f32.gmra.mrb[0].mxu0 %v473
    %v2701 = vpop.f32.mrb[0].mxu0
    %v2702 = vadd.f32 0.0, %v2701
    %v2703 = vpop.f32.mrb[0].mxu0
    %v2704 = vadd.f32 0.0, %v2703
    %2705 = vmatprep.mubr.f32.mxu0 0.0
    %2706 = vmatmul.mubr.f32.gmra.mrb[0].mxu0 %v474
    %v2707 = vpop.f32.mrb[0].mxu0
    %v2708 = vadd.f32 0.0, %v2707
    %v2709 = vpop.f32.mrb[0].mxu0
    %v2710 = vadd.f32 0.0, %v2709
    %2711 = vmatprep.mubr.f32.mxu0 0.0
    %2712 = vmatmul.mubr.f32.gmra.mrb[0].mxu0 %v475
    %v2713 = vpop.f32.mrb[0].mxu0
    %v2714 = vadd.f32 0.0, %v2713
    %v2715 = vpop.f32.mrb[0].mxu0
    %v2716 = vadd.f32 0.0, %v2715
    %2717 = vmatprep.mubr.f32.mxu0 0.0
    %2718 = vmatmul.mubr.f32.gmra.mrb[0].mxu0 %v476
    %v2719 = vpop.f32.mrb[0].mxu0
    %v2720 = vadd.f32 0.0, %v2719
    %v2721 = vpop.f32.mrb[0].mxu0
    %v2722 = vadd.f32 0.0, %v2721
    %2723 = vmatprep.mubr.f32.mxu0 0.0
    %2724 = vmatmul.mubr.f32.gmra.mrb[0].mxu0 %v477
    %v2725 = vpop.f32.mrb[0].mxu0
    %v2726 = vadd.f32 0.0, %v2725
    %v2727 = vpop.f32.mrb[0].mxu0
    %v2728 = vadd.f32 0.0, %v2727
    %2729 = vmatprep.mubr.f32.mxu0 0.0
    %2730 = vmatmul.mubr.f32.gmra.mrb[0].mxu0 %v478
    %v2731 = vpop.f32.mrb[0].mxu0
    %v2732 = vadd.f32 0.0, %v2731
    %v2733 = vpop.f32.mrb[0].mxu0
    %v2734 = vadd.f32 0.0, %v2733
    %2735 = vmatprep.mubr.f32.mxu0 0.0
    %2736 = vmatmul.mubr.f32.gmra.mrb[0].mxu0 %v479
    %v2737 = vpop.f32.mrb[0].mxu0
    %v2738 = vadd.f32 0.0, %v2737
    %v2739 = vpop.f32.mrb[0].mxu0
    %v2740 = vadd.f32 0.0, %v2739
    %2741 = vmatprep.mubr.f32.mxu0 0.0
    %2742 = vmatmul.mubr.f32.gmra.mrb[0].mxu0 %v480
    %v2743 = vpop.f32.mrb[0].mxu0
    %v2744 = vadd.f32 0.0, %v2743
    %v2745 = vpop.f32.mrb[0].mxu0
    %v2746 = vadd.f32 0.0, %v2745
    %2747 = vmatprep.mubr.f32.mxu0 0.0
    %2748 = vmatmul.mubr.f32.gmra.mrb[0].mxu0 %v481
    %v2749 = vpop.f32.mrb[0].mxu0
    %v2750 = vadd.f32 0.0, %v2749
    %v2751 = vpop.f32.mrb[0].mxu0
    %v2752 = vadd.f32 0.0, %v2751
    %2753 = vdwg.mxu0
    %v2754 = vadd.f32 %v2467, %v2660
    %v2755 = vadd.f32 %v2469, %v2662
    %v2756 = vadd.f32 %v2473, %v2666
    %v2757 = vadd.f32 %v2475, %v2668
    %v2758 = vadd.f32 %v2479, %v2672
    %v2759 = vadd.f32 %v2481, %v2674
    %v2760 = vadd.f32 %v2485, %v2678
    %v2761 = vadd.f32 %v2487, %v2680
    %v2762 = vadd.f32 %v2491, %v2684
    %v2763 = vadd.f32 %v2493, %v2686
    %v2764 = vadd.f32 %v2497, %v2690
    %v2765 = vadd.f32 %v2499, %v2692
    %v2766 = vadd.f32 %v2503, %v2696
    %v2767 = vadd.f32 %v2505, %v2698
    %v2768 = vadd.f32 %v2509, %v2702
    %v2769 = vadd.f32 %v2511, %v2704
    %v2770 = vadd.f32 %v2515, %v2708
    %v2771 = vadd.f32 %v2517, %v2710
    %v2772 = vadd.f32 %v2521, %v2714
    %v2773 = vadd.f32 %v2523, %v2716
    %v2774 = vadd.f32 %v2527, %v2720
    %v2775 = vadd.f32 %v2529, %v2722
    %v2776 = vadd.f32 %v2533, %v2726
    %v2777 = vadd.f32 %v2535, %v2728
    %v2778 = vadd.f32 %v2539, %v2732
    %v2779 = vadd.f32 %v2541, %v2734
    %v2780 = vadd.f32 %v2545, %v2738
    %v2781 = vadd.f32 %v2547, %v2740
    %v2782 = vadd.f32 %v2551, %v2744
    %v2783 = vadd.f32 %v2553, %v2746
    %v2784 = vadd.f32 %v2557, %v2750
    %v2785 = vadd.f32 %v2559, %v2752
    %v2786 = vld [vmem:[%s9 + $0x6] sm:$0x1]
    %v2787 = vlaneseq
    %v2788 = vshrl.u32 %v2787, 7
    %v2789 = vsub.s32 0, %v2788
    %v2790 = vrot.slane %v2786, %v2789
    %v2791 = vadd.f32 %v2754, %v2790
    %v2792 = vadd.f32 %v2756, %v2790
    %v2793 = vadd.f32 %v2758, %v2790
    %v2794 = vadd.f32 %v2760, %v2790
    %v2795 = vadd.f32 %v2762, %v2790
    %v2796 = vadd.f32 %v2764, %v2790
    %v2797 = vadd.f32 %v2766, %v2790
    %v2798 = vadd.f32 %v2768, %v2790
    %v2799 = vadd.f32 %v2770, %v2790
    %v2800 = vadd.f32 %v2772, %v2790
    %v2801 = vadd.f32 %v2774, %v2790
    %v2802 = vadd.f32 %v2776, %v2790
    %v2803 = vadd.f32 %v2778, %v2790
    %v2804 = vadd.f32 %v2780, %v2790
    %v2805 = vadd.f32 %v2782, %v2790
    %v2806 = vadd.f32 %v2784, %v2790
    %v2807 = vld [vmem:[%s9 + $0x7] sm:$0x1]
    %v2808 = vlaneseq
    %v2809 = vshrl.u32 %v2808, 7
    %v2810 = vsub.s32 0, %v2809
    %v2811 = vrot.slane %v2807, %v2810
    %v2812 = vadd.f32 %v2755, %v2811
    %v2813 = vadd.f32 %v2757, %v2811
    %v2814 = vadd.f32 %v2759, %v2811
    %v2815 = vadd.f32 %v2761, %v2811
    %v2816 = vadd.f32 %v2763, %v2811
    %v2817 = vadd.f32 %v2765, %v2811
    %v2818 = vadd.f32 %v2767, %v2811
    %v2819 = vadd.f32 %v2769, %v2811
    %v2820 = vadd.f32 %v2771, %v2811
    %v2821 = vadd.f32 %v2773, %v2811
    %v2822 = vadd.f32 %v2775, %v2811
    %v2823 = vadd.f32 %v2777, %v2811
    %v2824 = vadd.f32 %v2779, %v2811
    %v2825 = vadd.f32 %v2781, %v2811
    %v2826 = vadd.f32 %v2783, %v2811
    %v2827 = vadd.f32 %v2785, %v2811
    %v2828 = vsub.f32 0.0, %v2791
    %v2829 = vsub.f32 0.0, %v2792
    %v2830 = vsub.f32 0.0, %v2793
    %v2831 = vsub.f32 0.0, %v2794
    %v2832 = vsub.f32 0.0, %v2795
    %v2833 = vsub.f32 0.0, %v2796
    %v2834 = vsub.f32 0.0, %v2797
    %v2835 = vsub.f32 0.0, %v2798
    %v2836 = vsub.f32 0.0, %v2799
    %v2837 = vsub.f32 0.0, %v2800
    %v2838 = vsub.f32 0.0, %v2801
    %v2839 = vsub.f32 0.0, %v2802
    %v2840 = vsub.f32 0.0, %v2803
    %v2841 = vsub.f32 0.0, %v2804
    %v2842 = vsub.f32 0.0, %v2805
    %v2843 = vsub.f32 0.0, %v2806
    %v2844 = vmul.f32 %v2828, 1.442695
    %v2845 = vpow.pop %v2844
    %v2846 = vmul.f32 %v2829, 1.442695
    %v2847 = vpow.pop %v2846
    %v2848 = vmul.f32 %v2830, 1.442695
    %v2849 = vpow.pop %v2848
    %v2850 = vmul.f32 %v2831, 1.442695
    %v2851 = vpow.pop %v2850
    %v2852 = vmul.f32 %v2832, 1.442695
    %v2853 = vpow.pop %v2852
    %v2854 = vmul.f32 %v2833, 1.442695
    %v2855 = vpow.pop %v2854
    %v2856 = vmul.f32 %v2834, 1.442695
    %v2857 = vpow.pop %v2856
    %v2858 = vmul.f32 %v2835, 1.442695
    %v2859 = vpow.pop %v2858
    %v2860 = vmul.f32 %v2836, 1.442695
    %v2861 = vpow.pop %v2860
    %v2862 = vmul.f32 %v2837, 1.442695
    %v2863 = vpow.pop %v2862
    %v2864 = vmul.f32 %v2838, 1.442695
    %v2865 = vpow.pop %v2864
    %v2866 = vmul.f32 %v2839, 1.442695
    %v2867 = vpow.pop %v2866
    %v2868 = vmul.f32 %v2840, 1.442695
    %v2869 = vpow.pop %v2868
    %v2870 = vmul.f32 %v2841, 1.442695
    %v2871 = vpow.pop %v2870
    %v2872 = vmul.f32 %v2842, 1.442695
    %v2873 = vpow.pop %v2872
    %v2874 = vmul.f32 %v2843, 1.442695
    %v2875 = vpow.pop %v2874
    %v2876 = vadd.f32 %v2845, 1.0
    %v2877 = vadd.f32 %v2847, 1.0
    %v2878 = vadd.f32 %v2849, 1.0
    %v2879 = vadd.f32 %v2851, 1.0
    %v2880 = vadd.f32 %v2853, 1.0
    %v2881 = vadd.f32 %v2855, 1.0
    %v2882 = vadd.f32 %v2857, 1.0
    %v2883 = vadd.f32 %v2859, 1.0
    %v2884 = vadd.f32 %v2861, 1.0
    %v2885 = vadd.f32 %v2863, 1.0
    %v2886 = vadd.f32 %v2865, 1.0
    %v2887 = vadd.f32 %v2867, 1.0
    %v2888 = vadd.f32 %v2869, 1.0
    %v2889 = vadd.f32 %v2871, 1.0
    %v2890 = vadd.f32 %v2873, 1.0
    %v2891 = vadd.f32 %v2875, 1.0
    %v2892 = vrcp.pop %v2876
    %v2893 = vmul.f32 1.0, %v2892
    %v2894 = vrcp.pop %v2877
    %v2895 = vmul.f32 1.0, %v2894
    %v2896 = vrcp.pop %v2878
    %v2897 = vmul.f32 1.0, %v2896
    %v2898 = vrcp.pop %v2879
    %v2899 = vmul.f32 1.0, %v2898
    %v2900 = vrcp.pop %v2880
    %v2901 = vmul.f32 1.0, %v2900
    %v2902 = vrcp.pop %v2881
    %v2903 = vmul.f32 1.0, %v2902
    %v2904 = vrcp.pop %v2882
    %v2905 = vmul.f32 1.0, %v2904
    %v2906 = vrcp.pop %v2883
    %v2907 = vmul.f32 1.0, %v2906
    %v2908 = vrcp.pop %v2884
    %v2909 = vmul.f32 1.0, %v2908
    %v2910 = vrcp.pop %v2885
    %v2911 = vmul.f32 1.0, %v2910
    %v2912 = vrcp.pop %v2886
    %v2913 = vmul.f32 1.0, %v2912
    %v2914 = vrcp.pop %v2887
    %v2915 = vmul.f32 1.0, %v2914
    %v2916 = vrcp.pop %v2888
    %v2917 = vmul.f32 1.0, %v2916
    %v2918 = vrcp.pop %v2889
    %v2919 = vmul.f32 1.0, %v2918
    %v2920 = vrcp.pop %v2890
    %v2921 = vmul.f32 1.0, %v2920
    %v2922 = vrcp.pop %v2891
    %v2923 = vmul.f32 1.0, %v2922
    %v2924 = vmax.f32 %v2812, 0.0
    %v2925 = vmax.f32 %v2813, 0.0
    %v2926 = vmax.f32 %v2814, 0.0
    %v2927 = vmax.f32 %v2815, 0.0
    %v2928 = vmax.f32 %v2816, 0.0
    %v2929 = vmax.f32 %v2817, 0.0
    %v2930 = vmax.f32 %v2818, 0.0
    %v2931 = vmax.f32 %v2819, 0.0
    %v2932 = vmax.f32 %v2820, 0.0
    %v2933 = vmax.f32 %v2821, 0.0
    %v2934 = vmax.f32 %v2822, 0.0
    %v2935 = vmax.f32 %v2823, 0.0
    %v2936 = vmax.f32 %v2824, 0.0
    %v2937 = vmax.f32 %v2825, 0.0
    %v2938 = vmax.f32 %v2826, 0.0
    %v2939 = vmax.f32 %v2827, 0.0
    %v2940 = vand.u32 2147483647, %v2812
    %v2941 = vand.u32 2147483647, %v2813
    %v2942 = vand.u32 2147483647, %v2814
    %v2943 = vand.u32 2147483647, %v2815
    %v2944 = vand.u32 2147483647, %v2816
    %v2945 = vand.u32 2147483647, %v2817
    %v2946 = vand.u32 2147483647, %v2818
    %v2947 = vand.u32 2147483647, %v2819
    %v2948 = vand.u32 2147483647, %v2820
    %v2949 = vand.u32 2147483647, %v2821
    %v2950 = vand.u32 2147483647, %v2822
    %v2951 = vand.u32 2147483647, %v2823
    %v2952 = vand.u32 2147483647, %v2824
    %v2953 = vand.u32 2147483647, %v2825
    %v2954 = vand.u32 2147483647, %v2826
    %v2955 = vand.u32 2147483647, %v2827
    %v2956 = vsub.f32 0.0, %v2940
    %v2957 = vsub.f32 0.0, %v2941
    %v2958 = vsub.f32 0.0, %v2942
    %v2959 = vsub.f32 0.0, %v2943
    %v2960 = vsub.f32 0.0, %v2944
    %v2961 = vsub.f32 0.0, %v2945
    %v2962 = vsub.f32 0.0, %v2946
    %v2963 = vsub.f32 0.0, %v2947
    %v2964 = vsub.f32 0.0, %v2948
    %v2965 = vsub.f32 0.0, %v2949
    %v2966 = vsub.f32 0.0, %v2950
    %v2967 = vsub.f32 0.0, %v2951
    %v2968 = vsub.f32 0.0, %v2952
    %v2969 = vsub.f32 0.0, %v2953
    %v2970 = vsub.f32 0.0, %v2954
    %v2971 = vsub.f32 0.0, %v2955
    %v2972 = vmul.f32 %v2956, 1.442695
    %v2973 = vpow.pop %v2972
    %v2974 = vmul.f32 %v2957, 1.442695
    %v2975 = vpow.pop %v2974
    %v2976 = vmul.f32 %v2958, 1.442695
    %v2977 = vpow.pop %v2976
    %v2978 = vmul.f32 %v2959, 1.442695
    %v2979 = vpow.pop %v2978
    %v2980 = vmul.f32 %v2960, 1.442695
    %v2981 = vpow.pop %v2980
    %v2982 = vmul.f32 %v2961, 1.442695
    %v2983 = vpow.pop %v2982
    %v2984 = vmul.f32 %v2962, 1.442695
    %v2985 = vpow.pop %v2984
    %v2986 = vmul.f32 %v2963, 1.442695
    %v2987 = vpow.pop %v2986
    %v2988 = vmul.f32 %v2964, 1.442695
    %v2989 = vpow.pop %v2988
    %v2990 = vmul.f32 %v2965, 1.442695
    %v2991 = vpow.pop %v2990
    %v2992 = vmul.f32 %v2966, 1.442695
    %v2993 = vpow.pop %v2992
    %v2994 = vmul.f32 %v2967, 1.442695
    %v2995 = vpow.pop %v2994
    %v2996 = vmul.f32 %v2968, 1.442695
    %v2997 = vpow.pop %v2996
    %v2998 = vmul.f32 %v2969, 1.442695
    %v2999 = vpow.pop %v2998
    %v3000 = vmul.f32 %v2970, 1.442695
    %v3001 = vpow.pop %v3000
    %v3002 = vmul.f32 %v2971, 1.442695
    %v3003 = vpow.pop %v3002
    %v3004 = vadd.f32 %v2973, 1.0
    %v3005 = vadd.f32 %v2975, 1.0
    %v3006 = vadd.f32 %v2977, 1.0
    %v3007 = vadd.f32 %v2979, 1.0
    %v3008 = vadd.f32 %v2981, 1.0
    %v3009 = vadd.f32 %v2983, 1.0
    %v3010 = vadd.f32 %v2985, 1.0
    %v3011 = vadd.f32 %v2987, 1.0
    %v3012 = vadd.f32 %v2989, 1.0
    %v3013 = vadd.f32 %v2991, 1.0
    %v3014 = vadd.f32 %v2993, 1.0
    %v3015 = vadd.f32 %v2995, 1.0
    %v3016 = vadd.f32 %v2997, 1.0
    %v3017 = vadd.f32 %v2999, 1.0
    %v3018 = vadd.f32 %v3001, 1.0
    %v3019 = vadd.f32 %v3003, 1.0
    %v3020 = vlog2.pop %v3004
    %v3021 = vmul.f32 %v3020, 0.6931472
    %v3022 = vlog2.pop %v3005
    %v3023 = vmul.f32 %v3022, 0.6931472
    %v3024 = vlog2.pop %v3006
    %v3025 = vmul.f32 %v3024, 0.6931472
    %v3026 = vlog2.pop %v3007
    %v3027 = vmul.f32 %v3026, 0.6931472
    %v3028 = vlog2.pop %v3008
    %v3029 = vmul.f32 %v3028, 0.6931472
    %v3030 = vlog2.pop %v3009
    %v3031 = vmul.f32 %v3030, 0.6931472
    %v3032 = vlog2.pop %v3010
    %v3033 = vmul.f32 %v3032, 0.6931472
    %v3034 = vlog2.pop %v3011
    %v3035 = vmul.f32 %v3034, 0.6931472
    %v3036 = vlog2.pop %v3012
    %v3037 = vmul.f32 %v3036, 0.6931472
    %v3038 = vlog2.pop %v3013
    %v3039 = vmul.f32 %v3038, 0.6931472
    %v3040 = vlog2.pop %v3014
    %v3041 = vmul.f32 %v3040, 0.6931472
    %v3042 = vlog2.pop %v3015
    %v3043 = vmul.f32 %v3042, 0.6931472
    %v3044 = vlog2.pop %v3016
    %v3045 = vmul.f32 %v3044, 0.6931472
    %v3046 = vlog2.pop %v3017
    %v3047 = vmul.f32 %v3046, 0.6931472
    %v3048 = vlog2.pop %v3018
    %v3049 = vmul.f32 %v3048, 0.6931472
    %v3050 = vlog2.pop %v3019
    %v3051 = vmul.f32 %v3050, 0.6931472
    %v3052 = vadd.f32 %v2924, %v3021
    %v3053 = vadd.f32 %v2925, %v3023
    %v3054 = vadd.f32 %v2926, %v3025
    %v3055 = vadd.f32 %v2927, %v3027
    %v3056 = vadd.f32 %v2928, %v3029
    %v3057 = vadd.f32 %v2929, %v3031
    %v3058 = vadd.f32 %v2930, %v3033
    %v3059 = vadd.f32 %v2931, %v3035
    %v3060 = vadd.f32 %v2932, %v3037
    %v3061 = vadd.f32 %v2933, %v3039
    %v3062 = vadd.f32 %v2934, %v3041
    %v3063 = vadd.f32 %v2935, %v3043
    %v3064 = vadd.f32 %v2936, %v3045
    %v3065 = vadd.f32 %v2937, %v3047
    %v3066 = vadd.f32 %v2938, %v3049
    %v3067 = vadd.f32 %v2939, %v3051
    %v3068 = vmul.f32 %v2893, %v3052
    %v3069 = vmul.f32 %v2895, %v3053
    %v3070 = vmul.f32 %v2897, %v3054
    %v3071 = vmul.f32 %v2899, %v3055
    %v3072 = vmul.f32 %v2901, %v3056
    %v3073 = vmul.f32 %v2903, %v3057
    %v3074 = vmul.f32 %v2905, %v3058
    %v3075 = vmul.f32 %v2907, %v3059
    %v3076 = vmul.f32 %v2909, %v3060
    %v3077 = vmul.f32 %v2911, %v3061
    %v3078 = vmul.f32 %v2913, %v3062
    %v3079 = vmul.f32 %v2915, %v3063
    %v3080 = vmul.f32 %v2917, %v3064
    %v3081 = vmul.f32 %v2919, %v3065
    %v3082 = vmul.f32 %v2921, %v3066
    %v3083 = vmul.f32 %v2923, %v3067
    %3084 = vmatprep.subr.mxu0 0.0
    %3085 = vmatpush1.msra.mxu0 %v3068
    %3086 = vmatprep.subr.mxu0 0.0
    %3087 = vmatpush1.msra.mxu0 %v3069
    %3088 = vmatprep.subr.mxu0 0.0
    %3089 = vmatpush1.msra.mxu0 %v3070
    %3090 = vmatprep.subr.mxu0 0.0
    %3091 = vmatpush1.msra.mxu0 %v3071
    %3092 = vmatprep.subr.mxu0 0.0
    %3093 = vmatpush1.msra.mxu0 %v3072
    %3094 = vmatprep.subr.mxu0 0.0
    %3095 = vmatpush1.msra.mxu0 %v3073
    %3096 = vmatprep.subr.mxu0 0.0
    %3097 = vmatpush1.msra.mxu0 %v3074
    %3098 = vmatprep.subr.mxu0 0.0
    %3099 = vmatpush1.msra.mxu0 %v3075
    %3100 = vmatprep.subr.mxu0 0.0
    %3101 = vmatpush1.msra.mxu0 %v3076
    %3102 = vmatprep.subr.mxu0 0.0
    %3103 = vmatpush1.msra.mxu0 %v3077
    %3104 = vmatprep.subr.mxu0 0.0
    %3105 = vmatpush1.msra.mxu0 %v3078
    %3106 = vmatprep.subr.mxu0 0.0
    %3107 = vmatpush1.msra.mxu0 %v3079
    %3108 = vmatprep.subr.mxu0 0.0
    %3109 = vmatpush1.msra.mxu0 %v3080
    %3110 = vmatprep.subr.mxu0 0.0
    %3111 = vmatpush1.msra.mxu0 %v3081
    %3112 = vmatprep.subr.mxu0 0.0
    %3113 = vmatpush1.msra.mxu0 %v3082
    %3114 = vmatprep.subr.mxu0 0.0
    %3115 = vmatpush1.msra.mxu0 %v3083
    %3116 = vmatprep.subr.mxu0 0.0
    %3117 = vmatpush1.msra.mxu0 0.0
    %3118 = vmatprep.subr.mxu0 0.0
    %3119 = vmatpush1.msra.mxu0 0.0
    %3120 = vmatprep.subr.mxu0 0.0
    %3121 = vmatpush1.msra.mxu0 0.0
    %3122 = vmatprep.subr.mxu0 0.0
    %3123 = vmatpush1.msra.mxu0 0.0
    %3124 = vmatprep.subr.mxu0 0.0
    %3125 = vmatpush1.msra.mxu0 0.0
    %3126 = vmatprep.subr.mxu0 0.0
    %3127 = vmatpush1.msra.mxu0 0.0
    %3128 = vmatprep.subr.mxu0 0.0
    %3129 = vmatpush1.msra.mxu0 0.0
    %3130 = vmatprep.subr.mxu0 0.0
    %3131 = vmatpush1.msra.mxu0 0.0
    %3132 = vmatprep.subr.mxu0 0.0
    %3133 = vmatpush1.msra.mxu0 0.0
    %3134 = vmatprep.subr.mxu0 0.0
    %3135 = vmatpush1.msra.mxu0 0.0
    %3136 = vmatprep.subr.mxu0 0.0
    %3137 = vmatpush1.msra.mxu0 0.0
    %3138 = vmatprep.subr.mxu0 0.0
    %3139 = vmatpush1.msra.mxu0 0.0
    %3140 = vmatprep.subr.mxu0 0.0
    %3141 = vmatpush1.msra.mxu0 0.0
    %3142 = vmatprep.subr.mxu0 0.0
    %3143 = vmatpush1.msra.mxu0 0.0
    %3144 = vmatprep.subr.mxu0 0.0
    %3145 = vmatpush1.msra.mxu0 0.0
    %3146 = vmatprep.subr.mxu0 0.0
    %3147 = vmatpush1.msra.mxu0 0.0
    %3148 = vmatprep.mubr.f32.mxu0 0.0
    %3149 = vmatmul.mubr.f32.gmra.mrb[0].mxu0 %v1745
    %v3150 = vpop.f32.mrb[0].mxu0
    %v3151 = vadd.f32 0.0, %v3150
    %v3152 = vpop.f32.mrb[0].mxu0
    %3153 = vmatprep.mubr.f32.mxu0 0.0
    %3154 = vmatmul.mubr.f32.gmra.mrb[0].mxu0 %v1746
    %v3155 = vpop.f32.mrb[0].mxu0
    %v3156 = vadd.f32 0.0, %v3155
    %v3157 = vpop.f32.mrb[0].mxu0
    %3158 = vmatprep.mubr.f32.mxu0 0.0
    %3159 = vmatmul.mubr.f32.gmra.mrb[0].mxu0 %v1747
    %v3160 = vpop.f32.mrb[0].mxu0
    %v3161 = vadd.f32 0.0, %v3160
    %v3162 = vpop.f32.mrb[0].mxu0
    %3163 = vmatprep.mubr.f32.mxu0 0.0
    %3164 = vmatmul.mubr.f32.gmra.mrb[0].mxu0 %v1748
    %v3165 = vpop.f32.mrb[0].mxu0
    %v3166 = vadd.f32 0.0, %v3165
    %v3167 = vpop.f32.mrb[0].mxu0
    %3168 = vmatprep.mubr.f32.mxu0 0.0
    %3169 = vmatmul.mubr.f32.gmra.mrb[0].mxu0 %v1749
    %v3170 = vpop.f32.mrb[0].mxu0
    %v3171 = vadd.f32 0.0, %v3170
    %v3172 = vpop.f32.mrb[0].mxu0
    %3173 = vmatprep.mubr.f32.mxu0 0.0
    %3174 = vmatmul.mubr.f32.gmra.mrb[0].mxu0 %v1750
    %v3175 = vpop.f32.mrb[0].mxu0
    %v3176 = vadd.f32 0.0, %v3175
    %v3177 = vpop.f32.mrb[0].mxu0
    %3178 = vmatprep.mubr.f32.mxu0 0.0
    %3179 = vmatmul.mubr.f32.gmra.mrb[0].mxu0 %v1751
    %v3180 = vpop.f32.mrb[0].mxu0
    %v3181 = vadd.f32 0.0, %v3180
    %v3182 = vpop.f32.mrb[0].mxu0
    %3183 = vmatprep.mubr.f32.mxu0 0.0
    %3184 = vmatmul.mubr.f32.gmra.mrb[0].mxu0 %v1752
    %v3185 = vpop.f32.mrb[0].mxu0
    %v3186 = vadd.f32 0.0, %v3185
    %v3187 = vpop.f32.mrb[0].mxu0
    %3188 = vdwg.mxu0
    %v3189 = vadd.f32 %v3151, %v3156
    %v3190 = vadd.f32 %v3189, %v3161
    %v3191 = vadd.f32 %v3190, %v3166
    %v3192 = vadd.f32 %v3191, %v3171
    %v3193 = vadd.f32 %v3192, %v3176
    %v3194 = vadd.f32 %v3193, %v3181
    %v3195 = vadd.f32 %v3194, %v3186
    %v3196 = vrot.slane %v3195, 4
    %v3197 = vadd.f32 %v3195, %v3196
    %v3198 = vrot.slane %v3197, 2
    %v3199 = vadd.f32 %v3197, %v3198
    %v3200 = vrot.slane %v3199, 1
    %v3201 = vadd.f32 %v3199, %v3200
    %v3202 = vmul.f32 %v3201, 0.015625
    %v3203 = vmul.f32 %v3151, %v3151
    %v3204 = vmul.f32 %v3156, %v3156
    %v3205 = vmul.f32 %v3161, %v3161
    %v3206 = vmul.f32 %v3166, %v3166
    %v3207 = vmul.f32 %v3171, %v3171
    %v3208 = vmul.f32 %v3176, %v3176
    %v3209 = vmul.f32 %v3181, %v3181
    %v3210 = vmul.f32 %v3186, %v3186
    %v3211 = vadd.f32 %v3203, %v3204
    %v3212 = vadd.f32 %v3211, %v3205
    %v3213 = vadd.f32 %v3212, %v3206
    %v3214 = vadd.f32 %v3213, %v3207
    %v3215 = vadd.f32 %v3214, %v3208
    %v3216 = vadd.f32 %v3215, %v3209
    %v3217 = vadd.f32 %v3216, %v3210
    %v3218 = vrot.slane %v3217, 4
    %v3219 = vadd.f32 %v3217, %v3218
    %v3220 = vrot.slane %v3219, 2
    %v3221 = vadd.f32 %v3219, %v3220
    %v3222 = vrot.slane %v3221, 1
    %v3223 = vadd.f32 %v3221, %v3222
    %v3224 = vmul.f32 %v3223, 0.015625
    %v3225 = vmul.f32 %v3202, %v3202
    %v3226 = vsub.f32 %v3224, %v3225
    %v3227 = vmax.f32 %v3226, 0.0
    %v3228 = vld [vmem:[%s9 + $0x8] sm:$0x1]
    %v3229 = vsub.f32 %v3151, %v3202
    %v3230 = vsub.f32 %v3156, %v3202
    %v3231 = vsub.f32 %v3161, %v3202
    %v3232 = vsub.f32 %v3166, %v3202
    %v3233 = vsub.f32 %v3171, %v3202
    %v3234 = vsub.f32 %v3176, %v3202
    %v3235 = vsub.f32 %v3181, %v3202
    %v3236 = vsub.f32 %v3186, %v3202
    %v3237 = vlaneseq
    %v3238 = vshrl.u32 %v3237, 7
    %v3239 = vsub.s32 0, %v3238
    %v3240 = vrot.slane %v3228, %v3239
    %v3241 = vmul.f32 %v3240, %v3229
    %v3242 = vmul.f32 %v3240, %v3230
    %v3243 = vmul.f32 %v3240, %v3231
    %v3244 = vmul.f32 %v3240, %v3232
    %v3245 = vmul.f32 %v3240, %v3233
    %v3246 = vmul.f32 %v3240, %v3234
    %v3247 = vmul.f32 %v3240, %v3235
    %v3248 = vmul.f32 %v3240, %v3236
    %v3249 = vadd.f32 %v3227, 1e-05
    %v3250 = vrsqrt.pop %v3249
    %v3251 = vmul.f32 %v3241, %v3250
    %v3252 = vmul.f32 %v3242, %v3250
    %v3253 = vmul.f32 %v3243, %v3250
    %v3254 = vmul.f32 %v3244, %v3250
    %v3255 = vmul.f32 %v3245, %v3250
    %v3256 = vmul.f32 %v3246, %v3250
    %v3257 = vmul.f32 %v3247, %v3250
    %v3258 = vmul.f32 %v3248, %v3250
    %v3259 = vld [vmem:[%s9 + $0x9] sm:$0x1]
    %v3260 = vlaneseq
    %v3261 = vshrl.u32 %v3260, 7
    %v3262 = vsub.s32 0, %v3261
    %v3263 = vrot.slane %v3259, %v3262
    %v3264 = vadd.f32 %v3251, %v3263
    %v3265 = vadd.f32 %v3252, %v3263
    %v3266 = vadd.f32 %v3253, %v3263
    %v3267 = vadd.f32 %v3254, %v3263
    %v3268 = vadd.f32 %v3255, %v3263
    %v3269 = vadd.f32 %v3256, %v3263
    %v3270 = vadd.f32 %v3257, %v3263
    %v3271 = vadd.f32 %v3258, %v3263
    %v3272 = vadd.f32 %v3264, %v1941
    %v3273 = vadd.f32 %v3265, %v1942
    %v3274 = vadd.f32 %v3266, %v1943
    %v3275 = vadd.f32 %v3267, %v1944
    %v3276 = vadd.f32 %v3268, %v1945
    %v3277 = vadd.f32 %v3269, %v1946
    %v3278 = vadd.f32 %v3270, %v1947
    %v3279 = vadd.f32 %v3271, %v1948
    %v3280 = vld [vmem:[%s8] sm:$0xff]
    %v3281 = vld [vmem:[%s8 + $0x8] sm:$0xff]
    %v3282 = vld [vmem:[%s8 + $0x10] sm:$0xff]
    %v3283 = vld [vmem:[%s8 + $0x18] sm:$0xff]
    %v3284 = vld [vmem:[%s8 + $0x20] sm:$0xff]
    %v3285 = vld [vmem:[%s8 + $0x28] sm:$0xff]
    %v3286 = vld [vmem:[%s8 + $0x30] sm:$0xff]
    %v3287 = vld [vmem:[%s8 + $0x38] sm:$0xff]
    %v3288 = vld [vmem:[%s8 + $0x40] sm:$0xff]
    %v3289 = vld [vmem:[%s8 + $0x48] sm:$0xff]
    %v3290 = vld [vmem:[%s8 + $0x50] sm:$0xff]
    %v3291 = vld [vmem:[%s8 + $0x58] sm:$0xff]
    %v3292 = vld [vmem:[%s8 + $0x60] sm:$0xff]
    %v3293 = vld [vmem:[%s8 + $0x68] sm:$0xff]
    %v3294 = vld [vmem:[%s8 + $0x70] sm:$0xff]
    %v3295 = vld [vmem:[%s8 + $0x78] sm:$0xff]
    %v3296 = vld [vmem:[%s9 + $0xa] sm:$0x1]
    %v3297 = vlaneseq
    %v3298 = vshrl.u32 %v3297, 7
    %v3299 = vsub.s32 0, %v3298
    %v3300 = vrot.slane %v3296, %v3299
    %3301 = vmatprep.subr.mxu0 0.0
    %3302 = vmatpush1.msra.mxu0 %v3280
    %3303 = vmatprep.subr.mxu0 0.0
    %3304 = vmatpush1.msra.mxu0 %v3281
    %3305 = vmatprep.subr.mxu0 0.0
    %3306 = vmatpush1.msra.mxu0 %v3282
    %3307 = vmatprep.subr.mxu0 0.0
    %3308 = vmatpush1.msra.mxu0 %v3283
    %3309 = vmatprep.subr.mxu0 0.0
    %3310 = vmatpush1.msra.mxu0 %v3284
    %3311 = vmatprep.subr.mxu0 0.0
    %3312 = vmatpush1.msra.mxu0 %v3285
    %3313 = vmatprep.subr.mxu0 0.0
    %3314 = vmatpush1.msra.mxu0 %v3286
    %3315 = vmatprep.subr.mxu0 0.0
    %3316 = vmatpush1.msra.mxu0 %v3287
    %3317 = vmatprep.subr.mxu0 0.0
    %3318 = vmatpush1.msra.mxu0 %v3288
    %3319 = vmatprep.subr.mxu0 0.0
    %3320 = vmatpush1.msra.mxu0 %v3289
    %3321 = vmatprep.subr.mxu0 0.0
    %3322 = vmatpush1.msra.mxu0 %v3290
    %3323 = vmatprep.subr.mxu0 0.0
    %3324 = vmatpush1.msra.mxu0 %v3291
    %3325 = vmatprep.subr.mxu0 0.0
    %3326 = vmatpush1.msra.mxu0 %v3292
    %3327 = vmatprep.subr.mxu0 0.0
    %3328 = vmatpush1.msra.mxu0 %v3293
    %3329 = vmatprep.subr.mxu0 0.0
    %3330 = vmatpush1.msra.mxu0 %v3294
    %3331 = vmatprep.subr.mxu0 0.0
    %3332 = vmatpush1.msra.mxu0 %v3295
    %3333 = vmatprep.subr.mxu0 0.0
    %3334 = vmatpush1.msra.mxu0 0.0
    %3335 = vmatprep.subr.mxu0 0.0
    %3336 = vmatpush1.msra.mxu0 0.0
    %3337 = vmatprep.subr.mxu0 0.0
    %3338 = vmatpush1.msra.mxu0 0.0
    %3339 = vmatprep.subr.mxu0 0.0
    %3340 = vmatpush1.msra.mxu0 0.0
    %3341 = vmatprep.subr.mxu0 0.0
    %3342 = vmatpush1.msra.mxu0 0.0
    %3343 = vmatprep.subr.mxu0 0.0
    %3344 = vmatpush1.msra.mxu0 0.0
    %3345 = vmatprep.subr.mxu0 0.0
    %3346 = vmatpush1.msra.mxu0 0.0
    %3347 = vmatprep.subr.mxu0 0.0
    %3348 = vmatpush1.msra.mxu0 0.0
    %3349 = vmatprep.subr.mxu0 0.0
    %3350 = vmatpush1.msra.mxu0 0.0
    %3351 = vmatprep.subr.mxu0 0.0
    %3352 = vmatpush1.msra.mxu0 0.0
    %3353 = vmatprep.subr.mxu0 0.0
    %3354 = vmatpush1.msra.mxu0 0.0
    %3355 = vmatprep.subr.mxu0 0.0
    %3356 = vmatpush1.msra.mxu0 0.0
    %3357 = vmatprep.subr.mxu0 0.0
    %3358 = vmatpush1.msra.mxu0 0.0
    %3359 = vmatprep.subr.mxu0 0.0
    %3360 = vmatpush1.msra.mxu0 0.0
    %3361 = vmatprep.subr.mxu0 0.0
    %3362 = vmatpush1.msra.mxu0 0.0
    %3363 = vmatprep.subr.mxu0 0.0
    %3364 = vmatpush1.msra.mxu0 0.0
    %3365 = vmatprep.mubr.f32.mxu0 0.0
    %3366 = vmatmul.mubr.f32.gmra.mrb[0].mxu0 %v3272
    %v3367 = vpop.f32.mrb[0].mxu0
    %v3368 = vadd.f32 %v3300, %v3367
    %v3369 = vpop.f32.mrb[0].mxu0
    %3370 = vmatprep.mubr.f32.mxu0 0.0
    %3371 = vmatmul.mubr.f32.gmra.mrb[0].mxu0 %v3273
    %v3372 = vpop.f32.mrb[0].mxu0
    %v3373 = vadd.f32 %v3300, %v3372
    %v3374 = vpop.f32.mrb[0].mxu0
    %3375 = vmatprep.mubr.f32.mxu0 0.0
    %3376 = vmatmul.mubr.f32.gmra.mrb[0].mxu0 %v3274
    %v3377 = vpop.f32.mrb[0].mxu0
    %v3378 = vadd.f32 %v3300, %v3377
    %v3379 = vpop.f32.mrb[0].mxu0
    %3380 = vmatprep.mubr.f32.mxu0 0.0
    %3381 = vmatmul.mubr.f32.gmra.mrb[0].mxu0 %v3275
    %v3382 = vpop.f32.mrb[0].mxu0
    %v3383 = vadd.f32 %v3300, %v3382
    %v3384 = vpop.f32.mrb[0].mxu0
    %3385 = vmatprep.mubr.f32.mxu0 0.0
    %3386 = vmatmul.mubr.f32.gmra.mrb[0].mxu0 %v3276
    %v3387 = vpop.f32.mrb[0].mxu0
    %v3388 = vadd.f32 %v3300, %v3387
    %v3389 = vpop.f32.mrb[0].mxu0
    %3390 = vmatprep.mubr.f32.mxu0 0.0
    %3391 = vmatmul.mubr.f32.gmra.mrb[0].mxu0 %v3277
    %v3392 = vpop.f32.mrb[0].mxu0
    %v3393 = vadd.f32 %v3300, %v3392
    %v3394 = vpop.f32.mrb[0].mxu0
    %3395 = vmatprep.mubr.f32.mxu0 0.0
    %3396 = vmatmul.mubr.f32.gmra.mrb[0].mxu0 %v3278
    %v3397 = vpop.f32.mrb[0].mxu0
    %v3398 = vadd.f32 %v3300, %v3397
    %v3399 = vpop.f32.mrb[0].mxu0
    %3400 = vmatprep.mubr.f32.mxu0 0.0
    %3401 = vmatmul.mubr.f32.gmra.mrb[0].mxu0 %v3279
    %v3402 = vpop.f32.mrb[0].mxu0
    %v3403 = vadd.f32 %v3300, %v3402
    %v3404 = vpop.f32.mrb[0].mxu0
    %3405 = vdwg.mxu0
    %v3406 = vld [vmem:[%s4] sm:$0xff]
    %v3407 = vld [vmem:[%s4 + $0x8] sm:$0xff]
    %v3408 = vld [vmem:[%s4 + $0x10] sm:$0xff]
    %v3409 = vld [vmem:[%s4 + $0x18] sm:$0xff]
    %v3410 = vld [vmem:[%s4 + $0x20] sm:$0xff]
    %v3411 = vld [vmem:[%s4 + $0x28] sm:$0xff]
    %v3412 = vld [vmem:[%s4 + $0x30] sm:$0xff]
    %v3413 = vld [vmem:[%s4 + $0x38] sm:$0xff]
    %vm3414 = vcmp.gt.f32.partialorder %v3406, 0.5
    %vm3415 = vcmp.gt.f32.partialorder %v3407, 0.5
    %vm3416 = vcmp.gt.f32.partialorder %v3408, 0.5
    %vm3417 = vcmp.gt.f32.partialorder %v3409, 0.5
    %vm3418 = vcmp.gt.f32.partialorder %v3410, 0.5
    %vm3419 = vcmp.gt.f32.partialorder %v3411, 0.5
    %vm3420 = vcmp.gt.f32.partialorder %v3412, 0.5
    %vm3421 = vcmp.gt.f32.partialorder %v3413, 0.5
    %3423 = vset.pattern.permute.xlu0 127
    %3424 = vperm.xlu0 %3423, %v3368
    %v3425 = vpop.permute.xlu0 %3424
    %3428 = vset.pattern.permute.xlu0 127
    %3429 = vperm.xlu0 %3428, %v3373
    %v3430 = vpop.permute.xlu0 %3429
    %3433 = vset.pattern.permute.xlu0 127
    %3434 = vperm.xlu0 %3433, %v3378
    %v3435 = vpop.permute.xlu0 %3434
    %3438 = vset.pattern.permute.xlu0 127
    %3439 = vperm.xlu0 %3438, %v3383
    %v3440 = vpop.permute.xlu0 %3439
    %3443 = vset.pattern.permute.xlu0 127
    %3444 = vperm.xlu0 %3443, %v3388
    %v3445 = vpop.permute.xlu0 %3444
    %3448 = vset.pattern.permute.xlu0 127
    %3449 = vperm.xlu0 %3448, %v3393
    %v3450 = vpop.permute.xlu0 %3449
    %3453 = vset.pattern.permute.xlu0 127
    %3454 = vperm.xlu0 %3453, %v3398
    %v3455 = vpop.permute.xlu0 %3454
    %3458 = vset.pattern.permute.xlu0 127
    %3459 = vperm.xlu0 %3458, %v3403
    %v3460 = vpop.permute.xlu0 %3459
    %v3462 = vsel %vm3414, %v3425, -1e+30
    %v3463 = vsel %vm3415, %v3430, -1e+30
    %v3464 = vsel %vm3416, %v3435, -1e+30
    %v3465 = vsel %vm3417, %v3440, -1e+30
    %v3466 = vsel %vm3418, %v3445, -1e+30
    %v3467 = vsel %vm3419, %v3450, -1e+30
    %v3468 = vsel %vm3420, %v3455, -1e+30
    %v3469 = vsel %vm3421, %v3460, -1e+30
    %vm3470 = vcmask 31744
    %v3471 = vsel %vm3470, %v3462, -inf
    %v3472 = vsel %vm3470, %v3463, -inf
    %v3473 = vsel %vm3470, %v3464, -inf
    %v3474 = vsel %vm3470, %v3465, -inf
    %v3475 = vsel %vm3470, %v3466, -inf
    %v3476 = vmax.f32 %v3471, %v3475
    %v3477 = vsel %vm3470, %v3467, -inf
    %v3478 = vmax.f32 %v3472, %v3477
    %v3479 = vsel %vm3470, %v3468, -inf
    %v3480 = vmax.f32 %v3473, %v3479
    %v3481 = vsel %vm3470, %v3469, -inf
    %v3482 = vmax.f32 %v3474, %v3481
    %v3483 = vmax.f32 %v3476, %v3478
    %v3484 = vmax.f32 %v3480, %v3482
    %v3485 = vmax.f32 %v3483, %v3484
    %v3486 = vrot.slane %v3485, 4
    %v3487 = vmax.f32 %v3485, %v3486
    %v3488 = vrot.slane %v3487, 2
    %v3489 = vmax.f32 %v3487, %v3488
    %v3490 = vrot.slane %v3489, 1
    %v3491 = vmax.f32 %v3489, %v3490
    %v3492 = vsub.f32 %v3462, %v3491
    %v3493 = vsub.f32 %v3463, %v3491
    %v3494 = vsub.f32 %v3464, %v3491
    %v3495 = vsub.f32 %v3465, %v3491
    %v3496 = vsub.f32 %v3466, %v3491
    %v3497 = vsub.f32 %v3467, %v3491
    %v3498 = vsub.f32 %v3468, %v3491
    %v3499 = vsub.f32 %v3469, %v3491
    %v3500 = vmul.f32 %v3492, 1.442695
    %v3501 = vpow.pop %v3500
    %v3502 = vmul.f32 %v3493, 1.442695
    %v3503 = vpow.pop %v3502
    %v3504 = vmul.f32 %v3494, 1.442695
    %v3505 = vpow.pop %v3504
    %v3506 = vmul.f32 %v3495, 1.442695
    %v3507 = vpow.pop %v3506
    %v3508 = vmul.f32 %v3496, 1.442695
    %v3509 = vpow.pop %v3508
    %v3510 = vmul.f32 %v3497, 1.442695
    %v3511 = vpow.pop %v3510
    %v3512 = vmul.f32 %v3498, 1.442695
    %v3513 = vpow.pop %v3512
    %v3514 = vmul.f32 %v3499, 1.442695
    %v3515 = vpow.pop %v3514
    %v3516 = vsel %vm3414, %v3501, 0.0
    %v3517 = vsel %vm3415, %v3503, 0.0
    %v3518 = vsel %vm3416, %v3505, 0.0
    %v3519 = vsel %vm3417, %v3507, 0.0
    %v3520 = vsel %vm3418, %v3509, 0.0
    %v3521 = vsel %vm3419, %v3511, 0.0
    %v3522 = vsel %vm3420, %v3513, 0.0
    %v3523 = vsel %vm3421, %v3515, 0.0
    %v3524 = vsel %vm3470, %v3516, 0.0
    %v3525 = vsel %vm3470, %v3517, 0.0
    %v3526 = vadd.f32 %v3524, %v3525
    %v3527 = vsel %vm3470, %v3518, 0.0
    %v3528 = vadd.f32 %v3526, %v3527
    %v3529 = vsel %vm3470, %v3519, 0.0
    %v3530 = vadd.f32 %v3528, %v3529
    %v3531 = vsel %vm3470, %v3520, 0.0
    %v3532 = vadd.f32 %v3530, %v3531
    %v3533 = vsel %vm3470, %v3521, 0.0
    %v3534 = vadd.f32 %v3532, %v3533
    %v3535 = vsel %vm3470, %v3522, 0.0
    %v3536 = vadd.f32 %v3534, %v3535
    %v3537 = vsel %vm3470, %v3523, 0.0
    %v3538 = vadd.f32 %v3536, %v3537
    %v3539 = vrot.slane %v3538, 4
    %v3540 = vadd.f32 %v3538, %v3539
    %v3541 = vrot.slane %v3540, 2
    %v3542 = vadd.f32 %v3540, %v3541
    %v3543 = vrot.slane %v3542, 1
    %v3544 = vadd.f32 %v3542, %v3543
    %v3545 = vmax.f32 %v3544, 1e-30
    %v3546 = vrcp.pop %v3545
    %v3547 = vmul.f32 %v3516, %v3546
    %v3548 = vmul.f32 %v3517, %v3546
    %v3549 = vmul.f32 %v3518, %v3546
    %v3550 = vmul.f32 %v3519, %v3546
    %v3551 = vmul.f32 %v3520, %v3546
    %v3552 = vmul.f32 %v3521, %v3546
    %v3553 = vmul.f32 %v3522, %v3546
    %v3554 = vmul.f32 %v3523, %v3546
    %3555 = vxpose.xlu0.b32.start [1/16] %v3547, 128
    %3556 = vxpose.xlu0.b32.cont [2/16] %v3548, 128
    %3557 = vxpose.xlu0.b32.cont [3/16] %v3549, 128
    %3558 = vxpose.xlu0.b32.cont [4/16] %v3550, 128
    %3559 = vxpose.xlu0.b32.cont [5/16] %v3551, 128
    %3560 = vxpose.xlu0.b32.cont [6/16] %v3552, 128
    %3561 = vxpose.xlu0.b32.cont [7/16] %v3553, 128
    %3562 = vxpose.xlu0.b32.cont [8/16] %v3554, 128
    %3563 = vxpose.xlu0.b32.cont [9/16] 0.0, 128
    %3564 = vxpose.xlu0.b32.cont [10/16] 0.0, 128
    %3565 = vxpose.xlu0.b32.cont [11/16] 0.0, 128
    %3566 = vxpose.xlu0.b32.cont [12/16] 0.0, 128
    %3567 = vxpose.xlu0.b32.cont [13/16] 0.0, 128
    %3568 = vxpose.xlu0.b32.cont [14/16] 0.0, 128
    %3569 = vxpose.xlu0.b32.cont [15/16] 0.0, 128
    %3570 = vxpose.xlu0.b32.end [16/16] 0.0, 128
    %v3571 = vpop.trf.xlu0
    %v3572 = vpop.trf.xlu0
    %v3573 = vpop.trf.xlu0
    %v3574 = vpop.trf.xlu0
    %v3575 = vpop.trf.xlu0
    %v3576 = vpop.trf.xlu0
    %v3577 = vpop.trf.xlu0
    %v3578 = vpop.trf.xlu0
    %v3579 = vpop.trf.xlu0
    %v3580 = vpop.trf.xlu0
    %v3581 = vpop.trf.xlu0
    %v3582 = vpop.trf.xlu0
    %v3583 = vpop.trf.xlu0
    %v3584 = vpop.trf.xlu0
    %v3585 = vpop.trf.xlu0
    %v3586 = vpop.trf.xlu0
    %v3588 = vsel %vm514, %v3571, 0
    %3590 = vmatprep.subr.mxu0 0.0
    %3591 = vmatpush1.msra.mxu0 %v3368
    %3592 = vmatprep.subr.mxu0 0.0
    %3593 = vmatpush1.msra.mxu0 %v3373
    %3594 = vmatprep.subr.mxu0 0.0
    %3595 = vmatpush1.msra.mxu0 %v3378
    %3596 = vmatprep.subr.mxu0 0.0
    %3597 = vmatpush1.msra.mxu0 %v3383
    %3598 = vmatprep.subr.mxu0 0.0
    %3599 = vmatpush1.msra.mxu0 %v3388
    %3600 = vmatprep.subr.mxu0 0.0
    %3601 = vmatpush1.msra.mxu0 %v3393
    %3602 = vmatprep.subr.mxu0 0.0
    %3603 = vmatpush1.msra.mxu0 %v3398
    %3604 = vmatprep.subr.mxu0 0.0
    %3605 = vmatpush1.msra.mxu0 %v3403
    %3606 = vmatprep.subr.mxu0 0.0
    %3607 = vmatpush1.msra.mxu0 0.0
    %3608 = vmatprep.subr.mxu0 0.0
    %3609 = vmatpush1.msra.mxu0 0.0
    %3610 = vmatprep.subr.mxu0 0.0
    %3611 = vmatpush1.msra.mxu0 0.0
    %3612 = vmatprep.subr.mxu0 0.0
    %3613 = vmatpush1.msra.mxu0 0.0
    %3614 = vmatprep.subr.mxu0 0.0
    %3615 = vmatpush1.msra.mxu0 0.0
    %3616 = vmatprep.subr.mxu0 0.0
    %3617 = vmatpush1.msra.mxu0 0.0
    %3618 = vmatprep.subr.mxu0 0.0
    %3619 = vmatpush1.msra.mxu0 0.0
    %3620 = vmatprep.subr.mxu0 0.0
    %3621 = vmatpush1.msra.mxu0 0.0
    %3622 = vmatprep.subr.mxu0 0.0
    %3623 = vmatpush1.msra.mxu0 0.0
    %3624 = vmatprep.subr.mxu0 0.0
    %3625 = vmatpush1.msra.mxu0 0.0
    %3626 = vmatprep.subr.mxu0 0.0
    %3627 = vmatpush1.msra.mxu0 0.0
    %3628 = vmatprep.subr.mxu0 0.0
    %3629 = vmatpush1.msra.mxu0 0.0
    %3630 = vmatprep.subr.mxu0 0.0
    %3631 = vmatpush1.msra.mxu0 0.0
    %3632 = vmatprep.subr.mxu0 0.0
    %3633 = vmatpush1.msra.mxu0 0.0
    %3634 = vmatprep.subr.mxu0 0.0
    %3635 = vmatpush1.msra.mxu0 0.0
    %3636 = vmatprep.subr.mxu0 0.0
    %3637 = vmatpush1.msra.mxu0 0.0
    %3638 = vmatprep.subr.mxu0 0.0
    %3639 = vmatpush1.msra.mxu0 0.0
    %3640 = vmatprep.subr.mxu0 0.0
    %3641 = vmatpush1.msra.mxu0 0.0
    %3642 = vmatprep.subr.mxu0 0.0
    %3643 = vmatpush1.msra.mxu0 0.0
    %3644 = vmatprep.subr.mxu0 0.0
    %3645 = vmatpush1.msra.mxu0 0.0
    %3646 = vmatprep.subr.mxu0 0.0
    %3647 = vmatpush1.msra.mxu0 0.0
    %3648 = vmatprep.subr.mxu0 0.0
    %3649 = vmatpush1.msra.mxu0 0.0
    %3650 = vmatprep.subr.mxu0 0.0
    %3651 = vmatpush1.msra.mxu0 0.0
    %3652 = vmatprep.subr.mxu0 0.0
    %3653 = vmatpush1.msra.mxu0 0.0
    %3654 = vmatprep.mubr.f32.mxu0 0.0
    %3655 = vmatmul.mubr.f32.gmra.mrb[0].mxu0 %v3588
    %v3656 = vpop.f32.mrb[0].mxu0
    %v3657 = vadd.f32 0.0, %v3656
    %v3658 = vpop.f32.mrb[0].mxu0
    %3659 = vdwg.mxu0
    %s3660 = scalar_lea.vmem %s8, 128
    %v3661 = vld [vmem:[%s3660] sm:$0xff]
    %v3662 = vld [vmem:[%s3660 + $0x8] sm:$0xff]
    %v3663 = vld [vmem:[%s3660 + $0x10] sm:$0xff]
    %v3664 = vld [vmem:[%s3660 + $0x18] sm:$0xff]
    %v3665 = vld [vmem:[%s3660 + $0x20] sm:$0xff]
    %v3666 = vld [vmem:[%s3660 + $0x28] sm:$0xff]
    %v3667 = vld [vmem:[%s3660 + $0x30] sm:$0xff]
    %v3668 = vld [vmem:[%s3660 + $0x38] sm:$0xff]
    %v3669 = vld [vmem:[%s3660 + $0x40] sm:$0xff]
    %v3670 = vld [vmem:[%s3660 + $0x48] sm:$0xff]
    %v3671 = vld [vmem:[%s3660 + $0x50] sm:$0xff]
    %v3672 = vld [vmem:[%s3660 + $0x58] sm:$0xff]
    %v3673 = vld [vmem:[%s3660 + $0x60] sm:$0xff]
    %v3674 = vld [vmem:[%s3660 + $0x68] sm:$0xff]
    %v3675 = vld [vmem:[%s3660 + $0x70] sm:$0xff]
    %v3676 = vld [vmem:[%s3660 + $0x78] sm:$0xff]
    %v3677 = vld [vmem:[%s9 + $0xb] sm:$0x1]
    %v3678 = vlaneseq
    %v3679 = vshrl.u32 %v3678, 7
    %v3680 = vsub.s32 0, %v3679
    %v3681 = vrot.slane %v3677, %v3680
    %3682 = vmatprep.subr.mxu0 0.0
    %3683 = vmatpush1.msra.mxu0 %v3661
    %3684 = vmatprep.subr.mxu0 0.0
    %3685 = vmatpush1.msra.mxu0 %v3662
    %3686 = vmatprep.subr.mxu0 0.0
    %3687 = vmatpush1.msra.mxu0 %v3663
    %3688 = vmatprep.subr.mxu0 0.0
    %3689 = vmatpush1.msra.mxu0 %v3664
    %3690 = vmatprep.subr.mxu0 0.0
    %3691 = vmatpush1.msra.mxu0 %v3665
    %3692 = vmatprep.subr.mxu0 0.0
    %3693 = vmatpush1.msra.mxu0 %v3666
    %3694 = vmatprep.subr.mxu0 0.0
    %3695 = vmatpush1.msra.mxu0 %v3667
    %3696 = vmatprep.subr.mxu0 0.0
    %3697 = vmatpush1.msra.mxu0 %v3668
    %3698 = vmatprep.subr.mxu0 0.0
    %3699 = vmatpush1.msra.mxu0 %v3669
    %3700 = vmatprep.subr.mxu0 0.0
    %3701 = vmatpush1.msra.mxu0 %v3670
    %3702 = vmatprep.subr.mxu0 0.0
    %3703 = vmatpush1.msra.mxu0 %v3671
    %3704 = vmatprep.subr.mxu0 0.0
    %3705 = vmatpush1.msra.mxu0 %v3672
    %3706 = vmatprep.subr.mxu0 0.0
    %3707 = vmatpush1.msra.mxu0 %v3673
    %3708 = vmatprep.subr.mxu0 0.0
    %3709 = vmatpush1.msra.mxu0 %v3674
    %3710 = vmatprep.subr.mxu0 0.0
    %3711 = vmatpush1.msra.mxu0 %v3675
    %3712 = vmatprep.subr.mxu0 0.0
    %3713 = vmatpush1.msra.mxu0 %v3676
    %3714 = vmatprep.subr.mxu0 0.0
    %3715 = vmatpush1.msra.mxu0 0.0
    %3716 = vmatprep.subr.mxu0 0.0
    %3717 = vmatpush1.msra.mxu0 0.0
    %3718 = vmatprep.subr.mxu0 0.0
    %3719 = vmatpush1.msra.mxu0 0.0
    %3720 = vmatprep.subr.mxu0 0.0
    %3721 = vmatpush1.msra.mxu0 0.0
    %3722 = vmatprep.subr.mxu0 0.0
    %3723 = vmatpush1.msra.mxu0 0.0
    %3724 = vmatprep.subr.mxu0 0.0
    %3725 = vmatpush1.msra.mxu0 0.0
    %3726 = vmatprep.subr.mxu0 0.0
    %3727 = vmatpush1.msra.mxu0 0.0
    %3728 = vmatprep.subr.mxu0 0.0
    %3729 = vmatpush1.msra.mxu0 0.0
    %3730 = vmatprep.subr.mxu0 0.0
    %3731 = vmatpush1.msra.mxu0 0.0
    %3732 = vmatprep.subr.mxu0 0.0
    %3733 = vmatpush1.msra.mxu0 0.0
    %3734 = vmatprep.subr.mxu0 0.0
    %3735 = vmatpush1.msra.mxu0 0.0
    %3736 = vmatprep.subr.mxu0 0.0
    %3737 = vmatpush1.msra.mxu0 0.0
    %3738 = vmatprep.subr.mxu0 0.0
    %3739 = vmatpush1.msra.mxu0 0.0
    %3740 = vmatprep.subr.mxu0 0.0
    %3741 = vmatpush1.msra.mxu0 0.0
    %3742 = vmatprep.subr.mxu0 0.0
    %3743 = vmatpush1.msra.mxu0 0.0
    %3744 = vmatprep.subr.mxu0 0.0
    %3745 = vmatpush1.msra.mxu0 0.0
    %3746 = vmatprep.mubr.f32.mxu0 0.0
    %3747 = vmatmul.mubr.f32.gmra.mrb[0].mxu0 %v3657
    %v3748 = vpop.f32.mrb[0].mxu0
    %v3749 = vadd.f32 %v3681, %v3748
    %v3750 = vpop.f32.mrb[0].mxu0
    %3751 = vdwg.mxu0
    %vm3752 = vcmp.ge.f32.partialorder %v3749, 0.0
    %v3753 = vmul.f32 %v3749, 0.01
    %v3754 = vsel %vm3752, %v3749, %v3753
    %s3755 = scalar_lea.vmem %s8, 256
    %v3756 = vld [vmem:[%s3755] sm:$0xff]
    %v3757 = vld [vmem:[%s3755 + $0x8] sm:$0xff]
    %v3758 = vld [vmem:[%s3755 + $0x10] sm:$0xff]
    %v3759 = vld [vmem:[%s3755 + $0x18] sm:$0xff]
    %v3760 = vld [vmem:[%s3755 + $0x20] sm:$0xff]
    %v3761 = vld [vmem:[%s3755 + $0x28] sm:$0xff]
    %v3762 = vld [vmem:[%s3755 + $0x30] sm:$0xff]
    %v3763 = vld [vmem:[%s3755 + $0x38] sm:$0xff]
    %v3764 = vld [vmem:[%s3755 + $0x40] sm:$0xff]
    %v3765 = vld [vmem:[%s3755 + $0x48] sm:$0xff]
    %v3766 = vld [vmem:[%s3755 + $0x50] sm:$0xff]
    %v3767 = vld [vmem:[%s3755 + $0x58] sm:$0xff]
    %v3768 = vld [vmem:[%s3755 + $0x60] sm:$0xff]
    %v3769 = vld [vmem:[%s3755 + $0x68] sm:$0xff]
    %v3770 = vld [vmem:[%s3755 + $0x70] sm:$0xff]
    %v3771 = vld [vmem:[%s3755 + $0x78] sm:$0xff]
    %v3772 = vld [vmem:[%s9 + $0xc] sm:$0x1]
    %v3773 = vlaneseq
    %v3774 = vshrl.u32 %v3773, 7
    %v3775 = vsub.s32 0, %v3774
    %v3776 = vrot.slane %v3772, %v3775
    %3777 = vmatprep.subr.mxu0 0.0
    %3778 = vmatpush1.msra.mxu0 %v3756
    %3779 = vmatprep.subr.mxu0 0.0
    %3780 = vmatpush1.msra.mxu0 %v3757
    %3781 = vmatprep.subr.mxu0 0.0
    %3782 = vmatpush1.msra.mxu0 %v3758
    %3783 = vmatprep.subr.mxu0 0.0
    %3784 = vmatpush1.msra.mxu0 %v3759
    %3785 = vmatprep.subr.mxu0 0.0
    %3786 = vmatpush1.msra.mxu0 %v3760
    %3787 = vmatprep.subr.mxu0 0.0
    %3788 = vmatpush1.msra.mxu0 %v3761
    %3789 = vmatprep.subr.mxu0 0.0
    %3790 = vmatpush1.msra.mxu0 %v3762
    %3791 = vmatprep.subr.mxu0 0.0
    %3792 = vmatpush1.msra.mxu0 %v3763
    %3793 = vmatprep.subr.mxu0 0.0
    %3794 = vmatpush1.msra.mxu0 %v3764
    %3795 = vmatprep.subr.mxu0 0.0
    %3796 = vmatpush1.msra.mxu0 %v3765
    %3797 = vmatprep.subr.mxu0 0.0
    %3798 = vmatpush1.msra.mxu0 %v3766
    %3799 = vmatprep.subr.mxu0 0.0
    %3800 = vmatpush1.msra.mxu0 %v3767
    %3801 = vmatprep.subr.mxu0 0.0
    %3802 = vmatpush1.msra.mxu0 %v3768
    %3803 = vmatprep.subr.mxu0 0.0
    %3804 = vmatpush1.msra.mxu0 %v3769
    %3805 = vmatprep.subr.mxu0 0.0
    %3806 = vmatpush1.msra.mxu0 %v3770
    %3807 = vmatprep.subr.mxu0 0.0
    %3808 = vmatpush1.msra.mxu0 %v3771
    %3809 = vmatprep.subr.mxu0 0.0
    %3810 = vmatpush1.msra.mxu0 0.0
    %3811 = vmatprep.subr.mxu0 0.0
    %3812 = vmatpush1.msra.mxu0 0.0
    %3813 = vmatprep.subr.mxu0 0.0
    %3814 = vmatpush1.msra.mxu0 0.0
    %3815 = vmatprep.subr.mxu0 0.0
    %3816 = vmatpush1.msra.mxu0 0.0
    %3817 = vmatprep.subr.mxu0 0.0
    %3818 = vmatpush1.msra.mxu0 0.0
    %3819 = vmatprep.subr.mxu0 0.0
    %3820 = vmatpush1.msra.mxu0 0.0
    %3821 = vmatprep.subr.mxu0 0.0
    %3822 = vmatpush1.msra.mxu0 0.0
    %3823 = vmatprep.subr.mxu0 0.0
    %3824 = vmatpush1.msra.mxu0 0.0
    %3825 = vmatprep.subr.mxu0 0.0
    %3826 = vmatpush1.msra.mxu0 0.0
    %3827 = vmatprep.subr.mxu0 0.0
    %3828 = vmatpush1.msra.mxu0 0.0
    %3829 = vmatprep.subr.mxu0 0.0
    %3830 = vmatpush1.msra.mxu0 0.0
    %3831 = vmatprep.subr.mxu0 0.0
    %3832 = vmatpush1.msra.mxu0 0.0
    %3833 = vmatprep.subr.mxu0 0.0
    %3834 = vmatpush1.msra.mxu0 0.0
    %3835 = vmatprep.subr.mxu0 0.0
    %3836 = vmatpush1.msra.mxu0 0.0
    %3837 = vmatprep.subr.mxu0 0.0
    %3838 = vmatpush1.msra.mxu0 0.0
    %3839 = vmatprep.subr.mxu0 0.0
    %3840 = vmatpush1.msra.mxu0 0.0
    %3841 = vmatprep.mubr.f32.mxu0 0.0
    %3842 = vmatmul.mubr.f32.gmra.mrb[0].mxu0 %v3754
    %v3843 = vpop.f32.mrb[0].mxu0
    %v3844 = vadd.f32 %v3776, %v3843
    %v3845 = vpop.f32.mrb[0].mxu0
    %3846 = vdwg.mxu0
    %3847 = vst [vmem:[%s10] sm:$0xf] %v3844
    // Predicated region
    $region46: #{polymer_net_forward.1} parent=1 // pred_check
      _
    $region47: #{polymer_net_forward.1} parent=1 // pred_check_branch
      %3849 = sbr.rel (0) target = $region49
    $region48: #{polymer_net_forward.1} parent=1 // pred_region
      _
    $region49: #{polymer_net_forward.1} parent=1 // pred_fallthru
      _
    // Predicated region
    $region50: #{polymer_net_forward.1} parent=1 // pred_check
      _
    $region51: #{polymer_net_forward.1} parent=1 // pred_check_branch
      %3851 = sbr.rel (0) target = $region53
    $region52: #{polymer_net_forward.1} parent=1 // pred_region
      _
    $region53: #{polymer_net_forward.1} parent=1 // pred_fallthru
      _
    %3852 = vsyncpa [#allocation3], 1

</llo_original>
